<compile_context>
chip_gen: v5e
topology: v5e:2x2
jax: 0.10.0
libtpu: 0.0.40
codegen_flags: <defaults>
</compile_context>

<pallas_src>
import functools

import jax
import jax.numpy as jnp
from jax.experimental import pallas as pl


# ----------------------------------------------------------------------------
# The fused kernel
# ----------------------------------------------------------------------------

def _policy_gcn_kernel(*refs, A, F, k, M, BT, L_tcn, L_gcn, n_sink, t_soft):
    it = iter(refs)
    # --- inputs -------------------------------------------------------------
    x_ref = next(it)          # (Cin, M)   activations, transposed layout
    noise_ref = next(it)      # (A, A, BT) uniform noise, layout (i, j, bt)
    we1 = next(it); be1 = next(it)            # Action_Embed layer 1
    we2 = next(it); be2 = next(it)            # Action_Embed layer 2
    win = next(it); bin_ = next(it)           # TCN 1x1 in
    tw0 = next(it); tw1 = next(it); tw2 = next(it)   # (L, A, A) dilated taps
    tbd = next(it); twp = next(it); tbp = next(it)   # (L, A, 1)/(L, A, A)/(L, A, 1)
    wout = next(it); bout = next(it)          # TCN 1x1 out
    sh1 = next(it); sh2 = next(it)            # (L, M, M) causal time-shift mats
    pool = next(it)                           # (M, BT)  mean over V
    expand = next(it)                         # (BT, M)  broadcast bt -> btv
    gadj = next(it)                           # (A, M, M) block-diag A_hat^T
    gw = [next(it) for _ in range(L_gcn)]     # (A, F_out, C_in) per layer
    gb = [next(it) for _ in range(L_gcn)]     # (A, F_out, 1)    per layer
    wc1 = next(it); bc1 = next(it)            # channel attention MLP
    wc2 = next(it); bc2 = next(it)
    # --- outputs ------------------------------------------------------------
    out_ref = next(it)        # (F, M)
    xpol_ref = next(it)       # (A, k, BT)

    def dot(a, b):
        return jnp.dot(a, b, preferred_element_type=jnp.float32)

    x = x_ref[...]                                            # (Cin, M)

    # ---------------- Policy.Action_Embed (Linear+ReLU x2) -------------------
    h = jnp.maximum(dot(we1[...], x) + be1[...], 0.0)         # (A, M)
    h = jnp.maximum(dot(we2[...], h) + be2[...], 0.0)         # (A, M)

    # ---------------- Policy.TCN (MS-TCN style causal surrogate) -------------
    y = dot(win[...], h) + bin_[...]                          # (A, M)
    for i in range(L_tcn):
        y_d = dot(y, sh1[i])       # tap at t - d      (causal, zero padded)
        y_2d = dot(y, sh2[i])      # tap at t - 2d
        hh = dot(tw0[i], y_2d) + dot(tw1[i], y_d) + dot(tw2[i], y) + tbd[i]
        hh = jnp.maximum(hh, 0.0)
        y = y + dot(twp[i], hh) + tbp[i]
    y = dot(wout[...], y) + bout[...]                         # (A, M)

    # ---------------- node pool over V + gumbel sinkhorn ---------------------
    pooled = dot(y, pool[...])                                # (A, BT)
    u = jnp.minimum(noise_ref[...], 1.0 - 1e-7)               # defensive clamp
    g = -jnp.log(-jnp.log(u + 1e-8) + 1e-8)
    la = pooled[None, :, :] + g           # logits[i, j, bt] = pooled[j, bt]
    for _ in range(n_sink):
        m1 = jnp.max(la, axis=1, keepdims=True)               # over j (dim=-1)
        la = la - (m1 + jnp.log(jnp.sum(jnp.exp(la - m1), axis=1, keepdims=True)))
        m0 = jnp.max(la, axis=0, keepdims=True)               # over i (dim=-2)
        la = la - (m0 + jnp.log(jnp.sum(jnp.exp(la - m0), axis=0, keepdims=True)))
    s = la / t_soft
    s = s - jnp.max(s, axis=1, keepdims=True)
    e = jnp.exp(s)
    perm = e / jnp.sum(e, axis=1, keepdims=True)              # (A, A, BT)
    perm_k = perm[:, :k, :]                                   # (A, k, BT)
    xpol_ref[...] = perm_k

    # ---------------- GCN_List (per-mode stacked spatial graph convs) --------
    h_modes = []
    for gm in range(A):
        hg = x                                                # (Cin, M)
        for l in range(L_gcn):
            hg = dot(dot(gw[l][gm], hg), gadj[gm])            # (F_out, M)
            hg = jnp.maximum(hg + gb[l][gm], 0.0)
        h_modes.append(hg)                                    # (F, M)

    # ---------------- einsum + channel attention + sum over modes ------------
    # x_attention[n, bt] = mean_{v,f} y_mix = sum_m mean_{v,f}(H_m) * perm[m,n,bt]
    attn_in = jnp.zeros((k, BT), jnp.float32)
    for gm in range(A):
        hbar = dot(jnp.mean(h_modes[gm], axis=0, keepdims=True), pool[...])  # (1, BT)
        attn_in = attn_in + perm_k[gm] * hbar                                 # (k, BT)
    a1 = jnp.maximum(dot(wc1[...], attn_in) + bc1[...], 0.0)                  # (2k, BT)
    attn = jax.nn.sigmoid(dot(wc2[...], a1) + bc2[...])                       # (k, BT)

    # out[f, btv] = sum_m H_m[f, btv] * (sum_n perm[m, n, bt] * attn[n, bt])
    out = jnp.zeros((F, M), jnp.float32)
    for gm in range(A):
        c = jnp.sum(perm_k[gm] * attn, axis=0, keepdims=True)  # (1, BT)
        c_exp = dot(c, expand[...])                            # (1, M)
        out = out + h_modes[gm] * c_exp
    out_ref[...] = out


# ----------------------------------------------------------------------------
# Parameters (PyTorch Linear-style init, stored in (out, in) layout)
# ----------------------------------------------------------------------------

def _dense_t(key, fan_in, fan_out):
    kw, kb = jax.random.split(key)
    bound = 1.0 / (fan_in ** 0.5)
    w = jax.random.uniform(kw, (fan_out, fan_in), jnp.float32, -bound, bound)
    b = jax.random.uniform(kb, (fan_out, 1), jnp.float32, -bound, bound)
    return w, b


def _build_adjacency(mode_idx, v):
    # TODO(synk): graph_args / graph_mode adjacency construction not provided;
    # deterministic ring adjacency per mode, row-normalized.
    eye = jnp.eye(v, dtype=jnp.float32)
    off = (mode_idx % (v - 1)) + 1
    ring = jnp.roll(eye, off, axis=1)
    a = eye + ring + ring.T
    d = jnp.sum(a, axis=1, keepdims=True)
    return a / d


def init_params(key, *, in_channels, num_f_maps, action_size, k,
                num_layers, gcn_layers, node_n):
    keys = iter(jax.random.split(key, 128))
    p = {}

    # Policy.Action_Embed: Linear(Cin -> A), ReLU, Linear(A -> A), ReLU
    p['we1'], p['be1'] = _dense_t(next(keys), in_channels, action_size)
    p['we2'], p['be2'] = _dense_t(next(keys), action_size, action_size)

    # Policy.TCN = SingleStageModel surrogate (causal MS-TCN style)
    p['win'], p['bin'] = _dense_t(next(keys), action_size, action_size)
    tw0, tw1, tw2, tbd, twp, tbp = [], [], [], [], [], []
    for _ in range(num_layers):
        kk = jax.random.split(next(keys), 4)
        bound = 1.0 / ((action_size * 3) ** 0.5)       # conv fan_in = C_in * 3
        tw0.append(jax.random.uniform(kk[0], (action_size, action_size), jnp.float32, -bound, bound))
        tw1.append(jax.random.uniform(kk[1], (action_size, action_size), jnp.float32, -bound, bound))
        tw2.append(jax.random.uniform(kk[2], (action_size, action_size), jnp.float32, -bound, bound))
        tbd.append(jax.random.uniform(kk[3], (action_size, 1), jnp.float32, -bound, bound))
        wp, bp = _dense_t(next(keys), action_size, action_size)
        twp.append(wp); tbp.append(bp)
    p['tw0'] = jnp.stack(tw0); p['tw1'] = jnp.stack(tw1); p['tw2'] = jnp.stack(tw2)
    p['tbd'] = jnp.stack(tbd); p['twp'] = jnp.stack(twp); p['tbp'] = jnp.stack(tbp)
    p['wout'], p['bout'] = _dense_t(next(keys), action_size, action_size)

    # channel_attention: Linear(k -> 2k), ReLU, Linear(2k -> k), Sigmoid
    p['wc1'], p['bc1'] = _dense_t(next(keys), k, 2 * k)
    p['wc2'], p['bc2'] = _dense_t(next(keys), 2 * k, k)

    # GCN_List: one SGCN surrogate per graph mode (edge importance init = ones)
    p['a_hat'] = [_build_adjacency(g, node_n) for g in range(action_size)]
    gw, gb = [], []
    for l in range(gcn_layers):
        cin_l = in_channels if l == 0 else num_f_maps
        ws, bs = [], []
        for _ in range(action_size):
            w, b = _dense_t(next(keys), cin_l, num_f_maps)
            ws.append(w); bs.append(b)
        gw.append(jnp.stack(ws)); gb.append(jnp.stack(bs))
    p['gw'] = gw; p['gb'] = gb
    return p


def build_constants(params, B, T, V):
    """Structural matrices that turn shifts / pooling / graph mixing into matmuls."""
    BT = B * T
    L_tcn = int(params['tw0'].shape[0])
    eye_v = jnp.eye(V, dtype=jnp.float32)
    eye_b = jnp.eye(B, dtype=jnp.float32)
    eye_bt = jnp.eye(BT, dtype=jnp.float32)

    def shift_mat(s):
        # (Y @ P)[:, (b,t,v)] = Y[:, (b, t-s, v)] if t >= s else 0  (causal)
        st = jnp.eye(T, k=int(s), dtype=jnp.float32)
        return jnp.kron(eye_b, jnp.kron(st, eye_v))

    sh1 = jnp.stack([shift_mat(2 ** i) for i in range(L_tcn)])       # (L, M, M)
    sh2 = jnp.stack([shift_mat(2 * (2 ** i)) for i in range(L_tcn)])  # (L, M, M)
    pool = jnp.kron(eye_bt, jnp.ones((V, 1), jnp.float32) / V)        # (M, BT)
    expand = jnp.kron(eye_bt, jnp.ones((1, V), jnp.float32))          # (BT, M)
    # block-diagonal (per (b,t)) adjacency, transposed for the (C, M) layout
    gadj = jnp.stack([jnp.kron(eye_bt, a.T) for a in params['a_hat']])  # (A, M, M)
    return dict(shift1=sh1, shift2=sh2, pool=pool, expand=expand, gadj=gadj)


# ----------------------------------------------------------------------------
# Policy_GCN forward (one pallas_call)
# ----------------------------------------------------------------------------

def policy_gcn_forward(params, consts, x, noise_u):
    B, T, V, Cin = x.shape
    A = params['we2'].shape[0]                 # action_size = len(graph_mode)
    F = params['gw'][0].shape[1]               # num_f_maps
    k = params['wc1'].shape[1]                 # target_action_size
    L_tcn = params['tw0'].shape[0]
    L_gcn = len(params['gw'])
    BT = B * T
    M = BT * V

    # channels-on-sublanes / positions-on-lanes layouts (wrapper-side, free)
    xT = x.reshape(M, Cin).T                                       # (Cin, M)
    noiseT = jnp.transpose(noise_u.reshape(BT, A, A), (1, 2, 0))   # (A, A, BT)

    args = [
        xT, noiseT,
        params['we1'], params['be1'], params['we2'], params['be2'],
        params['win'], params['bin'],
        params['tw0'], params['tw1'], params['tw2'],
        params['tbd'], params['twp'], params['tbp'],
        params['wout'], params['bout'],
        consts['shift1'], consts['shift2'],
        consts['pool'], consts['expand'], consts['gadj'],
        *params['gw'], *params['gb'],
        params['wc1'], params['bc1'], params['wc2'], params['bc2'],
    ]

    out_fm, xpol = pl.pallas_call(
        functools.partial(_policy_gcn_kernel,
                          A=int(A), F=int(F), k=int(k), M=int(M), BT=int(BT),
                          L_tcn=int(L_tcn), L_gcn=int(L_gcn),
                          n_sink=10, t_soft=1e-6),
        out_shape=(jax.ShapeDtypeStruct((F, M), jnp.float32),
                   jax.ShapeDtypeStruct((A, k, BT), jnp.float32)),
    )(*args)

    out = out_fm.T.reshape(B, T, V, F)
    x_policy = jnp.transpose(xpol, (2, 0, 1)).reshape(B, T, A, k)
    return out, x_policy


# ----------------------------------------------------------------------------
# Main
# ----------------------------------------------------------------------------

if __name__ == "__main__":
    # small config consistent with the module
    B, T, V = 2, 8, 5            # batch, time, graph nodes (node_n)
    in_channels = 4
    num_f_maps = 8
    graph_mode = ["m0", "m1", "m2", "m3"]   # action_size = 4
    action_size = len(graph_mode)
    k = 3                        # target_action_size
    num_layers = 3               # TCN layers
    gcn_layers = 2

    key = jax.random.PRNGKey(0)
    kp, kx, kn = jax.random.split(key, 3)

    params = init_params(kp, in_channels=in_channels, num_f_maps=num_f_maps,
                         action_size=action_size, k=k, num_layers=num_layers,
                         gcn_layers=gcn_layers, node_n=V)
    consts = build_constants(params, B, T, V)

    x = jax.random.normal(kx, (B, T, V, in_channels), jnp.float32)
    # torch RNG replaced by an explicit U(0,1) noise input (train/eval branches
    # of gumbel_softmax_sinkhorn both reduce to (B,T,A,A) uniform noise)
    noise_u = jax.random.uniform(kn, (B, T, action_size, action_size), jnp.float32)

    fwd = jax.jit(policy_gcn_forward)
    out, x_policy = fwd(params, consts, x, noise_u)
    jax.block_until_ready(out)
    jax.block_until_ready(x_policy)

    assert out.shape == (B, T, V, num_f_maps)
    assert x_policy.shape == (B, T, action_size, k)
    print("KERNEL_OK")
</pallas_src>

<mosaic_0001>
module attributes {stable_mosaic.version = 11 : i64} {
  func.func @_policy_gcn_kernel(%arg0: memref<4x80xf32, #tpu.memory_space<vmem>>, %arg1: memref<4x4x16xf32, #tpu.memory_space<vmem>>, %arg2: memref<4x4xf32, #tpu.memory_space<vmem>>, %arg3: memref<4x1xf32, #tpu.memory_space<vmem>>, %arg4: memref<4x4xf32, #tpu.memory_space<vmem>>, %arg5: memref<4x1xf32, #tpu.memory_space<vmem>>, %arg6: memref<4x4xf32, #tpu.memory_space<vmem>>, %arg7: memref<4x1xf32, #tpu.memory_space<vmem>>, %arg8: memref<3x4x4xf32, #tpu.memory_space<vmem>>, %arg9: memref<3x4x4xf32, #tpu.memory_space<vmem>>, %arg10: memref<3x4x4xf32, #tpu.memory_space<vmem>>, %arg11: memref<3x4x1xf32, #tpu.memory_space<vmem>>, %arg12: memref<3x4x4xf32, #tpu.memory_space<vmem>>, %arg13: memref<3x4x1xf32, #tpu.memory_space<vmem>>, %arg14: memref<4x4xf32, #tpu.memory_space<vmem>>, %arg15: memref<4x1xf32, #tpu.memory_space<vmem>>, %arg16: memref<3x80x80xf32, #tpu.memory_space<vmem>>, %arg17: memref<3x80x80xf32, #tpu.memory_space<vmem>>, %arg18: memref<80x16xf32, #tpu.memory_space<vmem>>, %arg19: memref<16x80xf32, #tpu.memory_space<vmem>>, %arg20: memref<4x80x80xf32, #tpu.memory_space<vmem>>, %arg21: memref<4x8x4xf32, #tpu.memory_space<vmem>>, %arg22: memref<4x8x8xf32, #tpu.memory_space<vmem>>, %arg23: memref<4x8x1xf32, #tpu.memory_space<vmem>>, %arg24: memref<4x8x1xf32, #tpu.memory_space<vmem>>, %arg25: memref<6x3xf32, #tpu.memory_space<vmem>>, %arg26: memref<6x1xf32, #tpu.memory_space<vmem>>, %arg27: memref<3x6xf32, #tpu.memory_space<vmem>>, %arg28: memref<3x1xf32, #tpu.memory_space<vmem>>, %arg29: memref<8x80xf32, #tpu.memory_space<vmem>>, %arg30: memref<4x3x16xf32, #tpu.memory_space<vmem>>) attributes {dimension_semantics = [], scalar_prefetch = 0 : i64, scratch_operands = 0 : i64, tpu.core_type = #tpu.core_type<tc>} {
    %c0 = arith.constant 0 : index
    %c0_0 = arith.constant 0 : index
    %0 = vector.load %arg0[%c0, %c0_0] : memref<4x80xf32, #tpu.memory_space<vmem>>, vector<4x80xf32>
    %c0_1 = arith.constant 0 : index
    %c0_2 = arith.constant 0 : index
    %1 = vector.load %arg2[%c0_1, %c0_2] : memref<4x4xf32, #tpu.memory_space<vmem>>, vector<4x4xf32>
    %cst = arith.constant dense<0.000000e+00> : vector<4x80xf32>
    %2 = tpu.matmul %1, %0, %cst {dimension_numbers = #tpu.dot_dimension_numbers<[1], [0], [0], [1], [0, 0, 1, 1], [], []>} : vector<4x4xf32>, vector<4x80xf32>, vector<4x80xf32> -> vector<4x80xf32>
    %c0_3 = arith.constant 0 : index
    %c0_4 = arith.constant 0 : index
    %3 = vector.load %arg3[%c0_3, %c0_4] : memref<4x1xf32, #tpu.memory_space<vmem>>, vector<4x1xf32>
    %4 = vector.broadcast %3 : vector<4x1xf32> to vector<4x80xf32>
    %5 = arith.addf %2, %4 : vector<4x80xf32>
    %cst_5 = arith.constant 0.000000e+00 : f32
    %6 = vector.broadcast %cst_5 : f32 to vector<4x80xf32>
    %7 = arith.maximumf %5, %6 : vector<4x80xf32>
    %c0_6 = arith.constant 0 : index
    %c0_7 = arith.constant 0 : index
    %8 = vector.load %arg4[%c0_6, %c0_7] : memref<4x4xf32, #tpu.memory_space<vmem>>, vector<4x4xf32>
    %cst_8 = arith.constant dense<0.000000e+00> : vector<4x80xf32>
    %9 = tpu.matmul %8, %7, %cst_8 {dimension_numbers = #tpu.dot_dimension_numbers<[1], [0], [0], [1], [0, 0, 1, 1], [], []>} : vector<4x4xf32>, vector<4x80xf32>, vector<4x80xf32> -> vector<4x80xf32>
    %c0_9 = arith.constant 0 : index
    %c0_10 = arith.constant 0 : index
    %10 = vector.load %arg5[%c0_9, %c0_10] : memref<4x1xf32, #tpu.memory_space<vmem>>, vector<4x1xf32>
    %11 = vector.broadcast %10 : vector<4x1xf32> to vector<4x80xf32>
    %12 = arith.addf %9, %11 : vector<4x80xf32>
    %cst_11 = arith.constant 0.000000e+00 : f32
    %13 = vector.broadcast %cst_11 : f32 to vector<4x80xf32>
    %14 = arith.maximumf %12, %13 : vector<4x80xf32>
    %c0_12 = arith.constant 0 : index
    %c0_13 = arith.constant 0 : index
    %15 = vector.load %arg6[%c0_12, %c0_13] : memref<4x4xf32, #tpu.memory_space<vmem>>, vector<4x4xf32>
    %cst_14 = arith.constant dense<0.000000e+00> : vector<4x80xf32>
    %16 = tpu.matmul %15, %14, %cst_14 {dimension_numbers = #tpu.dot_dimension_numbers<[1], [0], [0], [1], [0, 0, 1, 1], [], []>} : vector<4x4xf32>, vector<4x80xf32>, vector<4x80xf32> -> vector<4x80xf32>
    %c0_15 = arith.constant 0 : index
    %c0_16 = arith.constant 0 : index
    %17 = vector.load %arg7[%c0_15, %c0_16] : memref<4x1xf32, #tpu.memory_space<vmem>>, vector<4x1xf32>
    %18 = vector.broadcast %17 : vector<4x1xf32> to vector<4x80xf32>
    %19 = arith.addf %16, %18 : vector<4x80xf32>
    %c0_17 = arith.constant 0 : index
    %c0_18 = arith.constant 0 : index
    %c0_19 = arith.constant 0 : index
    %20 = vector.load %arg16[%c0_17, %c0_18, %c0_19] : memref<3x80x80xf32, #tpu.memory_space<vmem>>, vector<1x80x80xf32>
    %21 = vector.shape_cast %20 : vector<1x80x80xf32> to vector<80x80xf32>
    %cst_20 = arith.constant dense<0.000000e+00> : vector<4x80xf32>
    %22 = tpu.matmul %19, %21, %cst_20 {dimension_numbers = #tpu.dot_dimension_numbers<[1], [0], [0], [1], [0, 0, 1, 1], [], []>} : vector<4x80xf32>, vector<80x80xf32>, vector<4x80xf32> -> vector<4x80xf32>
    %c0_21 = arith.constant 0 : index
    %c0_22 = arith.constant 0 : index
    %c0_23 = arith.constant 0 : index
    %23 = vector.load %arg17[%c0_21, %c0_22, %c0_23] : memref<3x80x80xf32, #tpu.memory_space<vmem>>, vector<1x80x80xf32>
    %24 = vector.shape_cast %23 : vector<1x80x80xf32> to vector<80x80xf32>
    %cst_24 = arith.constant dense<0.000000e+00> : vector<4x80xf32>
    %25 = tpu.matmul %19, %24, %cst_24 {dimension_numbers = #tpu.dot_dimension_numbers<[1], [0], [0], [1], [0, 0, 1, 1], [], []>} : vector<4x80xf32>, vector<80x80xf32>, vector<4x80xf32> -> vector<4x80xf32>
    %c0_25 = arith.constant 0 : index
    %c0_26 = arith.constant 0 : index
    %c0_27 = arith.constant 0 : index
    %26 = vector.load %arg8[%c0_25, %c0_26, %c0_27] : memref<3x4x4xf32, #tpu.memory_space<vmem>>, vector<1x4x4xf32>
    %27 = vector.shape_cast %26 : vector<1x4x4xf32> to vector<4x4xf32>
    %cst_28 = arith.constant dense<0.000000e+00> : vector<4x80xf32>
    %28 = tpu.matmul %27, %25, %cst_28 {dimension_numbers = #tpu.dot_dimension_numbers<[1], [0], [0], [1], [0, 0, 1, 1], [], []>} : vector<4x4xf32>, vector<4x80xf32>, vector<4x80xf32> -> vector<4x80xf32>
    %c0_29 = arith.constant 0 : index
    %c0_30 = arith.constant 0 : index
    %c0_31 = arith.constant 0 : index
    %29 = vector.load %arg9[%c0_29, %c0_30, %c0_31] : memref<3x4x4xf32, #tpu.memory_space<vmem>>, vector<1x4x4xf32>
    %30 = vector.shape_cast %29 : vector<1x4x4xf32> to vector<4x4xf32>
    %cst_32 = arith.constant dense<0.000000e+00> : vector<4x80xf32>
    %31 = tpu.matmul %30, %22, %cst_32 {dimension_numbers = #tpu.dot_dimension_numbers<[1], [0], [0], [1], [0, 0, 1, 1], [], []>} : vector<4x4xf32>, vector<4x80xf32>, vector<4x80xf32> -> vector<4x80xf32>
    %32 = arith.addf %28, %31 : vector<4x80xf32>
    %c0_33 = arith.constant 0 : index
    %c0_34 = arith.constant 0 : index
    %c0_35 = arith.constant 0 : index
    %33 = vector.load %arg10[%c0_33, %c0_34, %c0_35] : memref<3x4x4xf32, #tpu.memory_space<vmem>>, vector<1x4x4xf32>
    %34 = vector.shape_cast %33 : vector<1x4x4xf32> to vector<4x4xf32>
    %cst_36 = arith.constant dense<0.000000e+00> : vector<4x80xf32>
    %35 = tpu.matmul %34, %19, %cst_36 {dimension_numbers = #tpu.dot_dimension_numbers<[1], [0], [0], [1], [0, 0, 1, 1], [], []>} : vector<4x4xf32>, vector<4x80xf32>, vector<4x80xf32> -> vector<4x80xf32>
    %36 = arith.addf %32, %35 : vector<4x80xf32>
    %c0_37 = arith.constant 0 : index
    %c0_38 = arith.constant 0 : index
    %c0_39 = arith.constant 0 : index
    %37 = vector.load %arg11[%c0_37, %c0_38, %c0_39] : memref<3x4x1xf32, #tpu.memory_space<vmem>>, vector<1x4x1xf32>
    %38 = vector.shape_cast %37 : vector<1x4x1xf32> to vector<4x1xf32>
    %39 = vector.broadcast %38 : vector<4x1xf32> to vector<4x80xf32>
    %40 = arith.addf %36, %39 : vector<4x80xf32>
    %cst_40 = arith.constant 0.000000e+00 : f32
    %41 = vector.broadcast %cst_40 : f32 to vector<4x80xf32>
    %42 = arith.maximumf %40, %41 : vector<4x80xf32>
    %c0_41 = arith.constant 0 : index
    %c0_42 = arith.constant 0 : index
    %c0_43 = arith.constant 0 : index
    %43 = vector.load %arg12[%c0_41, %c0_42, %c0_43] : memref<3x4x4xf32, #tpu.memory_space<vmem>>, vector<1x4x4xf32>
    %44 = vector.shape_cast %43 : vector<1x4x4xf32> to vector<4x4xf32>
    %cst_44 = arith.constant dense<0.000000e+00> : vector<4x80xf32>
    %45 = tpu.matmul %44, %42, %cst_44 {dimension_numbers = #tpu.dot_dimension_numbers<[1], [0], [0], [1], [0, 0, 1, 1], [], []>} : vector<4x4xf32>, vector<4x80xf32>, vector<4x80xf32> -> vector<4x80xf32>
    %46 = arith.addf %19, %45 : vector<4x80xf32>
    %c0_45 = arith.constant 0 : index
    %c0_46 = arith.constant 0 : index
    %c0_47 = arith.constant 0 : index
    %47 = vector.load %arg13[%c0_45, %c0_46, %c0_47] : memref<3x4x1xf32, #tpu.memory_space<vmem>>, vector<1x4x1xf32>
    %48 = vector.shape_cast %47 : vector<1x4x1xf32> to vector<4x1xf32>
    %49 = vector.broadcast %48 : vector<4x1xf32> to vector<4x80xf32>
    %50 = arith.addf %46, %49 : vector<4x80xf32>
    %c1 = arith.constant 1 : index
    %c0_48 = arith.constant 0 : index
    %c0_49 = arith.constant 0 : index
    %51 = vector.load %arg16[%c1, %c0_48, %c0_49] : memref<3x80x80xf32, #tpu.memory_space<vmem>>, vector<1x80x80xf32>
    %52 = vector.shape_cast %51 : vector<1x80x80xf32> to vector<80x80xf32>
    %cst_50 = arith.constant dense<0.000000e+00> : vector<4x80xf32>
    %53 = tpu.matmul %50, %52, %cst_50 {dimension_numbers = #tpu.dot_dimension_numbers<[1], [0], [0], [1], [0, 0, 1, 1], [], []>} : vector<4x80xf32>, vector<80x80xf32>, vector<4x80xf32> -> vector<4x80xf32>
    %c1_51 = arith.constant 1 : index
    %c0_52 = arith.constant 0 : index
    %c0_53 = arith.constant 0 : index
    %54 = vector.load %arg17[%c1_51, %c0_52, %c0_53] : memref<3x80x80xf32, #tpu.memory_space<vmem>>, vector<1x80x80xf32>
    %55 = vector.shape_cast %54 : vector<1x80x80xf32> to vector<80x80xf32>
    %cst_54 = arith.constant dense<0.000000e+00> : vector<4x80xf32>
    %56 = tpu.matmul %50, %55, %cst_54 {dimension_numbers = #tpu.dot_dimension_numbers<[1], [0], [0], [1], [0, 0, 1, 1], [], []>} : vector<4x80xf32>, vector<80x80xf32>, vector<4x80xf32> -> vector<4x80xf32>
    %c1_55 = arith.constant 1 : index
    %c0_56 = arith.constant 0 : index
    %c0_57 = arith.constant 0 : index
    %57 = vector.load %arg8[%c1_55, %c0_56, %c0_57] : memref<3x4x4xf32, #tpu.memory_space<vmem>>, vector<1x4x4xf32>
    %58 = vector.shape_cast %57 : vector<1x4x4xf32> to vector<4x4xf32>
    %cst_58 = arith.constant dense<0.000000e+00> : vector<4x80xf32>
    %59 = tpu.matmul %58, %56, %cst_58 {dimension_numbers = #tpu.dot_dimension_numbers<[1], [0], [0], [1], [0, 0, 1, 1], [], []>} : vector<4x4xf32>, vector<4x80xf32>, vector<4x80xf32> -> vector<4x80xf32>
    %c1_59 = arith.constant 1 : index
    %c0_60 = arith.constant 0 : index
    %c0_61 = arith.constant 0 : index
    %60 = vector.load %arg9[%c1_59, %c0_60, %c0_61] : memref<3x4x4xf32, #tpu.memory_space<vmem>>, vector<1x4x4xf32>
    %61 = vector.shape_cast %60 : vector<1x4x4xf32> to vector<4x4xf32>
    %cst_62 = arith.constant dense<0.000000e+00> : vector<4x80xf32>
    %62 = tpu.matmul %61, %53, %cst_62 {dimension_numbers = #tpu.dot_dimension_numbers<[1], [0], [0], [1], [0, 0, 1, 1], [], []>} : vector<4x4xf32>, vector<4x80xf32>, vector<4x80xf32> -> vector<4x80xf32>
    %63 = arith.addf %59, %62 : vector<4x80xf32>
    %c1_63 = arith.constant 1 : index
    %c0_64 = arith.constant 0 : index
    %c0_65 = arith.constant 0 : index
    %64 = vector.load %arg10[%c1_63, %c0_64, %c0_65] : memref<3x4x4xf32, #tpu.memory_space<vmem>>, vector<1x4x4xf32>
    %65 = vector.shape_cast %64 : vector<1x4x4xf32> to vector<4x4xf32>
    %cst_66 = arith.constant dense<0.000000e+00> : vector<4x80xf32>
    %66 = tpu.matmul %65, %50, %cst_66 {dimension_numbers = #tpu.dot_dimension_numbers<[1], [0], [0], [1], [0, 0, 1, 1], [], []>} : vector<4x4xf32>, vector<4x80xf32>, vector<4x80xf32> -> vector<4x80xf32>
    %67 = arith.addf %63, %66 : vector<4x80xf32>
    %c1_67 = arith.constant 1 : index
    %c0_68 = arith.constant 0 : index
    %c0_69 = arith.constant 0 : index
    %68 = vector.load %arg11[%c1_67, %c0_68, %c0_69] : memref<3x4x1xf32, #tpu.memory_space<vmem>>, vector<1x4x1xf32>
    %69 = vector.shape_cast %68 : vector<1x4x1xf32> to vector<4x1xf32>
    %70 = vector.broadcast %69 : vector<4x1xf32> to vector<4x80xf32>
    %71 = arith.addf %67, %70 : vector<4x80xf32>
    %cst_70 = arith.constant 0.000000e+00 : f32
    %72 = vector.broadcast %cst_70 : f32 to vector<4x80xf32>
    %73 = arith.maximumf %71, %72 : vector<4x80xf32>
    %c1_71 = arith.constant 1 : index
    %c0_72 = arith.constant 0 : index
    %c0_73 = arith.constant 0 : index
    %74 = vector.load %arg12[%c1_71, %c0_72, %c0_73] : memref<3x4x4xf32, #tpu.memory_space<vmem>>, vector<1x4x4xf32>
    %75 = vector.shape_cast %74 : vector<1x4x4xf32> to vector<4x4xf32>
    %cst_74 = arith.constant dense<0.000000e+00> : vector<4x80xf32>
    %76 = tpu.matmul %75, %73, %cst_74 {dimension_numbers = #tpu.dot_dimension_numbers<[1], [0], [0], [1], [0, 0, 1, 1], [], []>} : vector<4x4xf32>, vector<4x80xf32>, vector<4x80xf32> -> vector<4x80xf32>
    %77 = arith.addf %50, %76 : vector<4x80xf32>
    %c1_75 = arith.constant 1 : index
    %c0_76 = arith.constant 0 : index
    %c0_77 = arith.constant 0 : index
    %78 = vector.load %arg13[%c1_75, %c0_76, %c0_77] : memref<3x4x1xf32, #tpu.memory_space<vmem>>, vector<1x4x1xf32>
    %79 = vector.shape_cast %78 : vector<1x4x1xf32> to vector<4x1xf32>
    %80 = vector.broadcast %79 : vector<4x1xf32> to vector<4x80xf32>
    %81 = arith.addf %77, %80 : vector<4x80xf32>
    %c2 = arith.constant 2 : index
    %c0_78 = arith.constant 0 : index
    %c0_79 = arith.constant 0 : index
    %82 = vector.load %arg16[%c2, %c0_78, %c0_79] : memref<3x80x80xf32, #tpu.memory_space<vmem>>, vector<1x80x80xf32>
    %83 = vector.shape_cast %82 : vector<1x80x80xf32> to vector<80x80xf32>
    %cst_80 = arith.constant dense<0.000000e+00> : vector<4x80xf32>
    %84 = tpu.matmul %81, %83, %cst_80 {dimension_numbers = #tpu.dot_dimension_numbers<[1], [0], [0], [1], [0, 0, 1, 1], [], []>} : vector<4x80xf32>, vector<80x80xf32>, vector<4x80xf32> -> vector<4x80xf32>
    %c2_81 = arith.constant 2 : index
    %c0_82 = arith.constant 0 : index
    %c0_83 = arith.constant 0 : index
    %85 = vector.load %arg17[%c2_81, %c0_82, %c0_83] : memref<3x80x80xf32, #tpu.memory_space<vmem>>, vector<1x80x80xf32>
    %86 = vector.shape_cast %85 : vector<1x80x80xf32> to vector<80x80xf32>
    %cst_84 = arith.constant dense<0.000000e+00> : vector<4x80xf32>
    %87 = tpu.matmul %81, %86, %cst_84 {dimension_numbers = #tpu.dot_dimension_numbers<[1], [0], [0], [1], [0, 0, 1, 1], [], []>} : vector<4x80xf32>, vector<80x80xf32>, vector<4x80xf32> -> vector<4x80xf32>
    %c2_85 = arith.constant 2 : index
    %c0_86 = arith.constant 0 : index
    %c0_87 = arith.constant 0 : index
    %88 = vector.load %arg8[%c2_85, %c0_86, %c0_87] : memref<3x4x4xf32, #tpu.memory_space<vmem>>, vector<1x4x4xf32>
    %89 = vector.shape_cast %88 : vector<1x4x4xf32> to vector<4x4xf32>
    %cst_88 = arith.constant dense<0.000000e+00> : vector<4x80xf32>
    %90 = tpu.matmul %89, %87, %cst_88 {dimension_numbers = #tpu.dot_dimension_numbers<[1], [0], [0], [1], [0, 0, 1, 1], [], []>} : vector<4x4xf32>, vector<4x80xf32>, vector<4x80xf32> -> vector<4x80xf32>
    %c2_89 = arith.constant 2 : index
    %c0_90 = arith.constant 0 : index
    %c0_91 = arith.constant 0 : index
    %91 = vector.load %arg9[%c2_89, %c0_90, %c0_91] : memref<3x4x4xf32, #tpu.memory_space<vmem>>, vector<1x4x4xf32>
    %92 = vector.shape_cast %91 : vector<1x4x4xf32> to vector<4x4xf32>
    %cst_92 = arith.constant dense<0.000000e+00> : vector<4x80xf32>
    %93 = tpu.matmul %92, %84, %cst_92 {dimension_numbers = #tpu.dot_dimension_numbers<[1], [0], [0], [1], [0, 0, 1, 1], [], []>} : vector<4x4xf32>, vector<4x80xf32>, vector<4x80xf32> -> vector<4x80xf32>
    %94 = arith.addf %90, %93 : vector<4x80xf32>
    %c2_93 = arith.constant 2 : index
    %c0_94 = arith.constant 0 : index
    %c0_95 = arith.constant 0 : index
    %95 = vector.load %arg10[%c2_93, %c0_94, %c0_95] : memref<3x4x4xf32, #tpu.memory_space<vmem>>, vector<1x4x4xf32>
    %96 = vector.shape_cast %95 : vector<1x4x4xf32> to vector<4x4xf32>
    %cst_96 = arith.constant dense<0.000000e+00> : vector<4x80xf32>
    %97 = tpu.matmul %96, %81, %cst_96 {dimension_numbers = #tpu.dot_dimension_numbers<[1], [0], [0], [1], [0, 0, 1, 1], [], []>} : vector<4x4xf32>, vector<4x80xf32>, vector<4x80xf32> -> vector<4x80xf32>
    %98 = arith.addf %94, %97 : vector<4x80xf32>
    %c2_97 = arith.constant 2 : index
    %c0_98 = arith.constant 0 : index
    %c0_99 = arith.constant 0 : index
    %99 = vector.load %arg11[%c2_97, %c0_98, %c0_99] : memref<3x4x1xf32, #tpu.memory_space<vmem>>, vector<1x4x1xf32>
    %100 = vector.shape_cast %99 : vector<1x4x1xf32> to vector<4x1xf32>
    %101 = vector.broadcast %100 : vector<4x1xf32> to vector<4x80xf32>
    %102 = arith.addf %98, %101 : vector<4x80xf32>
    %cst_100 = arith.constant 0.000000e+00 : f32
    %103 = vector.broadcast %cst_100 : f32 to vector<4x80xf32>
    %104 = arith.maximumf %102, %103 : vector<4x80xf32>
    %c2_101 = arith.constant 2 : index
    %c0_102 = arith.constant 0 : index
    %c0_103 = arith.constant 0 : index
    %105 = vector.load %arg12[%c2_101, %c0_102, %c0_103] : memref<3x4x4xf32, #tpu.memory_space<vmem>>, vector<1x4x4xf32>
    %106 = vector.shape_cast %105 : vector<1x4x4xf32> to vector<4x4xf32>
    %cst_104 = arith.constant dense<0.000000e+00> : vector<4x80xf32>
    %107 = tpu.matmul %106, %104, %cst_104 {dimension_numbers = #tpu.dot_dimension_numbers<[1], [0], [0], [1], [0, 0, 1, 1], [], []>} : vector<4x4xf32>, vector<4x80xf32>, vector<4x80xf32> -> vector<4x80xf32>
    %108 = arith.addf %81, %107 : vector<4x80xf32>
    %c2_105 = arith.constant 2 : index
    %c0_106 = arith.constant 0 : index
    %c0_107 = arith.constant 0 : index
    %109 = vector.load %arg13[%c2_105, %c0_106, %c0_107] : memref<3x4x1xf32, #tpu.memory_space<vmem>>, vector<1x4x1xf32>
    %110 = vector.shape_cast %109 : vector<1x4x1xf32> to vector<4x1xf32>
    %111 = vector.broadcast %110 : vector<4x1xf32> to vector<4x80xf32>
    %112 = arith.addf %108, %111 : vector<4x80xf32>
    %c0_108 = arith.constant 0 : index
    %c0_109 = arith.constant 0 : index
    %113 = vector.load %arg14[%c0_108, %c0_109] : memref<4x4xf32, #tpu.memory_space<vmem>>, vector<4x4xf32>
    %cst_110 = arith.constant dense<0.000000e+00> : vector<4x80xf32>
    %114 = tpu.matmul %113, %112, %cst_110 {dimension_numbers = #tpu.dot_dimension_numbers<[1], [0], [0], [1], [0, 0, 1, 1], [], []>} : vector<4x4xf32>, vector<4x80xf32>, vector<4x80xf32> -> vector<4x80xf32>
    %c0_111 = arith.constant 0 : index
    %c0_112 = arith.constant 0 : index
    %115 = vector.load %arg15[%c0_111, %c0_112] : memref<4x1xf32, #tpu.memory_space<vmem>>, vector<4x1xf32>
    %116 = vector.broadcast %115 : vector<4x1xf32> to vector<4x80xf32>
    %117 = arith.addf %114, %116 : vector<4x80xf32>
    %c0_113 = arith.constant 0 : index
    %c0_114 = arith.constant 0 : index
    %118 = vector.load %arg18[%c0_113, %c0_114] : memref<80x16xf32, #tpu.memory_space<vmem>>, vector<80x16xf32>
    %cst_115 = arith.constant dense<0.000000e+00> : vector<4x16xf32>
    %119 = tpu.matmul %117, %118, %cst_115 {dimension_numbers = #tpu.dot_dimension_numbers<[1], [0], [0], [1], [0, 0, 1, 1], [], []>} : vector<4x80xf32>, vector<80x16xf32>, vector<4x16xf32> -> vector<4x16xf32>
    %c0_116 = arith.constant 0 : index
    %c0_117 = arith.constant 0 : index
    %c0_118 = arith.constant 0 : index
    %120 = vector.load %arg1[%c0_116, %c0_117, %c0_118] : memref<4x4x16xf32, #tpu.memory_space<vmem>>, vector<4x4x16xf32>
    %cst_119 = arith.constant 0.99999988 : f32
    %121 = vector.broadcast %cst_119 : f32 to vector<4x4x16xf32>
    %122 = arith.minimumf %120, %121 : vector<4x4x16xf32>
    %cst_120 = arith.constant 9.99999993E-9 : f32
    %123 = vector.broadcast %cst_120 : f32 to vector<4x4x16xf32>
    %124 = arith.addf %122, %123 : vector<4x4x16xf32>
    %125 = math.log %124 : vector<4x4x16xf32>
    %cst_121 = arith.constant 0.000000e+00 : f32
    %126 = vector.broadcast %cst_121 : f32 to vector<4x4x16xf32>
    %127 = arith.subf %126, %125 : vector<4x4x16xf32>
    %cst_122 = arith.constant 9.99999993E-9 : f32
    %128 = vector.broadcast %cst_122 : f32 to vector<4x4x16xf32>
    %129 = arith.addf %127, %128 : vector<4x4x16xf32>
    %130 = math.log %129 : vector<4x4x16xf32>
    %cst_123 = arith.constant 0.000000e+00 : f32
    %131 = vector.broadcast %cst_123 : f32 to vector<4x4x16xf32>
    %132 = arith.subf %131, %130 : vector<4x4x16xf32>
    %133 = vector.shape_cast %119 : vector<4x16xf32> to vector<1x4x16xf32>
    %134 = vector.broadcast %133 : vector<1x4x16xf32> to vector<4x4x16xf32>
    %135 = arith.addf %134, %132 : vector<4x4x16xf32>
    %cst_124 = arith.constant dense<0xFF800000> : vector<4x16xf32>
    %136 = vector.multi_reduction <maximumf>, %135, %cst_124 [1] : vector<4x4x16xf32> to vector<4x16xf32>
    %137 = vector.shape_cast %136 : vector<4x16xf32> to vector<4x1x16xf32>
    %138 = vector.broadcast %137 : vector<4x1x16xf32> to vector<4x4x16xf32>
    %139 = arith.subf %135, %138 : vector<4x4x16xf32>
    %140 = math.exp %139 : vector<4x4x16xf32>
    %cst_125 = arith.constant dense<0.000000e+00> : vector<4x16xf32>
    %141 = vector.multi_reduction <add>, %140, %cst_125 [1] : vector<4x4x16xf32> to vector<4x16xf32>
    %142 = vector.shape_cast %141 : vector<4x16xf32> to vector<4x1x16xf32>
    %143 = math.log %142 : vector<4x1x16xf32>
    %144 = arith.addf %137, %143 : vector<4x1x16xf32>
    %145 = vector.broadcast %144 : vector<4x1x16xf32> to vector<4x4x16xf32>
    %146 = arith.subf %135, %145 : vector<4x4x16xf32>
    %cst_126 = arith.constant dense<0xFF800000> : vector<4x16xf32>
    %147 = vector.multi_reduction <maximumf>, %146, %cst_126 [0] : vector<4x4x16xf32> to vector<4x16xf32>
    %148 = vector.shape_cast %147 : vector<4x16xf32> to vector<1x4x16xf32>
    %149 = vector.broadcast %148 : vector<1x4x16xf32> to vector<4x4x16xf32>
    %150 = arith.subf %146, %149 : vector<4x4x16xf32>
    %151 = math.exp %150 : vector<4x4x16xf32>
    %cst_127 = arith.constant dense<0.000000e+00> : vector<4x16xf32>
    %152 = vector.multi_reduction <add>, %151, %cst_127 [0] : vector<4x4x16xf32> to vector<4x16xf32>
    %153 = vector.shape_cast %152 : vector<4x16xf32> to vector<1x4x16xf32>
    %154 = math.log %153 : vector<1x4x16xf32>
    %155 = arith.addf %148, %154 : vector<1x4x16xf32>
    %156 = vector.broadcast %155 : vector<1x4x16xf32> to vector<4x4x16xf32>
    %157 = arith.subf %146, %156 : vector<4x4x16xf32>
    %cst_128 = arith.constant dense<0xFF800000> : vector<4x16xf32>
    %158 = vector.multi_reduction <maximumf>, %157, %cst_128 [1] : vector<4x4x16xf32> to vector<4x16xf32>
    %159 = vector.shape_cast %158 : vector<4x16xf32> to vector<4x1x16xf32>
    %160 = vector.broadcast %159 : vector<4x1x16xf32> to vector<4x4x16xf32>
    %161 = arith.subf %157, %160 : vector<4x4x16xf32>
    %162 = math.exp %161 : vector<4x4x16xf32>
    %cst_129 = arith.constant dense<0.000000e+00> : vector<4x16xf32>
    %163 = vector.multi_reduction <add>, %162, %cst_129 [1] : vector<4x4x16xf32> to vector<4x16xf32>
    %164 = vector.shape_cast %163 : vector<4x16xf32> to vector<4x1x16xf32>
    %165 = math.log %164 : vector<4x1x16xf32>
    %166 = arith.addf %159, %165 : vector<4x1x16xf32>
    %167 = vector.broadcast %166 : vector<4x1x16xf32> to vector<4x4x16xf32>
    %168 = arith.subf %157, %167 : vector<4x4x16xf32>
    %cst_130 = arith.constant dense<0xFF800000> : vector<4x16xf32>
    %169 = vector.multi_reduction <maximumf>, %168, %cst_130 [0] : vector<4x4x16xf32> to vector<4x16xf32>
    %170 = vector.shape_cast %169 : vector<4x16xf32> to vector<1x4x16xf32>
    %171 = vector.broadcast %170 : vector<1x4x16xf32> to vector<4x4x16xf32>
    %172 = arith.subf %168, %171 : vector<4x4x16xf32>
    %173 = math.exp %172 : vector<4x4x16xf32>
    %cst_131 = arith.constant dense<0.000000e+00> : vector<4x16xf32>
    %174 = vector.multi_reduction <add>, %173, %cst_131 [0] : vector<4x4x16xf32> to vector<4x16xf32>
    %175 = vector.shape_cast %174 : vector<4x16xf32> to vector<1x4x16xf32>
    %176 = math.log %175 : vector<1x4x16xf32>
    %177 = arith.addf %170, %176 : vector<1x4x16xf32>
    %178 = vector.broadcast %177 : vector<1x4x16xf32> to vector<4x4x16xf32>
    %179 = arith.subf %168, %178 : vector<4x4x16xf32>
    %cst_132 = arith.constant dense<0xFF800000> : vector<4x16xf32>
    %180 = vector.multi_reduction <maximumf>, %179, %cst_132 [1] : vector<4x4x16xf32> to vector<4x16xf32>
    %181 = vector.shape_cast %180 : vector<4x16xf32> to vector<4x1x16xf32>
    %182 = vector.broadcast %181 : vector<4x1x16xf32> to vector<4x4x16xf32>
    %183 = arith.subf %179, %182 : vector<4x4x16xf32>
    %184 = math.exp %183 : vector<4x4x16xf32>
    %cst_133 = arith.constant dense<0.000000e+00> : vector<4x16xf32>
    %185 = vector.multi_reduction <add>, %184, %cst_133 [1] : vector<4x4x16xf32> to vector<4x16xf32>
    %186 = vector.shape_cast %185 : vector<4x16xf32> to vector<4x1x16xf32>
    %187 = math.log %186 : vector<4x1x16xf32>
    %188 = arith.addf %181, %187 : vector<4x1x16xf32>
    %189 = vector.broadcast %188 : vector<4x1x16xf32> to vector<4x4x16xf32>
    %190 = arith.subf %179, %189 : vector<4x4x16xf32>
    %cst_134 = arith.constant dense<0xFF800000> : vector<4x16xf32>
    %191 = vector.multi_reduction <maximumf>, %190, %cst_134 [0] : vector<4x4x16xf32> to vector<4x16xf32>
    %192 = vector.shape_cast %191 : vector<4x16xf32> to vector<1x4x16xf32>
    %193 = vector.broadcast %192 : vector<1x4x16xf32> to vector<4x4x16xf32>
    %194 = arith.subf %190, %193 : vector<4x4x16xf32>
    %195 = math.exp %194 : vector<4x4x16xf32>
    %cst_135 = arith.constant dense<0.000000e+00> : vector<4x16xf32>
    %196 = vector.multi_reduction <add>, %195, %cst_135 [0] : vector<4x4x16xf32> to vector<4x16xf32>
    %197 = vector.shape_cast %196 : vector<4x16xf32> to vector<1x4x16xf32>
    %198 = math.log %197 : vector<1x4x16xf32>
    %199 = arith.addf %192, %198 : vector<1x4x16xf32>
    %200 = vector.broadcast %199 : vector<1x4x16xf32> to vector<4x4x16xf32>
    %201 = arith.subf %190, %200 : vector<4x4x16xf32>
    %cst_136 = arith.constant dense<0xFF800000> : vector<4x16xf32>
    %202 = vector.multi_reduction <maximumf>, %201, %cst_136 [1] : vector<4x4x16xf32> to vector<4x16xf32>
    %203 = vector.shape_cast %202 : vector<4x16xf32> to vector<4x1x16xf32>
    %204 = vector.broadcast %203 : vector<4x1x16xf32> to vector<4x4x16xf32>
    %205 = arith.subf %201, %204 : vector<4x4x16xf32>
    %206 = math.exp %205 : vector<4x4x16xf32>
    %cst_137 = arith.constant dense<0.000000e+00> : vector<4x16xf32>
    %207 = vector.multi_reduction <add>, %206, %cst_137 [1] : vector<4x4x16xf32> to vector<4x16xf32>
    %208 = vector.shape_cast %207 : vector<4x16xf32> to vector<4x1x16xf32>
    %209 = math.log %208 : vector<4x1x16xf32>
    %210 = arith.addf %203, %209 : vector<4x1x16xf32>
    %211 = vector.broadcast %210 : vector<4x1x16xf32> to vector<4x4x16xf32>
    %212 = arith.subf %201, %211 : vector<4x4x16xf32>
    %cst_138 = arith.constant dense<0xFF800000> : vector<4x16xf32>
    %213 = vector.multi_reduction <maximumf>, %212, %cst_138 [0] : vector<4x4x16xf32> to vector<4x16xf32>
    %214 = vector.shape_cast %213 : vector<4x16xf32> to vector<1x4x16xf32>
    %215 = vector.broadcast %214 : vector<1x4x16xf32> to vector<4x4x16xf32>
    %216 = arith.subf %212, %215 : vector<4x4x16xf32>
    %217 = math.exp %216 : vector<4x4x16xf32>
    %cst_139 = arith.constant dense<0.000000e+00> : vector<4x16xf32>
    %218 = vector.multi_reduction <add>, %217, %cst_139 [0] : vector<4x4x16xf32> to vector<4x16xf32>
    %219 = vector.shape_cast %218 : vector<4x16xf32> to vector<1x4x16xf32>
    %220 = math.log %219 : vector<1x4x16xf32>
    %221 = arith.addf %214, %220 : vector<1x4x16xf32>
    %222 = vector.broadcast %221 : vector<1x4x16xf32> to vector<4x4x16xf32>
    %223 = arith.subf %212, %222 : vector<4x4x16xf32>
    %cst_140 = arith.constant dense<0xFF800000> : vector<4x16xf32>
    %224 = vector.multi_reduction <maximumf>, %223, %cst_140 [1] : vector<4x4x16xf32> to vector<4x16xf32>
    %225 = vector.shape_cast %224 : vector<4x16xf32> to vector<4x1x16xf32>
    %226 = vector.broadcast %225 : vector<4x1x16xf32> to vector<4x4x16xf32>
    %227 = arith.subf %223, %226 : vector<4x4x16xf32>
    %228 = math.exp %227 : vector<4x4x16xf32>
    %cst_141 = arith.constant dense<0.000000e+00> : vector<4x16xf32>
    %229 = vector.multi_reduction <add>, %228, %cst_141 [1] : vector<4x4x16xf32> to vector<4x16xf32>
    %230 = vector.shape_cast %229 : vector<4x16xf32> to vector<4x1x16xf32>
    %231 = math.log %230 : vector<4x1x16xf32>
    %232 = arith.addf %225, %231 : vector<4x1x16xf32>
    %233 = vector.broadcast %232 : vector<4x1x16xf32> to vector<4x4x16xf32>
    %234 = arith.subf %223, %233 : vector<4x4x16xf32>
    %cst_142 = arith.constant dense<0xFF800000> : vector<4x16xf32>
    %235 = vector.multi_reduction <maximumf>, %234, %cst_142 [0] : vector<4x4x16xf32> to vector<4x16xf32>
    %236 = vector.shape_cast %235 : vector<4x16xf32> to vector<1x4x16xf32>
    %237 = vector.broadcast %236 : vector<1x4x16xf32> to vector<4x4x16xf32>
    %238 = arith.subf %234, %237 : vector<4x4x16xf32>
    %239 = math.exp %238 : vector<4x4x16xf32>
    %cst_143 = arith.constant dense<0.000000e+00> : vector<4x16xf32>
    %240 = vector.multi_reduction <add>, %239, %cst_143 [0] : vector<4x4x16xf32> to vector<4x16xf32>
    %241 = vector.shape_cast %240 : vector<4x16xf32> to vector<1x4x16xf32>
    %242 = math.log %241 : vector<1x4x16xf32>
    %243 = arith.addf %236, %242 : vector<1x4x16xf32>
    %244 = vector.broadcast %243 : vector<1x4x16xf32> to vector<4x4x16xf32>
    %245 = arith.subf %234, %244 : vector<4x4x16xf32>
    %cst_144 = arith.constant dense<0xFF800000> : vector<4x16xf32>
    %246 = vector.multi_reduction <maximumf>, %245, %cst_144 [1] : vector<4x4x16xf32> to vector<4x16xf32>
    %247 = vector.shape_cast %246 : vector<4x16xf32> to vector<4x1x16xf32>
    %248 = vector.broadcast %247 : vector<4x1x16xf32> to vector<4x4x16xf32>
    %249 = arith.subf %245, %248 : vector<4x4x16xf32>
    %250 = math.exp %249 : vector<4x4x16xf32>
    %cst_145 = arith.constant dense<0.000000e+00> : vector<4x16xf32>
    %251 = vector.multi_reduction <add>, %250, %cst_145 [1] : vector<4x4x16xf32> to vector<4x16xf32>
    %252 = vector.shape_cast %251 : vector<4x16xf32> to vector<4x1x16xf32>
    %253 = math.log %252 : vector<4x1x16xf32>
    %254 = arith.addf %247, %253 : vector<4x1x16xf32>
    %255 = vector.broadcast %254 : vector<4x1x16xf32> to vector<4x4x16xf32>
    %256 = arith.subf %245, %255 : vector<4x4x16xf32>
    %cst_146 = arith.constant dense<0xFF800000> : vector<4x16xf32>
    %257 = vector.multi_reduction <maximumf>, %256, %cst_146 [0] : vector<4x4x16xf32> to vector<4x16xf32>
    %258 = vector.shape_cast %257 : vector<4x16xf32> to vector<1x4x16xf32>
    %259 = vector.broadcast %258 : vector<1x4x16xf32> to vector<4x4x16xf32>
    %260 = arith.subf %256, %259 : vector<4x4x16xf32>
    %261 = math.exp %260 : vector<4x4x16xf32>
    %cst_147 = arith.constant dense<0.000000e+00> : vector<4x16xf32>
    %262 = vector.multi_reduction <add>, %261, %cst_147 [0] : vector<4x4x16xf32> to vector<4x16xf32>
    %263 = vector.shape_cast %262 : vector<4x16xf32> to vector<1x4x16xf32>
    %264 = math.log %263 : vector<1x4x16xf32>
    %265 = arith.addf %258, %264 : vector<1x4x16xf32>
    %266 = vector.broadcast %265 : vector<1x4x16xf32> to vector<4x4x16xf32>
    %267 = arith.subf %256, %266 : vector<4x4x16xf32>
    %cst_148 = arith.constant dense<0xFF800000> : vector<4x16xf32>
    %268 = vector.multi_reduction <maximumf>, %267, %cst_148 [1] : vector<4x4x16xf32> to vector<4x16xf32>
    %269 = vector.shape_cast %268 : vector<4x16xf32> to vector<4x1x16xf32>
    %270 = vector.broadcast %269 : vector<4x1x16xf32> to vector<4x4x16xf32>
    %271 = arith.subf %267, %270 : vector<4x4x16xf32>
    %272 = math.exp %271 : vector<4x4x16xf32>
    %cst_149 = arith.constant dense<0.000000e+00> : vector<4x16xf32>
    %273 = vector.multi_reduction <add>, %272, %cst_149 [1] : vector<4x4x16xf32> to vector<4x16xf32>
    %274 = vector.shape_cast %273 : vector<4x16xf32> to vector<4x1x16xf32>
    %275 = math.log %274 : vector<4x1x16xf32>
    %276 = arith.addf %269, %275 : vector<4x1x16xf32>
    %277 = vector.broadcast %276 : vector<4x1x16xf32> to vector<4x4x16xf32>
    %278 = arith.subf %267, %277 : vector<4x4x16xf32>
    %cst_150 = arith.constant dense<0xFF800000> : vector<4x16xf32>
    %279 = vector.multi_reduction <maximumf>, %278, %cst_150 [0] : vector<4x4x16xf32> to vector<4x16xf32>
    %280 = vector.shape_cast %279 : vector<4x16xf32> to vector<1x4x16xf32>
    %281 = vector.broadcast %280 : vector<1x4x16xf32> to vector<4x4x16xf32>
    %282 = arith.subf %278, %281 : vector<4x4x16xf32>
    %283 = math.exp %282 : vector<4x4x16xf32>
    %cst_151 = arith.constant dense<0.000000e+00> : vector<4x16xf32>
    %284 = vector.multi_reduction <add>, %283, %cst_151 [0] : vector<4x4x16xf32> to vector<4x16xf32>
    %285 = vector.shape_cast %284 : vector<4x16xf32> to vector<1x4x16xf32>
    %286 = math.log %285 : vector<1x4x16xf32>
    %287 = arith.addf %280, %286 : vector<1x4x16xf32>
    %288 = vector.broadcast %287 : vector<1x4x16xf32> to vector<4x4x16xf32>
    %289 = arith.subf %278, %288 : vector<4x4x16xf32>
    %cst_152 = arith.constant dense<0xFF800000> : vector<4x16xf32>
    %290 = vector.multi_reduction <maximumf>, %289, %cst_152 [1] : vector<4x4x16xf32> to vector<4x16xf32>
    %291 = vector.shape_cast %290 : vector<4x16xf32> to vector<4x1x16xf32>
    %292 = vector.broadcast %291 : vector<4x1x16xf32> to vector<4x4x16xf32>
    %293 = arith.subf %289, %292 : vector<4x4x16xf32>
    %294 = math.exp %293 : vector<4x4x16xf32>
    %cst_153 = arith.constant dense<0.000000e+00> : vector<4x16xf32>
    %295 = vector.multi_reduction <add>, %294, %cst_153 [1] : vector<4x4x16xf32> to vector<4x16xf32>
    %296 = vector.shape_cast %295 : vector<4x16xf32> to vector<4x1x16xf32>
    %297 = math.log %296 : vector<4x1x16xf32>
    %298 = arith.addf %291, %297 : vector<4x1x16xf32>
    %299 = vector.broadcast %298 : vector<4x1x16xf32> to vector<4x4x16xf32>
    %300 = arith.subf %289, %299 : vector<4x4x16xf32>
    %cst_154 = arith.constant dense<0xFF800000> : vector<4x16xf32>
    %301 = vector.multi_reduction <maximumf>, %300, %cst_154 [0] : vector<4x4x16xf32> to vector<4x16xf32>
    %302 = vector.shape_cast %301 : vector<4x16xf32> to vector<1x4x16xf32>
    %303 = vector.broadcast %302 : vector<1x4x16xf32> to vector<4x4x16xf32>
    %304 = arith.subf %300, %303 : vector<4x4x16xf32>
    %305 = math.exp %304 : vector<4x4x16xf32>
    %cst_155 = arith.constant dense<0.000000e+00> : vector<4x16xf32>
    %306 = vector.multi_reduction <add>, %305, %cst_155 [0] : vector<4x4x16xf32> to vector<4x16xf32>
    %307 = vector.shape_cast %306 : vector<4x16xf32> to vector<1x4x16xf32>
    %308 = math.log %307 : vector<1x4x16xf32>
    %309 = arith.addf %302, %308 : vector<1x4x16xf32>
    %310 = vector.broadcast %309 : vector<1x4x16xf32> to vector<4x4x16xf32>
    %311 = arith.subf %300, %310 : vector<4x4x16xf32>
    %cst_156 = arith.constant dense<0xFF800000> : vector<4x16xf32>
    %312 = vector.multi_reduction <maximumf>, %311, %cst_156 [1] : vector<4x4x16xf32> to vector<4x16xf32>
    %313 = vector.shape_cast %312 : vector<4x16xf32> to vector<4x1x16xf32>
    %314 = vector.broadcast %313 : vector<4x1x16xf32> to vector<4x4x16xf32>
    %315 = arith.subf %311, %314 : vector<4x4x16xf32>
    %316 = math.exp %315 : vector<4x4x16xf32>
    %cst_157 = arith.constant dense<0.000000e+00> : vector<4x16xf32>
    %317 = vector.multi_reduction <add>, %316, %cst_157 [1] : vector<4x4x16xf32> to vector<4x16xf32>
    %318 = vector.shape_cast %317 : vector<4x16xf32> to vector<4x1x16xf32>
    %319 = math.log %318 : vector<4x1x16xf32>
    %320 = arith.addf %313, %319 : vector<4x1x16xf32>
    %321 = vector.broadcast %320 : vector<4x1x16xf32> to vector<4x4x16xf32>
    %322 = arith.subf %311, %321 : vector<4x4x16xf32>
    %cst_158 = arith.constant dense<0xFF800000> : vector<4x16xf32>
    %323 = vector.multi_reduction <maximumf>, %322, %cst_158 [0] : vector<4x4x16xf32> to vector<4x16xf32>
    %324 = vector.shape_cast %323 : vector<4x16xf32> to vector<1x4x16xf32>
    %325 = vector.broadcast %324 : vector<1x4x16xf32> to vector<4x4x16xf32>
    %326 = arith.subf %322, %325 : vector<4x4x16xf32>
    %327 = math.exp %326 : vector<4x4x16xf32>
    %cst_159 = arith.constant dense<0.000000e+00> : vector<4x16xf32>
    %328 = vector.multi_reduction <add>, %327, %cst_159 [0] : vector<4x4x16xf32> to vector<4x16xf32>
    %329 = vector.shape_cast %328 : vector<4x16xf32> to vector<1x4x16xf32>
    %330 = math.log %329 : vector<1x4x16xf32>
    %331 = arith.addf %324, %330 : vector<1x4x16xf32>
    %332 = vector.broadcast %331 : vector<1x4x16xf32> to vector<4x4x16xf32>
    %333 = arith.subf %322, %332 : vector<4x4x16xf32>
    %cst_160 = arith.constant dense<0xFF800000> : vector<4x16xf32>
    %334 = vector.multi_reduction <maximumf>, %333, %cst_160 [1] : vector<4x4x16xf32> to vector<4x16xf32>
    %335 = vector.shape_cast %334 : vector<4x16xf32> to vector<4x1x16xf32>
    %336 = vector.broadcast %335 : vector<4x1x16xf32> to vector<4x4x16xf32>
    %337 = arith.subf %333, %336 : vector<4x4x16xf32>
    %338 = math.exp %337 : vector<4x4x16xf32>
    %cst_161 = arith.constant dense<0.000000e+00> : vector<4x16xf32>
    %339 = vector.multi_reduction <add>, %338, %cst_161 [1] : vector<4x4x16xf32> to vector<4x16xf32>
    %340 = vector.shape_cast %339 : vector<4x16xf32> to vector<4x1x16xf32>
    %341 = math.log %340 : vector<4x1x16xf32>
    %342 = arith.addf %335, %341 : vector<4x1x16xf32>
    %343 = vector.broadcast %342 : vector<4x1x16xf32> to vector<4x4x16xf32>
    %344 = arith.subf %333, %343 : vector<4x4x16xf32>
    %cst_162 = arith.constant dense<0xFF800000> : vector<4x16xf32>
    %345 = vector.multi_reduction <maximumf>, %344, %cst_162 [0] : vector<4x4x16xf32> to vector<4x16xf32>
    %346 = vector.shape_cast %345 : vector<4x16xf32> to vector<1x4x16xf32>
    %347 = vector.broadcast %346 : vector<1x4x16xf32> to vector<4x4x16xf32>
    %348 = arith.subf %344, %347 : vector<4x4x16xf32>
    %349 = math.exp %348 : vector<4x4x16xf32>
    %cst_163 = arith.constant dense<0.000000e+00> : vector<4x16xf32>
    %350 = vector.multi_reduction <add>, %349, %cst_163 [0] : vector<4x4x16xf32> to vector<4x16xf32>
    %351 = vector.shape_cast %350 : vector<4x16xf32> to vector<1x4x16xf32>
    %352 = math.log %351 : vector<1x4x16xf32>
    %353 = arith.addf %346, %352 : vector<1x4x16xf32>
    %354 = vector.broadcast %353 : vector<1x4x16xf32> to vector<4x4x16xf32>
    %355 = arith.subf %344, %354 : vector<4x4x16xf32>
    %cst_164 = arith.constant 9.99999997E-7 : f32
    %356 = vector.broadcast %cst_164 : f32 to vector<4x4x16xf32>
    %357 = arith.divf %355, %356 : vector<4x4x16xf32>
    %cst_165 = arith.constant dense<0xFF800000> : vector<4x16xf32>
    %358 = vector.multi_reduction <maximumf>, %357, %cst_165 [1] : vector<4x4x16xf32> to vector<4x16xf32>
    %359 = vector.shape_cast %358 : vector<4x16xf32> to vector<4x1x16xf32>
    %360 = vector.broadcast %359 : vector<4x1x16xf32> to vector<4x4x16xf32>
    %361 = arith.subf %357, %360 : vector<4x4x16xf32>
    %362 = math.exp %361 : vector<4x4x16xf32>
    %cst_166 = arith.constant dense<0.000000e+00> : vector<4x16xf32>
    %363 = vector.multi_reduction <add>, %362, %cst_166 [1] : vector<4x4x16xf32> to vector<4x16xf32>
    %364 = vector.shape_cast %363 : vector<4x16xf32> to vector<4x1x16xf32>
    %365 = vector.broadcast %364 : vector<4x1x16xf32> to vector<4x4x16xf32>
    %366 = arith.divf %362, %365 : vector<4x4x16xf32>
    %367 = vector.extract_strided_slice %366 {offsets = [0, 0, 0], sizes = [4, 3, 16], strides = [1, 1, 1]} : vector<4x4x16xf32> to vector<4x3x16xf32>
    %c0_167 = arith.constant 0 : index
    %c0_168 = arith.constant 0 : index
    %c0_169 = arith.constant 0 : index
    %368 = vector.load %arg30[%c0_167, %c0_168, %c0_169] : memref<4x3x16xf32, #tpu.memory_space<vmem>>, vector<4x3x16xf32>
    tpu.vector_store %arg30[%c0_167, %c0_168, %c0_169], %367 {strides = array<i32>} : memref<4x3x16xf32, #tpu.memory_space<vmem>>, vector<4x3x16xf32>,
    %c0_170 = arith.constant 0 : index
    %c0_171 = arith.constant 0 : index
    %c0_172 = arith.constant 0 : index
    %369 = vector.load %arg21[%c0_170, %c0_171, %c0_172] : memref<4x8x4xf32, #tpu.memory_space<vmem>>, vector<1x8x4xf32>
    %370 = vector.shape_cast %369 : vector<1x8x4xf32> to vector<8x4xf32>
    %cst_173 = arith.constant dense<0.000000e+00> : vector<8x80xf32>
    %371 = tpu.matmul %370, %0, %cst_173 {dimension_numbers = #tpu.dot_dimension_numbers<[1], [0], [0], [1], [0, 0, 1, 1], [], []>} : vector<8x4xf32>, vector<4x80xf32>, vector<8x80xf32> -> vector<8x80xf32>
    %c0_174 = arith.constant 0 : index
    %c0_175 = arith.constant 0 : index
    %c0_176 = arith.constant 0 : index
    %372 = vector.load %arg20[%c0_174, %c0_175, %c0_176] : memref<4x80x80xf32, #tpu.memory_space<vmem>>, vector<1x80x80xf32>
    %373 = vector.shape_cast %372 : vector<1x80x80xf32> to vector<80x80xf32>
    %cst_177 = arith.constant dense<0.000000e+00> : vector<8x80xf32>
    %374 = tpu.matmul %371, %373, %cst_177 {dimension_numbers = #tpu.dot_dimension_numbers<[1], [0], [0], [1], [0, 0, 1, 1], [], []>} : vector<8x80xf32>, vector<80x80xf32>, vector<8x80xf32> -> vector<8x80xf32>
    %c0_178 = arith.constant 0 : index
    %c0_179 = arith.constant 0 : index
    %c0_180 = arith.constant 0 : index
    %375 = vector.load %arg23[%c0_178, %c0_179, %c0_180] : memref<4x8x1xf32, #tpu.memory_space<vmem>>, vector<1x8x1xf32>
    %376 = vector.shape_cast %375 : vector<1x8x1xf32> to vector<8x1xf32>
    %377 = vector.broadcast %376 : vector<8x1xf32> to vector<8x80xf32>
    %378 = arith.addf %374, %377 : vector<8x80xf32>
    %cst_181 = arith.constant 0.000000e+00 : f32
    %379 = vector.broadcast %cst_181 : f32 to vector<8x80xf32>
    %380 = arith.maximumf %378, %379 : vector<8x80xf32>
    %c0_182 = arith.constant 0 : index
    %c0_183 = arith.constant 0 : index
    %c0_184 = arith.constant 0 : index
    %381 = vector.load %arg22[%c0_182, %c0_183, %c0_184] : memref<4x8x8xf32, #tpu.memory_space<vmem>>, vector<1x8x8xf32>
    %382 = vector.shape_cast %381 : vector<1x8x8xf32> to vector<8x8xf32>
    %cst_185 = arith.constant dense<0.000000e+00> : vector<8x80xf32>
    %383 = tpu.matmul %382, %380, %cst_185 {dimension_numbers = #tpu.dot_dimension_numbers<[1], [0], [0], [1], [0, 0, 1, 1], [], []>} : vector<8x8xf32>, vector<8x80xf32>, vector<8x80xf32> -> vector<8x80xf32>
    %c0_186 = arith.constant 0 : index
    %c0_187 = arith.constant 0 : index
    %c0_188 = arith.constant 0 : index
    %384 = vector.load %arg20[%c0_186, %c0_187, %c0_188] : memref<4x80x80xf32, #tpu.memory_space<vmem>>, vector<1x80x80xf32>
    %385 = vector.shape_cast %384 : vector<1x80x80xf32> to vector<80x80xf32>
    %cst_189 = arith.constant dense<0.000000e+00> : vector<8x80xf32>
    %386 = tpu.matmul %383, %385, %cst_189 {dimension_numbers = #tpu.dot_dimension_numbers<[1], [0], [0], [1], [0, 0, 1, 1], [], []>} : vector<8x80xf32>, vector<80x80xf32>, vector<8x80xf32> -> vector<8x80xf32>
    %c0_190 = arith.constant 0 : index
    %c0_191 = arith.constant 0 : index
    %c0_192 = arith.constant 0 : index
    %387 = vector.load %arg24[%c0_190, %c0_191, %c0_192] : memref<4x8x1xf32, #tpu.memory_space<vmem>>, vector<1x8x1xf32>
    %388 = vector.shape_cast %387 : vector<1x8x1xf32> to vector<8x1xf32>
    %389 = vector.broadcast %388 : vector<8x1xf32> to vector<8x80xf32>
    %390 = arith.addf %386, %389 : vector<8x80xf32>
    %cst_193 = arith.constant 0.000000e+00 : f32
    %391 = vector.broadcast %cst_193 : f32 to vector<8x80xf32>
    %392 = arith.maximumf %390, %391 : vector<8x80xf32>
    %c1_194 = arith.constant 1 : index
    %c0_195 = arith.constant 0 : index
    %c0_196 = arith.constant 0 : index
    %393 = vector.load %arg21[%c1_194, %c0_195, %c0_196] : memref<4x8x4xf32, #tpu.memory_space<vmem>>, vector<1x8x4xf32>
    %394 = vector.shape_cast %393 : vector<1x8x4xf32> to vector<8x4xf32>
    %cst_197 = arith.constant dense<0.000000e+00> : vector<8x80xf32>
    %395 = tpu.matmul %394, %0, %cst_197 {dimension_numbers = #tpu.dot_dimension_numbers<[1], [0], [0], [1], [0, 0, 1, 1], [], []>} : vector<8x4xf32>, vector<4x80xf32>, vector<8x80xf32> -> vector<8x80xf32>
    %c1_198 = arith.constant 1 : index
    %c0_199 = arith.constant 0 : index
    %c0_200 = arith.constant 0 : index
    %396 = vector.load %arg20[%c1_198, %c0_199, %c0_200] : memref<4x80x80xf32, #tpu.memory_space<vmem>>, vector<1x80x80xf32>
    %397 = vector.shape_cast %396 : vector<1x80x80xf32> to vector<80x80xf32>
    %cst_201 = arith.constant dense<0.000000e+00> : vector<8x80xf32>
    %398 = tpu.matmul %395, %397, %cst_201 {dimension_numbers = #tpu.dot_dimension_numbers<[1], [0], [0], [1], [0, 0, 1, 1], [], []>} : vector<8x80xf32>, vector<80x80xf32>, vector<8x80xf32> -> vector<8x80xf32>
    %c1_202 = arith.constant 1 : index
    %c0_203 = arith.constant 0 : index
    %c0_204 = arith.constant 0 : index
    %399 = vector.load %arg23[%c1_202, %c0_203, %c0_204] : memref<4x8x1xf32, #tpu.memory_space<vmem>>, vector<1x8x1xf32>
    %400 = vector.shape_cast %399 : vector<1x8x1xf32> to vector<8x1xf32>
    %401 = vector.broadcast %400 : vector<8x1xf32> to vector<8x80xf32>
    %402 = arith.addf %398, %401 : vector<8x80xf32>
    %cst_205 = arith.constant 0.000000e+00 : f32
    %403 = vector.broadcast %cst_205 : f32 to vector<8x80xf32>
    %404 = arith.maximumf %402, %403 : vector<8x80xf32>
    %c1_206 = arith.constant 1 : index
    %c0_207 = arith.constant 0 : index
    %c0_208 = arith.constant 0 : index
    %405 = vector.load %arg22[%c1_206, %c0_207, %c0_208] : memref<4x8x8xf32, #tpu.memory_space<vmem>>, vector<1x8x8xf32>
    %406 = vector.shape_cast %405 : vector<1x8x8xf32> to vector<8x8xf32>
    %cst_209 = arith.constant dense<0.000000e+00> : vector<8x80xf32>
    %407 = tpu.matmul %406, %404, %cst_209 {dimension_numbers = #tpu.dot_dimension_numbers<[1], [0], [0], [1], [0, 0, 1, 1], [], []>} : vector<8x8xf32>, vector<8x80xf32>, vector<8x80xf32> -> vector<8x80xf32>
    %c1_210 = arith.constant 1 : index
    %c0_211 = arith.constant 0 : index
    %c0_212 = arith.constant 0 : index
    %408 = vector.load %arg20[%c1_210, %c0_211, %c0_212] : memref<4x80x80xf32, #tpu.memory_space<vmem>>, vector<1x80x80xf32>
    %409 = vector.shape_cast %408 : vector<1x80x80xf32> to vector<80x80xf32>
    %cst_213 = arith.constant dense<0.000000e+00> : vector<8x80xf32>
    %410 = tpu.matmul %407, %409, %cst_213 {dimension_numbers = #tpu.dot_dimension_numbers<[1], [0], [0], [1], [0, 0, 1, 1], [], []>} : vector<8x80xf32>, vector<80x80xf32>, vector<8x80xf32> -> vector<8x80xf32>
    %c1_214 = arith.constant 1 : index
    %c0_215 = arith.constant 0 : index
    %c0_216 = arith.constant 0 : index
    %411 = vector.load %arg24[%c1_214, %c0_215, %c0_216] : memref<4x8x1xf32, #tpu.memory_space<vmem>>, vector<1x8x1xf32>
    %412 = vector.shape_cast %411 : vector<1x8x1xf32> to vector<8x1xf32>
    %413 = vector.broadcast %412 : vector<8x1xf32> to vector<8x80xf32>
    %414 = arith.addf %410, %413 : vector<8x80xf32>
    %cst_217 = arith.constant 0.000000e+00 : f32
    %415 = vector.broadcast %cst_217 : f32 to vector<8x80xf32>
    %416 = arith.maximumf %414, %415 : vector<8x80xf32>
    %c2_218 = arith.constant 2 : index
    %c0_219 = arith.constant 0 : index
    %c0_220 = arith.constant 0 : index
    %417 = vector.load %arg21[%c2_218, %c0_219, %c0_220] : memref<4x8x4xf32, #tpu.memory_space<vmem>>, vector<1x8x4xf32>
    %418 = vector.shape_cast %417 : vector<1x8x4xf32> to vector<8x4xf32>
    %cst_221 = arith.constant dense<0.000000e+00> : vector<8x80xf32>
    %419 = tpu.matmul %418, %0, %cst_221 {dimension_numbers = #tpu.dot_dimension_numbers<[1], [0], [0], [1], [0, 0, 1, 1], [], []>} : vector<8x4xf32>, vector<4x80xf32>, vector<8x80xf32> -> vector<8x80xf32>
    %c2_222 = arith.constant 2 : index
    %c0_223 = arith.constant 0 : index
    %c0_224 = arith.constant 0 : index
    %420 = vector.load %arg20[%c2_222, %c0_223, %c0_224] : memref<4x80x80xf32, #tpu.memory_space<vmem>>, vector<1x80x80xf32>
    %421 = vector.shape_cast %420 : vector<1x80x80xf32> to vector<80x80xf32>
    %cst_225 = arith.constant dense<0.000000e+00> : vector<8x80xf32>
    %422 = tpu.matmul %419, %421, %cst_225 {dimension_numbers = #tpu.dot_dimension_numbers<[1], [0], [0], [1], [0, 0, 1, 1], [], []>} : vector<8x80xf32>, vector<80x80xf32>, vector<8x80xf32> -> vector<8x80xf32>
    %c2_226 = arith.constant 2 : index
    %c0_227 = arith.constant 0 : index
    %c0_228 = arith.constant 0 : index
    %423 = vector.load %arg23[%c2_226, %c0_227, %c0_228] : memref<4x8x1xf32, #tpu.memory_space<vmem>>, vector<1x8x1xf32>
    %424 = vector.shape_cast %423 : vector<1x8x1xf32> to vector<8x1xf32>
    %425 = vector.broadcast %424 : vector<8x1xf32> to vector<8x80xf32>
    %426 = arith.addf %422, %425 : vector<8x80xf32>
    %cst_229 = arith.constant 0.000000e+00 : f32
    %427 = vector.broadcast %cst_229 : f32 to vector<8x80xf32>
    %428 = arith.maximumf %426, %427 : vector<8x80xf32>
    %c2_230 = arith.constant 2 : index
    %c0_231 = arith.constant 0 : index
    %c0_232 = arith.constant 0 : index
    %429 = vector.load %arg22[%c2_230, %c0_231, %c0_232] : memref<4x8x8xf32, #tpu.memory_space<vmem>>, vector<1x8x8xf32>
    %430 = vector.shape_cast %429 : vector<1x8x8xf32> to vector<8x8xf32>
    %cst_233 = arith.constant dense<0.000000e+00> : vector<8x80xf32>
    %431 = tpu.matmul %430, %428, %cst_233 {dimension_numbers = #tpu.dot_dimension_numbers<[1], [0], [0], [1], [0, 0, 1, 1], [], []>} : vector<8x8xf32>, vector<8x80xf32>, vector<8x80xf32> -> vector<8x80xf32>
    %c2_234 = arith.constant 2 : index
    %c0_235 = arith.constant 0 : index
    %c0_236 = arith.constant 0 : index
    %432 = vector.load %arg20[%c2_234, %c0_235, %c0_236] : memref<4x80x80xf32, #tpu.memory_space<vmem>>, vector<1x80x80xf32>
    %433 = vector.shape_cast %432 : vector<1x80x80xf32> to vector<80x80xf32>
    %cst_237 = arith.constant dense<0.000000e+00> : vector<8x80xf32>
    %434 = tpu.matmul %431, %433, %cst_237 {dimension_numbers = #tpu.dot_dimension_numbers<[1], [0], [0], [1], [0, 0, 1, 1], [], []>} : vector<8x80xf32>, vector<80x80xf32>, vector<8x80xf32> -> vector<8x80xf32>
    %c2_238 = arith.constant 2 : index
    %c0_239 = arith.constant 0 : index
    %c0_240 = arith.constant 0 : index
    %435 = vector.load %arg24[%c2_238, %c0_239, %c0_240] : memref<4x8x1xf32, #tpu.memory_space<vmem>>, vector<1x8x1xf32>
    %436 = vector.shape_cast %435 : vector<1x8x1xf32> to vector<8x1xf32>
    %437 = vector.broadcast %436 : vector<8x1xf32> to vector<8x80xf32>
    %438 = arith.addf %434, %437 : vector<8x80xf32>
    %cst_241 = arith.constant 0.000000e+00 : f32
    %439 = vector.broadcast %cst_241 : f32 to vector<8x80xf32>
    %440 = arith.maximumf %438, %439 : vector<8x80xf32>
    %c3 = arith.constant 3 : index
    %c0_242 = arith.constant 0 : index
    %c0_243 = arith.constant 0 : index
    %441 = vector.load %arg21[%c3, %c0_242, %c0_243] : memref<4x8x4xf32, #tpu.memory_space<vmem>>, vector<1x8x4xf32>
    %442 = vector.shape_cast %441 : vector<1x8x4xf32> to vector<8x4xf32>
    %cst_244 = arith.constant dense<0.000000e+00> : vector<8x80xf32>
    %443 = tpu.matmul %442, %0, %cst_244 {dimension_numbers = #tpu.dot_dimension_numbers<[1], [0], [0], [1], [0, 0, 1, 1], [], []>} : vector<8x4xf32>, vector<4x80xf32>, vector<8x80xf32> -> vector<8x80xf32>
    %c3_245 = arith.constant 3 : index
    %c0_246 = arith.constant 0 : index
    %c0_247 = arith.constant 0 : index
    %444 = vector.load %arg20[%c3_245, %c0_246, %c0_247] : memref<4x80x80xf32, #tpu.memory_space<vmem>>, vector<1x80x80xf32>
    %445 = vector.shape_cast %444 : vector<1x80x80xf32> to vector<80x80xf32>
    %cst_248 = arith.constant dense<0.000000e+00> : vector<8x80xf32>
    %446 = tpu.matmul %443, %445, %cst_248 {dimension_numbers = #tpu.dot_dimension_numbers<[1], [0], [0], [1], [0, 0, 1, 1], [], []>} : vector<8x80xf32>, vector<80x80xf32>, vector<8x80xf32> -> vector<8x80xf32>
    %c3_249 = arith.constant 3 : index
    %c0_250 = arith.constant 0 : index
    %c0_251 = arith.constant 0 : index
    %447 = vector.load %arg23[%c3_249, %c0_250, %c0_251] : memref<4x8x1xf32, #tpu.memory_space<vmem>>, vector<1x8x1xf32>
    %448 = vector.shape_cast %447 : vector<1x8x1xf32> to vector<8x1xf32>
    %449 = vector.broadcast %448 : vector<8x1xf32> to vector<8x80xf32>
    %450 = arith.addf %446, %449 : vector<8x80xf32>
    %cst_252 = arith.constant 0.000000e+00 : f32
    %451 = vector.broadcast %cst_252 : f32 to vector<8x80xf32>
    %452 = arith.maximumf %450, %451 : vector<8x80xf32>
    %c3_253 = arith.constant 3 : index
    %c0_254 = arith.constant 0 : index
    %c0_255 = arith.constant 0 : index
    %453 = vector.load %arg22[%c3_253, %c0_254, %c0_255] : memref<4x8x8xf32, #tpu.memory_space<vmem>>, vector<1x8x8xf32>
    %454 = vector.shape_cast %453 : vector<1x8x8xf32> to vector<8x8xf32>
    %cst_256 = arith.constant dense<0.000000e+00> : vector<8x80xf32>
    %455 = tpu.matmul %454, %452, %cst_256 {dimension_numbers = #tpu.dot_dimension_numbers<[1], [0], [0], [1], [0, 0, 1, 1], [], []>} : vector<8x8xf32>, vector<8x80xf32>, vector<8x80xf32> -> vector<8x80xf32>
    %c3_257 = arith.constant 3 : index
    %c0_258 = arith.constant 0 : index
    %c0_259 = arith.constant 0 : index
    %456 = vector.load %arg20[%c3_257, %c0_258, %c0_259] : memref<4x80x80xf32, #tpu.memory_space<vmem>>, vector<1x80x80xf32>
    %457 = vector.shape_cast %456 : vector<1x80x80xf32> to vector<80x80xf32>
    %cst_260 = arith.constant dense<0.000000e+00> : vector<8x80xf32>
    %458 = tpu.matmul %455, %457, %cst_260 {dimension_numbers = #tpu.dot_dimension_numbers<[1], [0], [0], [1], [0, 0, 1, 1], [], []>} : vector<8x80xf32>, vector<80x80xf32>, vector<8x80xf32> -> vector<8x80xf32>
    %c3_261 = arith.constant 3 : index
    %c0_262 = arith.constant 0 : index
    %c0_263 = arith.constant 0 : index
    %459 = vector.load %arg24[%c3_261, %c0_262, %c0_263] : memref<4x8x1xf32, #tpu.memory_space<vmem>>, vector<1x8x1xf32>
    %460 = vector.shape_cast %459 : vector<1x8x1xf32> to vector<8x1xf32>
    %461 = vector.broadcast %460 : vector<8x1xf32> to vector<8x80xf32>
    %462 = arith.addf %458, %461 : vector<8x80xf32>
    %cst_264 = arith.constant 0.000000e+00 : f32
    %463 = vector.broadcast %cst_264 : f32 to vector<8x80xf32>
    %464 = arith.maximumf %462, %463 : vector<8x80xf32>
    %cst_265 = arith.constant 0.000000e+00 : f32
    %465 = vector.broadcast %cst_265 : f32 to vector<3x16xf32>
    %cst_266 = arith.constant dense<0.000000e+00> : vector<80xf32>
    %466 = vector.multi_reduction <add>, %392, %cst_266 [0] : vector<8x80xf32> to vector<80xf32>
    %467 = vector.shape_cast %466 : vector<80xf32> to vector<1x80xf32>
    %cst_267 = arith.constant 8.000000e+00 : f32
    %468 = vector.broadcast %cst_267 : f32 to vector<1x80xf32>
    %469 = arith.divf %467, %468 : vector<1x80xf32>
    %c0_268 = arith.constant 0 : index
    %c0_269 = arith.constant 0 : index
    %470 = vector.load %arg18[%c0_268, %c0_269] : memref<80x16xf32, #tpu.memory_space<vmem>>, vector<80x16xf32>
    %cst_270 = arith.constant dense<0.000000e+00> : vector<1x16xf32>
    %471 = tpu.matmul %469, %470, %cst_270 {dimension_numbers = #tpu.dot_dimension_numbers<[1], [0], [0], [1], [0, 0, 1, 1], [], []>} : vector<1x80xf32>, vector<80x16xf32>, vector<1x16xf32> -> vector<1x16xf32>
    %472 = vector.extract_strided_slice %367 {offsets = [0, 0, 0], sizes = [1, 3, 16], strides = [1, 1, 1]} : vector<4x3x16xf32> to vector<1x3x16xf32>
    %473 = vector.shape_cast %472 : vector<1x3x16xf32> to vector<3x16xf32>
    %474 = vector.broadcast %471 : vector<1x16xf32> to vector<3x16xf32>
    %475 = arith.mulf %473, %474 : vector<3x16xf32>
    %476 = arith.addf %465, %475 : vector<3x16xf32>
    %cst_271 = arith.constant dense<0.000000e+00> : vector<80xf32>
    %477 = vector.multi_reduction <add>, %416, %cst_271 [0] : vector<8x80xf32> to vector<80xf32>
    %478 = vector.shape_cast %477 : vector<80xf32> to vector<1x80xf32>
    %cst_272 = arith.constant 8.000000e+00 : f32
    %479 = vector.broadcast %cst_272 : f32 to vector<1x80xf32>
    %480 = arith.divf %478, %479 : vector<1x80xf32>
    %c0_273 = arith.constant 0 : index
    %c0_274 = arith.constant 0 : index
    %481 = vector.load %arg18[%c0_273, %c0_274] : memref<80x16xf32, #tpu.memory_space<vmem>>, vector<80x16xf32>
    %cst_275 = arith.constant dense<0.000000e+00> : vector<1x16xf32>
    %482 = tpu.matmul %480, %481, %cst_275 {dimension_numbers = #tpu.dot_dimension_numbers<[1], [0], [0], [1], [0, 0, 1, 1], [], []>} : vector<1x80xf32>, vector<80x16xf32>, vector<1x16xf32> -> vector<1x16xf32>
    %483 = vector.extract_strided_slice %367 {offsets = [1, 0, 0], sizes = [1, 3, 16], strides = [1, 1, 1]} : vector<4x3x16xf32> to vector<1x3x16xf32>
    %484 = vector.shape_cast %483 : vector<1x3x16xf32> to vector<3x16xf32>
    %485 = vector.broadcast %482 : vector<1x16xf32> to vector<3x16xf32>
    %486 = arith.mulf %484, %485 : vector<3x16xf32>
    %487 = arith.addf %476, %486 : vector<3x16xf32>
    %cst_276 = arith.constant dense<0.000000e+00> : vector<80xf32>
    %488 = vector.multi_reduction <add>, %440, %cst_276 [0] : vector<8x80xf32> to vector<80xf32>
    %489 = vector.shape_cast %488 : vector<80xf32> to vector<1x80xf32>
    %cst_277 = arith.constant 8.000000e+00 : f32
    %490 = vector.broadcast %cst_277 : f32 to vector<1x80xf32>
    %491 = arith.divf %489, %490 : vector<1x80xf32>
    %c0_278 = arith.constant 0 : index
    %c0_279 = arith.constant 0 : index
    %492 = vector.load %arg18[%c0_278, %c0_279] : memref<80x16xf32, #tpu.memory_space<vmem>>, vector<80x16xf32>
    %cst_280 = arith.constant dense<0.000000e+00> : vector<1x16xf32>
    %493 = tpu.matmul %491, %492, %cst_280 {dimension_numbers = #tpu.dot_dimension_numbers<[1], [0], [0], [1], [0, 0, 1, 1], [], []>} : vector<1x80xf32>, vector<80x16xf32>, vector<1x16xf32> -> vector<1x16xf32>
    %494 = vector.extract_strided_slice %367 {offsets = [2, 0, 0], sizes = [1, 3, 16], strides = [1, 1, 1]} : vector<4x3x16xf32> to vector<1x3x16xf32>
    %495 = vector.shape_cast %494 : vector<1x3x16xf32> to vector<3x16xf32>
    %496 = vector.broadcast %493 : vector<1x16xf32> to vector<3x16xf32>
    %497 = arith.mulf %495, %496 : vector<3x16xf32>
    %498 = arith.addf %487, %497 : vector<3x16xf32>
    %cst_281 = arith.constant dense<0.000000e+00> : vector<80xf32>
    %499 = vector.multi_reduction <add>, %464, %cst_281 [0] : vector<8x80xf32> to vector<80xf32>
    %500 = vector.shape_cast %499 : vector<80xf32> to vector<1x80xf32>
    %cst_282 = arith.constant 8.000000e+00 : f32
    %501 = vector.broadcast %cst_282 : f32 to vector<1x80xf32>
    %502 = arith.divf %500, %501 : vector<1x80xf32>
    %c0_283 = arith.constant 0 : index
    %c0_284 = arith.constant 0 : index
    %503 = vector.load %arg18[%c0_283, %c0_284] : memref<80x16xf32, #tpu.memory_space<vmem>>, vector<80x16xf32>
    %cst_285 = arith.constant dense<0.000000e+00> : vector<1x16xf32>
    %504 = tpu.matmul %502, %503, %cst_285 {dimension_numbers = #tpu.dot_dimension_numbers<[1], [0], [0], [1], [0, 0, 1, 1], [], []>} : vector<1x80xf32>, vector<80x16xf32>, vector<1x16xf32> -> vector<1x16xf32>
    %505 = vector.extract_strided_slice %367 {offsets = [3, 0, 0], sizes = [1, 3, 16], strides = [1, 1, 1]} : vector<4x3x16xf32> to vector<1x3x16xf32>
    %506 = vector.shape_cast %505 : vector<1x3x16xf32> to vector<3x16xf32>
    %507 = vector.broadcast %504 : vector<1x16xf32> to vector<3x16xf32>
    %508 = arith.mulf %506, %507 : vector<3x16xf32>
    %509 = arith.addf %498, %508 : vector<3x16xf32>
    %c0_286 = arith.constant 0 : index
    %c0_287 = arith.constant 0 : index
    %510 = vector.load %arg25[%c0_286, %c0_287] : memref<6x3xf32, #tpu.memory_space<vmem>>, vector<6x3xf32>
    %cst_288 = arith.constant dense<0.000000e+00> : vector<6x16xf32>
    %511 = tpu.matmul %510, %509, %cst_288 {dimension_numbers = #tpu.dot_dimension_numbers<[1], [0], [0], [1], [0, 0, 1, 1], [], []>} : vector<6x3xf32>, vector<3x16xf32>, vector<6x16xf32> -> vector<6x16xf32>
    %c0_289 = arith.constant 0 : index
    %c0_290 = arith.constant 0 : index
    %512 = vector.load %arg26[%c0_289, %c0_290] : memref<6x1xf32, #tpu.memory_space<vmem>>, vector<6x1xf32>
    %513 = vector.broadcast %512 : vector<6x1xf32> to vector<6x16xf32>
    %514 = arith.addf %511, %513 : vector<6x16xf32>
    %cst_291 = arith.constant 0.000000e+00 : f32
    %515 = vector.broadcast %cst_291 : f32 to vector<6x16xf32>
    %516 = arith.maximumf %514, %515 : vector<6x16xf32>
    %c0_292 = arith.constant 0 : index
    %c0_293 = arith.constant 0 : index
    %517 = vector.load %arg27[%c0_292, %c0_293] : memref<3x6xf32, #tpu.memory_space<vmem>>, vector<3x6xf32>
    %cst_294 = arith.constant dense<0.000000e+00> : vector<3x16xf32>
    %518 = tpu.matmul %517, %516, %cst_294 {dimension_numbers = #tpu.dot_dimension_numbers<[1], [0], [0], [1], [0, 0, 1, 1], [], []>} : vector<3x6xf32>, vector<6x16xf32>, vector<3x16xf32> -> vector<3x16xf32>
    %c0_295 = arith.constant 0 : index
    %c0_296 = arith.constant 0 : index
    %519 = vector.load %arg28[%c0_295, %c0_296] : memref<3x1xf32, #tpu.memory_space<vmem>>, vector<3x1xf32>
    %520 = vector.broadcast %519 : vector<3x1xf32> to vector<3x16xf32>
    %521 = arith.addf %518, %520 : vector<3x16xf32>
    %522 = arith.negf %521 : vector<3x16xf32>
    %523 = math.exp %522 : vector<3x16xf32>
    %cst_297 = arith.constant 1.000000e+00 : f32
    %524 = vector.broadcast %cst_297 : f32 to vector<3x16xf32>
    %525 = arith.addf %524, %523 : vector<3x16xf32>
    %526 = arith.divf %524, %525 : vector<3x16xf32>
    %cst_298 = arith.constant 0.000000e+00 : f32
    %527 = vector.broadcast %cst_298 : f32 to vector<8x80xf32>
    %528 = vector.extract_strided_slice %367 {offsets = [0, 0, 0], sizes = [1, 3, 16], strides = [1, 1, 1]} : vector<4x3x16xf32> to vector<1x3x16xf32>
    %529 = vector.shape_cast %528 : vector<1x3x16xf32> to vector<3x16xf32>
    %530 = arith.mulf %529, %526 : vector<3x16xf32>
    %cst_299 = arith.constant dense<0.000000e+00> : vector<16xf32>
    %531 = vector.multi_reduction <add>, %530, %cst_299 [0] : vector<3x16xf32> to vector<16xf32>
    %532 = vector.shape_cast %531 : vector<16xf32> to vector<1x16xf32>
    %c0_300 = arith.constant 0 : index
    %c0_301 = arith.constant 0 : index
    %533 = vector.load %arg19[%c0_300, %c0_301] : memref<16x80xf32, #tpu.memory_space<vmem>>, vector<16x80xf32>
    %cst_302 = arith.constant dense<0.000000e+00> : vector<1x80xf32>
    %534 = tpu.matmul %532, %533, %cst_302 {dimension_numbers = #tpu.dot_dimension_numbers<[1], [0], [0], [1], [0, 0, 1, 1], [], []>} : vector<1x16xf32>, vector<16x80xf32>, vector<1x80xf32> -> vector<1x80xf32>
    %535 = vector.broadcast %534 : vector<1x80xf32> to vector<8x80xf32>
    %536 = arith.mulf %392, %535 : vector<8x80xf32>
    %537 = arith.addf %527, %536 : vector<8x80xf32>
    %538 = vector.extract_strided_slice %367 {offsets = [1, 0, 0], sizes = [1, 3, 16], strides = [1, 1, 1]} : vector<4x3x16xf32> to vector<1x3x16xf32>
    %539 = vector.shape_cast %538 : vector<1x3x16xf32> to vector<3x16xf32>
    %540 = arith.mulf %539, %526 : vector<3x16xf32>
    %cst_303 = arith.constant dense<0.000000e+00> : vector<16xf32>
    %541 = vector.multi_reduction <add>, %540, %cst_303 [0] : vector<3x16xf32> to vector<16xf32>
    %542 = vector.shape_cast %541 : vector<16xf32> to vector<1x16xf32>
    %c0_304 = arith.constant 0 : index
    %c0_305 = arith.constant 0 : index
    %543 = vector.load %arg19[%c0_304, %c0_305] : memref<16x80xf32, #tpu.memory_space<vmem>>, vector<16x80xf32>
    %cst_306 = arith.constant dense<0.000000e+00> : vector<1x80xf32>
    %544 = tpu.matmul %542, %543, %cst_306 {dimension_numbers = #tpu.dot_dimension_numbers<[1], [0], [0], [1], [0, 0, 1, 1], [], []>} : vector<1x16xf32>, vector<16x80xf32>, vector<1x80xf32> -> vector<1x80xf32>
    %545 = vector.broadcast %544 : vector<1x80xf32> to vector<8x80xf32>
    %546 = arith.mulf %416, %545 : vector<8x80xf32>
    %547 = arith.addf %537, %546 : vector<8x80xf32>
    %548 = vector.extract_strided_slice %367 {offsets = [2, 0, 0], sizes = [1, 3, 16], strides = [1, 1, 1]} : vector<4x3x16xf32> to vector<1x3x16xf32>
    %549 = vector.shape_cast %548 : vector<1x3x16xf32> to vector<3x16xf32>
    %550 = arith.mulf %549, %526 : vector<3x16xf32>
    %cst_307 = arith.constant dense<0.000000e+00> : vector<16xf32>
    %551 = vector.multi_reduction <add>, %550, %cst_307 [0] : vector<3x16xf32> to vector<16xf32>
    %552 = vector.shape_cast %551 : vector<16xf32> to vector<1x16xf32>
    %c0_308 = arith.constant 0 : index
    %c0_309 = arith.constant 0 : index
    %553 = vector.load %arg19[%c0_308, %c0_309] : memref<16x80xf32, #tpu.memory_space<vmem>>, vector<16x80xf32>
    %cst_310 = arith.constant dense<0.000000e+00> : vector<1x80xf32>
    %554 = tpu.matmul %552, %553, %cst_310 {dimension_numbers = #tpu.dot_dimension_numbers<[1], [0], [0], [1], [0, 0, 1, 1], [], []>} : vector<1x16xf32>, vector<16x80xf32>, vector<1x80xf32> -> vector<1x80xf32>
    %555 = vector.broadcast %554 : vector<1x80xf32> to vector<8x80xf32>
    %556 = arith.mulf %440, %555 : vector<8x80xf32>
    %557 = arith.addf %547, %556 : vector<8x80xf32>
    %558 = vector.extract_strided_slice %367 {offsets = [3, 0, 0], sizes = [1, 3, 16], strides = [1, 1, 1]} : vector<4x3x16xf32> to vector<1x3x16xf32>
    %559 = vector.shape_cast %558 : vector<1x3x16xf32> to vector<3x16xf32>
    %560 = arith.mulf %559, %526 : vector<3x16xf32>
    %cst_311 = arith.constant dense<0.000000e+00> : vector<16xf32>
    %561 = vector.multi_reduction <add>, %560, %cst_311 [0] : vector<3x16xf32> to vector<16xf32>
    %562 = vector.shape_cast %561 : vector<16xf32> to vector<1x16xf32>
    %c0_312 = arith.constant 0 : index
    %c0_313 = arith.constant 0 : index
    %563 = vector.load %arg19[%c0_312, %c0_313] : memref<16x80xf32, #tpu.memory_space<vmem>>, vector<16x80xf32>
    %cst_314 = arith.constant dense<0.000000e+00> : vector<1x80xf32>
    %564 = tpu.matmul %562, %563, %cst_314 {dimension_numbers = #tpu.dot_dimension_numbers<[1], [0], [0], [1], [0, 0, 1, 1], [], []>} : vector<1x16xf32>, vector<16x80xf32>, vector<1x80xf32> -> vector<1x80xf32>
    %565 = vector.broadcast %564 : vector<1x80xf32> to vector<8x80xf32>
    %566 = arith.mulf %464, %565 : vector<8x80xf32>
    %567 = arith.addf %557, %566 : vector<8x80xf32>
    %c0_315 = arith.constant 0 : index
    %c0_316 = arith.constant 0 : index
    %568 = vector.load %arg29[%c0_315, %c0_316] : memref<8x80xf32, #tpu.memory_space<vmem>>, vector<8x80xf32>
    tpu.vector_store %arg29[%c0_315, %c0_316], %567 {strides = array<i32>} : memref<8x80xf32, #tpu.memory_space<vmem>>, vector<8x80xf32>,
    return
  }
}

</mosaic_0001>

<llo_original>
// kernel: policy_gcn_forward.1
$region0: #{policy_gcn_forward.1}
  #allocation0 [shape = 'u32[]', space=smem, size = 0x4, offset = 0x4, fixed_abs, tag = 'smem constant byte address 0x4 - core index']
  #allocation1 [shape = 'u32[72,128]{1,0:T(1,128)}', space=vmem, size = 0x9000, scoped, tag = 'internal scratch']
  %s0 = inlined_call_operand.smem [shape: u32[31], index: -1, kind: input, shape index: {}]
  %s1 = sld [smem:[%s0]]
  %s2 = scalar_lea.smem %s0, 1
  %s3 = sld [smem:[%s2]]
  %s4 = scalar_lea.smem %s0, 2
  %s5 = sld [smem:[%s4]]
  %s6 = scalar_lea.smem %s0, 3
  %s7 = sld [smem:[%s6]]
  %s8 = scalar_lea.smem %s0, 4
  %s9 = sld [smem:[%s8]]
  %s10 = scalar_lea.smem %s0, 5
  %s11 = sld [smem:[%s10]]
  %s12 = scalar_lea.smem %s0, 6
  %s13 = sld [smem:[%s12]]
  %s14 = scalar_lea.smem %s0, 7
  %s15 = sld [smem:[%s14]]
  %s16 = scalar_lea.smem %s0, 8
  %s17 = sld [smem:[%s16]]
  %s18 = scalar_lea.smem %s0, 9
  %s19 = sld [smem:[%s18]]
  %s20 = scalar_lea.smem %s0, 10
  %s21 = sld [smem:[%s20]]
  %s22 = scalar_lea.smem %s0, 11
  %s23 = sld [smem:[%s22]]
  %s24 = scalar_lea.smem %s0, 12
  %s25 = sld [smem:[%s24]]
  %s26 = scalar_lea.smem %s0, 13
  %s27 = sld [smem:[%s26]]
  %s28 = scalar_lea.smem %s0, 14
  %s29 = sld [smem:[%s28]]
  %s30 = scalar_lea.smem %s0, 15
  %s31 = sld [smem:[%s30]]
  %s32 = scalar_lea.smem %s0, 16
  %s33 = sld [smem:[%s32]]
  %s34 = scalar_lea.smem %s0, 17
  %s35 = sld [smem:[%s34]]
  %s36 = scalar_lea.smem %s0, 18
  %s37 = sld [smem:[%s36]]
  %s38 = scalar_lea.smem %s0, 19
  %s39 = sld [smem:[%s38]]
  %s40 = scalar_lea.smem %s0, 20
  %s41 = sld [smem:[%s40]]
  %s42 = scalar_lea.smem %s0, 21
  %s43 = sld [smem:[%s42]]
  %s44 = scalar_lea.smem %s0, 22
  %s45 = sld [smem:[%s44]]
  %s46 = scalar_lea.smem %s0, 23
  %s47 = sld [smem:[%s46]]
  %s48 = scalar_lea.smem %s0, 24
  %s49 = sld [smem:[%s48]]
  %s50 = scalar_lea.smem %s0, 25
  %s51 = sld [smem:[%s50]]
  %s52 = scalar_lea.smem %s0, 26
  %s53 = sld [smem:[%s52]]
  %s54 = scalar_lea.smem %s0, 27
  %s55 = sld [smem:[%s54]]
  %s56 = scalar_lea.smem %s0, 28
  %s57 = sld [smem:[%s56]]
  %s58 = scalar_lea.smem %s0, 29
  %s59 = sld [smem:[%s58]]
  %s60 = scalar_lea.smem %s0, 30
  %s61 = sld [smem:[%s60]]
  %62 = xla_tuple %s59, %s61
  %s63 = sld [smem:[#allocation0]]
  $region146: #{policy_gcn_forward.1} parent=0
    _
  %s65 = ssub.s32 1, %s63
  %s66 = scalar_select 0, %s65, %s63
  $region1: #{policy_gcn_forward.1} parent=0
    #allocation2 [shape = 'u8[122880]{0}', space=vmem, size = 0x1e000, scoped, tag = 'input window, operand 16, single buffered']
    #allocation3 [shape = 's32[1]{0}', space=sflag, size = 0x4, scoped, tag = 'scoped memory for policy_gcn_forward.1']
    #allocation4 [shape = 'u8[122880]{0}', space=vmem, size = 0x1e000, scoped, tag = 'input window, operand 17, single buffered']
    #allocation5 [shape = 's32[1]{0}', space=sflag, size = 0x4, scoped, tag = 'scoped memory for policy_gcn_forward.1']
    #allocation6 [shape = 'u8[163840]{0}', space=vmem, size = 0x28000, scoped, tag = 'input window, operand 20, single buffered']
    %67 = vsyncpa [#allocation3], 0
    %68 = vsyncpa [#allocation5], 0
    // Predicated region
    $region2: #{policy_gcn_forward.1} parent=1 // pred_check
      _
    $region3: #{policy_gcn_forward.1} parent=1 // pred_check_branch
      %70 = sbr.rel (0) target = $region5
    $region4: #{policy_gcn_forward.1} parent=1 // pred_region
      _
    $region5: #{policy_gcn_forward.1} parent=1 // pred_fallthru
      _
    // Predicated region
    $region6: #{policy_gcn_forward.1} parent=1 // pred_check
      _
    $region7: #{policy_gcn_forward.1} parent=1 // pred_check_branch
      %72 = sbr.rel (0) target = $region9
    $region8: #{policy_gcn_forward.1} parent=1 // pred_region
      _
    $region9: #{policy_gcn_forward.1} parent=1 // pred_fallthru
      _
    // Predicated region
    $region10: #{policy_gcn_forward.1} parent=1 // pred_check
      _
    $region11: #{policy_gcn_forward.1} parent=1 // pred_check_branch
      %74 = sbr.rel (0) target = $region13
    $region12: #{policy_gcn_forward.1} parent=1 // pred_region
      _
    $region13: #{policy_gcn_forward.1} parent=1 // pred_fallthru
      _
    // Predicated region
    $region14: #{policy_gcn_forward.1} parent=1 // pred_check
      _
    $region15: #{policy_gcn_forward.1} parent=1 // pred_check_branch
      %76 = sbr.rel (0) target = $region17
    $region16: #{policy_gcn_forward.1} parent=1 // pred_region
      _
    $region17: #{policy_gcn_forward.1} parent=1 // pred_fallthru
      _
    // Predicated region
    $region18: #{policy_gcn_forward.1} parent=1 // pred_check
      _
    $region19: #{policy_gcn_forward.1} parent=1 // pred_check_branch
      %78 = sbr.rel (0) target = $region21
    $region20: #{policy_gcn_forward.1} parent=1 // pred_region
      _
    $region21: #{policy_gcn_forward.1} parent=1 // pred_fallthru
      _
    // Predicated region
    $region22: #{policy_gcn_forward.1} parent=1 // pred_check
      _
    $region23: #{policy_gcn_forward.1} parent=1 // pred_check_branch
      %80 = sbr.rel (0) target = $region25
    $region24: #{policy_gcn_forward.1} parent=1 // pred_region
      _
    $region25: #{policy_gcn_forward.1} parent=1 // pred_fallthru
      _
    // Predicated region
    $region26: #{policy_gcn_forward.1} parent=1 // pred_check
      _
    $region27: #{policy_gcn_forward.1} parent=1 // pred_check_branch
      %82 = sbr.rel (0) target = $region29
    $region28: #{policy_gcn_forward.1} parent=1 // pred_region
      _
    $region29: #{policy_gcn_forward.1} parent=1 // pred_fallthru
      _
    // Predicated region
    $region30: #{policy_gcn_forward.1} parent=1 // pred_check
      _
    $region31: #{policy_gcn_forward.1} parent=1 // pred_check_branch
      %84 = sbr.rel (0) target = $region33
    $region32: #{policy_gcn_forward.1} parent=1 // pred_region
      _
    $region33: #{policy_gcn_forward.1} parent=1 // pred_fallthru
      _
    // Predicated region
    $region34: #{policy_gcn_forward.1} parent=1 // pred_check
      _
    $region35: #{policy_gcn_forward.1} parent=1 // pred_check_branch
      %86 = sbr.rel (0) target = $region37
    $region36: #{policy_gcn_forward.1} parent=1 // pred_region
      _
    $region37: #{policy_gcn_forward.1} parent=1 // pred_fallthru
      _
    // Predicated region
    $region38: #{policy_gcn_forward.1} parent=1 // pred_check
      _
    $region39: #{policy_gcn_forward.1} parent=1 // pred_check_branch
      %88 = sbr.rel (0) target = $region41
    $region40: #{policy_gcn_forward.1} parent=1 // pred_region
      _
    $region41: #{policy_gcn_forward.1} parent=1 // pred_fallthru
      _
    // Predicated region
    $region42: #{policy_gcn_forward.1} parent=1 // pred_check
      _
    $region43: #{policy_gcn_forward.1} parent=1 // pred_check_branch
      %90 = sbr.rel (0) target = $region45
    $region44: #{policy_gcn_forward.1} parent=1 // pred_region
      _
    $region45: #{policy_gcn_forward.1} parent=1 // pred_fallthru
      _
    // Predicated region
    $region46: #{policy_gcn_forward.1} parent=1 // pred_check
      _
    $region47: #{policy_gcn_forward.1} parent=1 // pred_check_branch
      %92 = sbr.rel (0) target = $region49
    $region48: #{policy_gcn_forward.1} parent=1 // pred_region
      _
    $region49: #{policy_gcn_forward.1} parent=1 // pred_fallthru
      _
    // Predicated region
    $region50: #{policy_gcn_forward.1} parent=1 // pred_check
      _
    $region51: #{policy_gcn_forward.1} parent=1 // pred_check_branch
      %94 = sbr.rel (0) target = $region53
    $region52: #{policy_gcn_forward.1} parent=1 // pred_region
      _
    $region53: #{policy_gcn_forward.1} parent=1 // pred_fallthru
      _
    // Predicated region
    $region54: #{policy_gcn_forward.1} parent=1 // pred_check
      _
    $region55: #{policy_gcn_forward.1} parent=1 // pred_check_branch
      %96 = sbr.rel (0) target = $region57
    $region56: #{policy_gcn_forward.1} parent=1 // pred_region
      _
    $region57: #{policy_gcn_forward.1} parent=1 // pred_fallthru
      _
    // Predicated region
    $region58: #{policy_gcn_forward.1} parent=1 // pred_check
      _
    $region59: #{policy_gcn_forward.1} parent=1 // pred_check_branch
      %98 = sbr.rel (0) target = $region61
    $region60: #{policy_gcn_forward.1} parent=1 // pred_region
      _
    $region61: #{policy_gcn_forward.1} parent=1 // pred_fallthru
      _
    // Predicated region
    $region62: #{policy_gcn_forward.1} parent=1 // pred_check
      _
    $region63: #{policy_gcn_forward.1} parent=1 // pred_check_branch
      %100 = sbr.rel (0) target = $region65
    $region64: #{policy_gcn_forward.1} parent=1 // pred_region
      _
    $region65: #{policy_gcn_forward.1} parent=1 // pred_fallthru
      _
    // Predicated region
    $region66: #{policy_gcn_forward.1} parent=1 // pred_check
      _
    $region67: #{policy_gcn_forward.1} parent=1 // pred_check_branch
      %102 = sbr.rel (0) target = $region69
    $region68: #{policy_gcn_forward.1} parent=1 // pred_region
      %104 = vsyncadd [#allocation3], 0
      %s105 = sshll.u32 %s33, 4
      %s106 = int_to_ptr.hbm [resolvable:$true] %s105
      %s107 = sshll.u32 [#allocation2], 4
      %s108 = int_to_ptr.vmem [resolvable:$true] %s107
      %113 = dma.hbm_to_vmem [thread:$0]  %s106, 3840, %s108, [#allocation3], 128, 128, 8
    $region69: #{policy_gcn_forward.1} parent=1 // pred_fallthru
      _
    // Predicated region
    $region70: #{policy_gcn_forward.1} parent=1 // pred_check
      _
    $region71: #{policy_gcn_forward.1} parent=1 // pred_check_branch
      %115 = sbr.rel (0) target = $region73
    $region72: #{policy_gcn_forward.1} parent=1 // pred_region
      %117 = vsyncadd [#allocation5], 0
      %s118 = sshll.u32 %s35, 4
      %s119 = int_to_ptr.hbm [resolvable:$true] %s118
      %s120 = sshll.u32 [#allocation4], 4
      %s121 = int_to_ptr.vmem [resolvable:$true] %s120
      %126 = dma.hbm_to_vmem [thread:$0]  %s119, 3840, %s121, [#allocation5], 128, 128, 8
    $region73: #{policy_gcn_forward.1} parent=1 // pred_fallthru
      _
    // Predicated region
    $region74: #{policy_gcn_forward.1} parent=1 // pred_check
      _
    $region75: #{policy_gcn_forward.1} parent=1 // pred_check_branch
      %128 = sbr.rel (0) target = $region77
    $region76: #{policy_gcn_forward.1} parent=1 // pred_region
      _
    $region77: #{policy_gcn_forward.1} parent=1 // pred_fallthru
      _
    // Predicated region
    $region78: #{policy_gcn_forward.1} parent=1 // pred_check
      _
    $region79: #{policy_gcn_forward.1} parent=1 // pred_check_branch
      %130 = sbr.rel (0) target = $region81
    $region80: #{policy_gcn_forward.1} parent=1 // pred_region
      _
    $region81: #{policy_gcn_forward.1} parent=1 // pred_fallthru
      _
    // Predicated region
    $region82: #{policy_gcn_forward.1} parent=1 // pred_check
      _
    $region83: #{policy_gcn_forward.1} parent=1 // pred_check_branch
      %132 = sbr.rel (0) target = $region85
    $region84: #{policy_gcn_forward.1} parent=1 // pred_region
      %134 = vsyncadd [#allocation5], 0
      %s135 = sshll.u32 %s41, 4
      %s136 = int_to_ptr.hbm [resolvable:$true] %s135
      %s137 = sshll.u32 [#allocation6], 4
      %s138 = int_to_ptr.vmem [resolvable:$true] %s137
      %143 = dma.hbm_to_vmem [thread:$0]  %s136, 5120, %s138, [#allocation5], 128, 128, 8
    $region85: #{policy_gcn_forward.1} parent=1 // pred_fallthru
      _
    // Predicated region
    $region86: #{policy_gcn_forward.1} parent=1 // pred_check
      _
    $region87: #{policy_gcn_forward.1} parent=1 // pred_check_branch
      %145 = sbr.rel (0) target = $region89
    $region88: #{policy_gcn_forward.1} parent=1 // pred_region
      _
    $region89: #{policy_gcn_forward.1} parent=1 // pred_fallthru
      _
    // Predicated region
    $region90: #{policy_gcn_forward.1} parent=1 // pred_check
      _
    $region91: #{policy_gcn_forward.1} parent=1 // pred_check_branch
      %147 = sbr.rel (0) target = $region93
    $region92: #{policy_gcn_forward.1} parent=1 // pred_region
      _
    $region93: #{policy_gcn_forward.1} parent=1 // pred_fallthru
      _
    // Predicated region
    $region94: #{policy_gcn_forward.1} parent=1 // pred_check
      _
    $region95: #{policy_gcn_forward.1} parent=1 // pred_check_branch
      %149 = sbr.rel (0) target = $region97
    $region96: #{policy_gcn_forward.1} parent=1 // pred_region
      _
    $region97: #{policy_gcn_forward.1} parent=1 // pred_fallthru
      _
    // Predicated region
    $region98: #{policy_gcn_forward.1} parent=1 // pred_check
      _
    $region99: #{policy_gcn_forward.1} parent=1 // pred_check_branch
      %151 = sbr.rel (0) target = $region101
    $region100: #{policy_gcn_forward.1} parent=1 // pred_region
      _
    $region101: #{policy_gcn_forward.1} parent=1 // pred_fallthru
      _
    // Predicated region
    $region102: #{policy_gcn_forward.1} parent=1 // pred_check
      _
    $region103: #{policy_gcn_forward.1} parent=1 // pred_check_branch
      %153 = sbr.rel (0) target = $region105
    $region104: #{policy_gcn_forward.1} parent=1 // pred_region
      _
    $region105: #{policy_gcn_forward.1} parent=1 // pred_fallthru
      _
    // Predicated region
    $region106: #{policy_gcn_forward.1} parent=1 // pred_check
      _
    $region107: #{policy_gcn_forward.1} parent=1 // pred_check_branch
      %155 = sbr.rel (0) target = $region109
    $region108: #{policy_gcn_forward.1} parent=1 // pred_region
      _
    $region109: #{policy_gcn_forward.1} parent=1 // pred_fallthru
      _
    // Predicated region
    $region110: #{policy_gcn_forward.1} parent=1 // pred_check
      _
    $region111: #{policy_gcn_forward.1} parent=1 // pred_check_branch
      %157 = sbr.rel (0) target = $region113
    $region112: #{policy_gcn_forward.1} parent=1 // pred_region
      _
    $region113: #{policy_gcn_forward.1} parent=1 // pred_fallthru
      _
    // Predicated region
    $region114: #{policy_gcn_forward.1} parent=1 // pred_check
      _
    $region115: #{policy_gcn_forward.1} parent=1 // pred_check_branch
      %159 = sbr.rel (0) target = $region117
    $region116: #{policy_gcn_forward.1} parent=1 // pred_region
      _
    $region117: #{policy_gcn_forward.1} parent=1 // pred_fallthru
      _
    // Predicated region
    $region118: #{policy_gcn_forward.1} parent=1 // pred_check
      _
    $region119: #{policy_gcn_forward.1} parent=1 // pred_check_branch
      %161 = sbr.rel (0) target = $region121
    $region120: #{policy_gcn_forward.1} parent=1 // pred_region
      %163 = dma.done [#allocation3], 3840
    $region121: #{policy_gcn_forward.1} parent=1 // pred_fallthru
      _
    // Predicated region
    $region122: #{policy_gcn_forward.1} parent=1 // pred_check
      _
    $region123: #{policy_gcn_forward.1} parent=1 // pred_check_branch
      %165 = sbr.rel (0) target = $region125
    $region124: #{policy_gcn_forward.1} parent=1 // pred_region
      %167 = dma.done [#allocation5], 3840
    $region125: #{policy_gcn_forward.1} parent=1 // pred_fallthru
      _
    // Predicated region
    $region126: #{policy_gcn_forward.1} parent=1 // pred_check
      _
    $region127: #{policy_gcn_forward.1} parent=1 // pred_check_branch
      %169 = sbr.rel (0) target = $region129
    $region128: #{policy_gcn_forward.1} parent=1 // pred_region
      %171 = dma.done [#allocation5], 5120
    $region129: #{policy_gcn_forward.1} parent=1 // pred_fallthru
      _
    %v172 = vld [vmem:[%s1] sm:$0xf]
    %v173 = vld [vmem:[%s5] sm:$0xf]
    %v174 = vld [vmem:[%s7] sm:$0xf]
    %176 = vset.pattern.permute.xlu0 0
    %177 = vperm.xlu0 %176, %v174
    %v178 = vpop.permute.xlu0 %177
    %vm180 = vcmask 31744
    %v182 = vsel %vm180, %v173, 0
    %vm184 = vcmask 1043456
    %v186 = vsel %vm184, %v172, 0
    %188 = vmatpush.msra.mxu0 0.0
    %189 = vmatpush.msra.mxu0 0.0
    %190 = vmatpush.msra.mxu0 0.0
    %191 = vmatpush.msra.mxu0 0.0
    %192 = vmatpush.msra.mxu0 0.0
    %193 = vmatpush.msra.mxu0 0.0
    %194 = vmatpush.msra.mxu0 0.0
    %195 = vmatpush.msra.mxu0 0.0
    %196 = vmatpush.msra.mxu0 0.0
    %197 = vmatpush.msra.mxu0 0.0
    %198 = vmatpush.msra.mxu0 0.0
    %199 = vmatpush.msra.mxu0 0.0
    %200 = vmatpush.msra.mxu0 0.0
    %201 = vmatpush.msra.mxu0 0.0
    %202 = vmatpush.msra.mxu0 0.0
    %203 = vmatpush.msra.mxu0 %v186
    %204 = vmatmul.f32.gmra.mxu0 %v182
    %v205 = vpop.f32.mrf.mxu0
    %v206 = vadd.f32 %v178, %v205
    %207 = vdwg.mxu0
    %v208 = vmax.f32 %v206, 0.0
    %v209 = vld [vmem:[%s9] sm:$0xf]
    %v210 = vld [vmem:[%s11] sm:$0xf]
    %212 = vset.pattern.permute.xlu0 0
    %213 = vperm.xlu0 %212, %v210
    %v214 = vpop.permute.xlu0 %213
    %v217 = vsel %vm180, %v209, 0
    %v220 = vsel %vm184, %v208, 0
    %222 = vmatpush.msra.mxu0 0.0
    %223 = vmatpush.msra.mxu0 0.0
    %224 = vmatpush.msra.mxu0 0.0
    %225 = vmatpush.msra.mxu0 0.0
    %226 = vmatpush.msra.mxu0 0.0
    %227 = vmatpush.msra.mxu0 0.0
    %228 = vmatpush.msra.mxu0 0.0
    %229 = vmatpush.msra.mxu0 0.0
    %230 = vmatpush.msra.mxu0 0.0
    %231 = vmatpush.msra.mxu0 0.0
    %232 = vmatpush.msra.mxu0 0.0
    %233 = vmatpush.msra.mxu0 0.0
    %234 = vmatpush.msra.mxu0 0.0
    %235 = vmatpush.msra.mxu0 0.0
    %236 = vmatpush.msra.mxu0 0.0
    %237 = vmatpush.msra.mxu0 %v220
    %238 = vmatmul.f32.gmra.mxu0 %v217
    %v239 = vpop.f32.mrf.mxu0
    %v240 = vadd.f32 %v214, %v239
    %241 = vdwg.mxu0
    %v242 = vmax.f32 %v240, 0.0
    %v243 = vld [vmem:[%s13] sm:$0xf]
    %v244 = vld [vmem:[%s15] sm:$0xf]
    %246 = vset.pattern.permute.xlu0 0
    %247 = vperm.xlu0 %246, %v244
    %v248 = vpop.permute.xlu0 %247
    %v251 = vsel %vm180, %v243, 0
    %v254 = vsel %vm184, %v242, 0
    %256 = vmatpush.msra.mxu0 0.0
    %257 = vmatpush.msra.mxu0 0.0
    %258 = vmatpush.msra.mxu0 0.0
    %259 = vmatpush.msra.mxu0 0.0
    %260 = vmatpush.msra.mxu0 0.0
    %261 = vmatpush.msra.mxu0 0.0
    %262 = vmatpush.msra.mxu0 0.0
    %263 = vmatpush.msra.mxu0 0.0
    %264 = vmatpush.msra.mxu0 0.0
    %265 = vmatpush.msra.mxu0 0.0
    %266 = vmatpush.msra.mxu0 0.0
    %267 = vmatpush.msra.mxu0 0.0
    %268 = vmatpush.msra.mxu0 0.0
    %269 = vmatpush.msra.mxu0 0.0
    %270 = vmatpush.msra.mxu0 0.0
    %271 = vmatpush.msra.mxu0 %v254
    %272 = vmatmul.f32.gmra.mxu0 %v251
    %v273 = vpop.f32.mrf.mxu0
    %v274 = vadd.f32 %v248, %v273
    %275 = vdwg.mxu0
    %v276 = vld [vmem:[#allocation2] sm:$0xff]
    %v277 = vld [vmem:[#allocation2 + $0x8] sm:$0xff]
    %v278 = vld [vmem:[#allocation2 + $0x10] sm:$0xff]
    %v279 = vld [vmem:[#allocation2 + $0x18] sm:$0xff]
    %v280 = vld [vmem:[#allocation2 + $0x20] sm:$0xff]
    %v281 = vld [vmem:[#allocation2 + $0x28] sm:$0xff]
    %v282 = vld [vmem:[#allocation2 + $0x30] sm:$0xff]
    %v283 = vld [vmem:[#allocation2 + $0x38] sm:$0xff]
    %v284 = vld [vmem:[#allocation2 + $0x40] sm:$0xff]
    %v285 = vld [vmem:[#allocation2 + $0x48] sm:$0xff]
    %vm286 = vcmask 654336
    %v288 = vsel %vm286, %v274, 0
    %290 = vmatpush.msra.mxu0 0.0
    %291 = vmatpush.msra.mxu0 0.0
    %292 = vmatpush.msra.mxu0 0.0
    %293 = vmatpush.msra.mxu0 0.0
    %294 = vmatpush.msra.mxu0 0.0
    %295 = vmatpush.msra.mxu0 0.0
    %296 = vmatpush.msra.mxu0 %v285
    %297 = vmatpush.msra.mxu0 %v284
    %298 = vmatpush.msra.mxu0 %v283
    %299 = vmatpush.msra.mxu0 %v282
    %300 = vmatpush.msra.mxu0 %v281
    %301 = vmatpush.msra.mxu0 %v280
    %302 = vmatpush.msra.mxu0 %v279
    %303 = vmatpush.msra.mxu0 %v278
    %304 = vmatpush.msra.mxu0 %v277
    %305 = vmatpush.msra.mxu0 %v276
    %306 = vmatmul.f32.gmra.mxu0 %v288
    %v307 = vpop.f32.mrf.mxu0
    %v308 = vadd.f32 0.0, %v307
    %309 = vdwg.mxu0
    %v310 = vld [vmem:[#allocation4] sm:$0xff]
    %v311 = vld [vmem:[#allocation4 + $0x8] sm:$0xff]
    %v312 = vld [vmem:[#allocation4 + $0x10] sm:$0xff]
    %v313 = vld [vmem:[#allocation4 + $0x18] sm:$0xff]
    %v314 = vld [vmem:[#allocation4 + $0x20] sm:$0xff]
    %v315 = vld [vmem:[#allocation4 + $0x28] sm:$0xff]
    %v316 = vld [vmem:[#allocation4 + $0x30] sm:$0xff]
    %v317 = vld [vmem:[#allocation4 + $0x38] sm:$0xff]
    %v318 = vld [vmem:[#allocation4 + $0x40] sm:$0xff]
    %v319 = vld [vmem:[#allocation4 + $0x48] sm:$0xff]
    %320 = vmatpush.msra.mxu0 0.0
    %321 = vmatpush.msra.mxu0 0.0
    %322 = vmatpush.msra.mxu0 0.0
    %323 = vmatpush.msra.mxu0 0.0
    %324 = vmatpush.msra.mxu0 0.0
    %325 = vmatpush.msra.mxu0 0.0
    %326 = vmatpush.msra.mxu0 %v319
    %327 = vmatpush.msra.mxu0 %v318
    %328 = vmatpush.msra.mxu0 %v317
    %329 = vmatpush.msra.mxu0 %v316
    %330 = vmatpush.msra.mxu0 %v315
    %331 = vmatpush.msra.mxu0 %v314
    %332 = vmatpush.msra.mxu0 %v313
    %333 = vmatpush.msra.mxu0 %v312
    %334 = vmatpush.msra.mxu0 %v311
    %335 = vmatpush.msra.mxu0 %v310
    %336 = vmatmul.f32.gmra.mxu0 %v288
    %v337 = vpop.f32.mrf.mxu0
    %v338 = vadd.f32 0.0, %v337
    %339 = vdwg.mxu0
    %v340 = vld [vmem:[%s17] sm:$0xf]
    %v341 = vld [vmem:[%s19] sm:$0xf]
    %v343 = vsel %vm180, %v341, 0
    %v346 = vsel %vm184, %v308, 0
    %348 = vmatpush.msra.mxu0 0.0
    %349 = vmatpush.msra.mxu0 0.0
    %350 = vmatpush.msra.mxu0 0.0
    %351 = vmatpush.msra.mxu0 0.0
    %352 = vmatpush.msra.mxu0 0.0
    %353 = vmatpush.msra.mxu0 0.0
    %354 = vmatpush.msra.mxu0 0.0
    %355 = vmatpush.msra.mxu0 0.0
    %356 = vmatpush.msra.mxu0 0.0
    %357 = vmatpush.msra.mxu0 0.0
    %358 = vmatpush.msra.mxu0 0.0
    %359 = vmatpush.msra.mxu0 0.0
    %360 = vmatpush.msra.mxu0 0.0
    %361 = vmatpush.msra.mxu0 0.0
    %362 = vmatpush.msra.mxu0 0.0
    %363 = vmatpush.msra.mxu0 %v346
    %364 = vmatmul.f32.gmra.mxu0 %v343
    %v365 = vpop.f32.mrf.mxu0
    %v366 = vadd.f32 0.0, %v365
    %367 = vdwg.mxu0
    %v369 = vsel %vm180, %v340, 0
    %v372 = vsel %vm184, %v338, 0
    %374 = vmatpush.msra.mxu0 0.0
    %375 = vmatpush.msra.mxu0 0.0
    %376 = vmatpush.msra.mxu0 0.0
    %377 = vmatpush.msra.mxu0 0.0
    %378 = vmatpush.msra.mxu0 0.0
    %379 = vmatpush.msra.mxu0 0.0
    %380 = vmatpush.msra.mxu0 0.0
    %381 = vmatpush.msra.mxu0 0.0
    %382 = vmatpush.msra.mxu0 0.0
    %383 = vmatpush.msra.mxu0 0.0
    %384 = vmatpush.msra.mxu0 0.0
    %385 = vmatpush.msra.mxu0 0.0
    %386 = vmatpush.msra.mxu0 0.0
    %387 = vmatpush.msra.mxu0 0.0
    %388 = vmatpush.msra.mxu0 0.0
    %389 = vmatpush.msra.mxu0 %v372
    %390 = vmatmul.f32.gmra.mxu0 %v369
    %v391 = vpop.f32.mrf.mxu0
    %v392 = vadd.f32 %v366, %v391
    %393 = vdwg.mxu0
    %v394 = vld [vmem:[%s21] sm:$0xf]
    %v396 = vsel %vm180, %v394, 0
    %v398 = vsel %vm184, %v274, 0
    %400 = vmatpush.msra.mxu0 0.0
    %401 = vmatpush.msra.mxu0 0.0
    %402 = vmatpush.msra.mxu0 0.0
    %403 = vmatpush.msra.mxu0 0.0
    %404 = vmatpush.msra.mxu0 0.0
    %405 = vmatpush.msra.mxu0 0.0
    %406 = vmatpush.msra.mxu0 0.0
    %407 = vmatpush.msra.mxu0 0.0
    %408 = vmatpush.msra.mxu0 0.0
    %409 = vmatpush.msra.mxu0 0.0
    %410 = vmatpush.msra.mxu0 0.0
    %411 = vmatpush.msra.mxu0 0.0
    %412 = vmatpush.msra.mxu0 0.0
    %413 = vmatpush.msra.mxu0 0.0
    %414 = vmatpush.msra.mxu0 0.0
    %415 = vmatpush.msra.mxu0 %v398
    %416 = vmatmul.f32.gmra.mxu0 %v396
    %v417 = vpop.f32.mrf.mxu0
    %v418 = vadd.f32 0.0, %v417
    %419 = vdwg.mxu0
    %v420 = vadd.f32 %v392, %v418
    %v421 = vld [vmem:[%s23] sm:$0xf]
    %423 = vset.pattern.permute.xlu0 0
    %424 = vperm.xlu0 %423, %v421
    %v425 = vpop.permute.xlu0 %424
    %v427 = vadd.f32 %v420, %v425
    %v428 = vmax.f32 %v427, 0.0
    %v429 = vld [vmem:[%s25] sm:$0xf]
    %v431 = vsel %vm180, %v429, 0
    %v434 = vsel %vm184, %v428, 0
    %436 = vmatpush.msra.mxu0 0.0
    %437 = vmatpush.msra.mxu0 0.0
    %438 = vmatpush.msra.mxu0 0.0
    %439 = vmatpush.msra.mxu0 0.0
    %440 = vmatpush.msra.mxu0 0.0
    %441 = vmatpush.msra.mxu0 0.0
    %442 = vmatpush.msra.mxu0 0.0
    %443 = vmatpush.msra.mxu0 0.0
    %444 = vmatpush.msra.mxu0 0.0
    %445 = vmatpush.msra.mxu0 0.0
    %446 = vmatpush.msra.mxu0 0.0
    %447 = vmatpush.msra.mxu0 0.0
    %448 = vmatpush.msra.mxu0 0.0
    %449 = vmatpush.msra.mxu0 0.0
    %450 = vmatpush.msra.mxu0 0.0
    %451 = vmatpush.msra.mxu0 %v434
    %452 = vmatmul.f32.gmra.mxu0 %v431
    %v453 = vpop.f32.mrf.mxu0
    %v454 = vadd.f32 0.0, %v453
    %455 = vdwg.mxu0
    %v456 = vadd.f32 %v274, %v454
    %v457 = vld [vmem:[%s27] sm:$0xf]
    %459 = vset.pattern.permute.xlu0 0
    %460 = vperm.xlu0 %459, %v457
    %v461 = vpop.permute.xlu0 %460
    %v463 = vadd.f32 %v456, %v461
    %s464 = scalar_lea.vmem [#allocation2], 80
    %v465 = vld [vmem:[%s464] sm:$0xff]
    %v466 = vld [vmem:[%s464 + $0x8] sm:$0xff]
    %v467 = vld [vmem:[%s464 + $0x10] sm:$0xff]
    %v468 = vld [vmem:[%s464 + $0x18] sm:$0xff]
    %v469 = vld [vmem:[%s464 + $0x20] sm:$0xff]
    %v470 = vld [vmem:[%s464 + $0x28] sm:$0xff]
    %v471 = vld [vmem:[%s464 + $0x30] sm:$0xff]
    %v472 = vld [vmem:[%s464 + $0x38] sm:$0xff]
    %v473 = vld [vmem:[%s464 + $0x40] sm:$0xff]
    %v474 = vld [vmem:[%s464 + $0x48] sm:$0xff]
    %v476 = vsel %vm286, %v463, 0
    %478 = vmatpush.msra.mxu0 0.0
    %479 = vmatpush.msra.mxu0 0.0
    %480 = vmatpush.msra.mxu0 0.0
    %481 = vmatpush.msra.mxu0 0.0
    %482 = vmatpush.msra.mxu0 0.0
    %483 = vmatpush.msra.mxu0 0.0
    %484 = vmatpush.msra.mxu0 %v474
    %485 = vmatpush.msra.mxu0 %v473
    %486 = vmatpush.msra.mxu0 %v472
    %487 = vmatpush.msra.mxu0 %v471
    %488 = vmatpush.msra.mxu0 %v470
    %489 = vmatpush.msra.mxu0 %v469
    %490 = vmatpush.msra.mxu0 %v468
    %491 = vmatpush.msra.mxu0 %v467
    %492 = vmatpush.msra.mxu0 %v466
    %493 = vmatpush.msra.mxu0 %v465
    %494 = vmatmul.f32.gmra.mxu0 %v476
    %v495 = vpop.f32.mrf.mxu0
    %v496 = vadd.f32 0.0, %v495
    %497 = vdwg.mxu0
    %s498 = scalar_lea.vmem [#allocation4], 80
    %v499 = vld [vmem:[%s498] sm:$0xff]
    %v500 = vld [vmem:[%s498 + $0x8] sm:$0xff]
    %v501 = vld [vmem:[%s498 + $0x10] sm:$0xff]
    %v502 = vld [vmem:[%s498 + $0x18] sm:$0xff]
    %v503 = vld [vmem:[%s498 + $0x20] sm:$0xff]
    %v504 = vld [vmem:[%s498 + $0x28] sm:$0xff]
    %v505 = vld [vmem:[%s498 + $0x30] sm:$0xff]
    %v506 = vld [vmem:[%s498 + $0x38] sm:$0xff]
    %v507 = vld [vmem:[%s498 + $0x40] sm:$0xff]
    %v508 = vld [vmem:[%s498 + $0x48] sm:$0xff]
    %509 = vmatpush.msra.mxu0 0.0
    %510 = vmatpush.msra.mxu0 0.0
    %511 = vmatpush.msra.mxu0 0.0
    %512 = vmatpush.msra.mxu0 0.0
    %513 = vmatpush.msra.mxu0 0.0
    %514 = vmatpush.msra.mxu0 0.0
    %515 = vmatpush.msra.mxu0 %v508
    %516 = vmatpush.msra.mxu0 %v507
    %517 = vmatpush.msra.mxu0 %v506
    %518 = vmatpush.msra.mxu0 %v505
    %519 = vmatpush.msra.mxu0 %v504
    %520 = vmatpush.msra.mxu0 %v503
    %521 = vmatpush.msra.mxu0 %v502
    %522 = vmatpush.msra.mxu0 %v501
    %523 = vmatpush.msra.mxu0 %v500
    %524 = vmatpush.msra.mxu0 %v499
    %525 = vmatmul.f32.gmra.mxu0 %v476
    %v526 = vpop.f32.mrf.mxu0
    %v527 = vadd.f32 0.0, %v526
    %528 = vdwg.mxu0
    %s529 = scalar_lea.vmem %s17, 4
    %v530 = vld [vmem:[%s529] sm:$0xf]
    %s531 = scalar_lea.vmem %s19, 4
    %v532 = vld [vmem:[%s531] sm:$0xf]
    %v534 = vsel %vm180, %v532, 0
    %v537 = vsel %vm184, %v496, 0
    %539 = vmatpush.msra.mxu0 0.0
    %540 = vmatpush.msra.mxu0 0.0
    %541 = vmatpush.msra.mxu0 0.0
    %542 = vmatpush.msra.mxu0 0.0
    %543 = vmatpush.msra.mxu0 0.0
    %544 = vmatpush.msra.mxu0 0.0
    %545 = vmatpush.msra.mxu0 0.0
    %546 = vmatpush.msra.mxu0 0.0
    %547 = vmatpush.msra.mxu0 0.0
    %548 = vmatpush.msra.mxu0 0.0
    %549 = vmatpush.msra.mxu0 0.0
    %550 = vmatpush.msra.mxu0 0.0
    %551 = vmatpush.msra.mxu0 0.0
    %552 = vmatpush.msra.mxu0 0.0
    %553 = vmatpush.msra.mxu0 0.0
    %554 = vmatpush.msra.mxu0 %v537
    %555 = vmatmul.f32.gmra.mxu0 %v534
    %v556 = vpop.f32.mrf.mxu0
    %v557 = vadd.f32 0.0, %v556
    %558 = vdwg.mxu0
    %v560 = vsel %vm180, %v530, 0
    %v563 = vsel %vm184, %v527, 0
    %565 = vmatpush.msra.mxu0 0.0
    %566 = vmatpush.msra.mxu0 0.0
    %567 = vmatpush.msra.mxu0 0.0
    %568 = vmatpush.msra.mxu0 0.0
    %569 = vmatpush.msra.mxu0 0.0
    %570 = vmatpush.msra.mxu0 0.0
    %571 = vmatpush.msra.mxu0 0.0
    %572 = vmatpush.msra.mxu0 0.0
    %573 = vmatpush.msra.mxu0 0.0
    %574 = vmatpush.msra.mxu0 0.0
    %575 = vmatpush.msra.mxu0 0.0
    %576 = vmatpush.msra.mxu0 0.0
    %577 = vmatpush.msra.mxu0 0.0
    %578 = vmatpush.msra.mxu0 0.0
    %579 = vmatpush.msra.mxu0 0.0
    %580 = vmatpush.msra.mxu0 %v563
    %581 = vmatmul.f32.gmra.mxu0 %v560
    %v582 = vpop.f32.mrf.mxu0
    %v583 = vadd.f32 %v557, %v582
    %584 = vdwg.mxu0
    %s585 = scalar_lea.vmem %s21, 4
    %v586 = vld [vmem:[%s585] sm:$0xf]
    %v588 = vsel %vm180, %v586, 0
    %v590 = vsel %vm184, %v463, 0
    %592 = vmatpush.msra.mxu0 0.0
    %593 = vmatpush.msra.mxu0 0.0
    %594 = vmatpush.msra.mxu0 0.0
    %595 = vmatpush.msra.mxu0 0.0
    %596 = vmatpush.msra.mxu0 0.0
    %597 = vmatpush.msra.mxu0 0.0
    %598 = vmatpush.msra.mxu0 0.0
    %599 = vmatpush.msra.mxu0 0.0
    %600 = vmatpush.msra.mxu0 0.0
    %601 = vmatpush.msra.mxu0 0.0
    %602 = vmatpush.msra.mxu0 0.0
    %603 = vmatpush.msra.mxu0 0.0
    %604 = vmatpush.msra.mxu0 0.0
    %605 = vmatpush.msra.mxu0 0.0
    %606 = vmatpush.msra.mxu0 0.0
    %607 = vmatpush.msra.mxu0 %v590
    %608 = vmatmul.f32.gmra.mxu0 %v588
    %v609 = vpop.f32.mrf.mxu0
    %v610 = vadd.f32 0.0, %v609
    %611 = vdwg.mxu0
    %v612 = vadd.f32 %v583, %v610
    %s613 = scalar_lea.vmem %s23, 4
    %v614 = vld [vmem:[%s613] sm:$0xf]
    %616 = vset.pattern.permute.xlu0 0
    %617 = vperm.xlu0 %616, %v614
    %v618 = vpop.permute.xlu0 %617
    %v620 = vadd.f32 %v612, %v618
    %v621 = vmax.f32 %v620, 0.0
    %s622 = scalar_lea.vmem %s25, 4
    %v623 = vld [vmem:[%s622] sm:$0xf]
    %v625 = vsel %vm180, %v623, 0
    %v628 = vsel %vm184, %v621, 0
    %630 = vmatpush.msra.mxu0 0.0
    %631 = vmatpush.msra.mxu0 0.0
    %632 = vmatpush.msra.mxu0 0.0
    %633 = vmatpush.msra.mxu0 0.0
    %634 = vmatpush.msra.mxu0 0.0
    %635 = vmatpush.msra.mxu0 0.0
    %636 = vmatpush.msra.mxu0 0.0
    %637 = vmatpush.msra.mxu0 0.0
    %638 = vmatpush.msra.mxu0 0.0
    %639 = vmatpush.msra.mxu0 0.0
    %640 = vmatpush.msra.mxu0 0.0
    %641 = vmatpush.msra.mxu0 0.0
    %642 = vmatpush.msra.mxu0 0.0
    %643 = vmatpush.msra.mxu0 0.0
    %644 = vmatpush.msra.mxu0 0.0
    %645 = vmatpush.msra.mxu0 %v628
    %646 = vmatmul.f32.gmra.mxu0 %v625
    %v647 = vpop.f32.mrf.mxu0
    %v648 = vadd.f32 0.0, %v647
    %649 = vdwg.mxu0
    %v650 = vadd.f32 %v463, %v648
    %s651 = scalar_lea.vmem %s27, 4
    %v652 = vld [vmem:[%s651] sm:$0xf]
    %654 = vset.pattern.permute.xlu0 0
    %655 = vperm.xlu0 %654, %v652
    %v656 = vpop.permute.xlu0 %655
    %v658 = vadd.f32 %v650, %v656
    %s659 = scalar_lea.vmem [#allocation2], 160
    %v660 = vld [vmem:[%s659] sm:$0xff]
    %v661 = vld [vmem:[%s659 + $0x8] sm:$0xff]
    %v662 = vld [vmem:[%s659 + $0x10] sm:$0xff]
    %v663 = vld [vmem:[%s659 + $0x18] sm:$0xff]
    %v664 = vld [vmem:[%s659 + $0x20] sm:$0xff]
    %v665 = vld [vmem:[%s659 + $0x28] sm:$0xff]
    %v666 = vld [vmem:[%s659 + $0x30] sm:$0xff]
    %v667 = vld [vmem:[%s659 + $0x38] sm:$0xff]
    %v668 = vld [vmem:[%s659 + $0x40] sm:$0xff]
    %v669 = vld [vmem:[%s659 + $0x48] sm:$0xff]
    %v671 = vsel %vm286, %v658, 0
    %673 = vmatpush.msra.mxu0 0.0
    %674 = vmatpush.msra.mxu0 0.0
    %675 = vmatpush.msra.mxu0 0.0
    %676 = vmatpush.msra.mxu0 0.0
    %677 = vmatpush.msra.mxu0 0.0
    %678 = vmatpush.msra.mxu0 0.0
    %679 = vmatpush.msra.mxu0 %v669
    %680 = vmatpush.msra.mxu0 %v668
    %681 = vmatpush.msra.mxu0 %v667
    %682 = vmatpush.msra.mxu0 %v666
    %683 = vmatpush.msra.mxu0 %v665
    %684 = vmatpush.msra.mxu0 %v664
    %685 = vmatpush.msra.mxu0 %v663
    %686 = vmatpush.msra.mxu0 %v662
    %687 = vmatpush.msra.mxu0 %v661
    %688 = vmatpush.msra.mxu0 %v660
    %689 = vmatmul.f32.gmra.mxu0 %v671
    %v690 = vpop.f32.mrf.mxu0
    %v691 = vadd.f32 0.0, %v690
    %692 = vdwg.mxu0
    %s693 = scalar_lea.vmem [#allocation4], 160
    %v694 = vld [vmem:[%s693] sm:$0xff]
    %v695 = vld [vmem:[%s693 + $0x8] sm:$0xff]
    %v696 = vld [vmem:[%s693 + $0x10] sm:$0xff]
    %v697 = vld [vmem:[%s693 + $0x18] sm:$0xff]
    %v698 = vld [vmem:[%s693 + $0x20] sm:$0xff]
    %v699 = vld [vmem:[%s693 + $0x28] sm:$0xff]
    %v700 = vld [vmem:[%s693 + $0x30] sm:$0xff]
    %v701 = vld [vmem:[%s693 + $0x38] sm:$0xff]
    %v702 = vld [vmem:[%s693 + $0x40] sm:$0xff]
    %v703 = vld [vmem:[%s693 + $0x48] sm:$0xff]
    %704 = vmatpush.msra.mxu0 0.0
    %705 = vmatpush.msra.mxu0 0.0
    %706 = vmatpush.msra.mxu0 0.0
    %707 = vmatpush.msra.mxu0 0.0
    %708 = vmatpush.msra.mxu0 0.0
    %709 = vmatpush.msra.mxu0 0.0
    %710 = vmatpush.msra.mxu0 %v703
    %711 = vmatpush.msra.mxu0 %v702
    %712 = vmatpush.msra.mxu0 %v701
    %713 = vmatpush.msra.mxu0 %v700
    %714 = vmatpush.msra.mxu0 %v699
    %715 = vmatpush.msra.mxu0 %v698
    %716 = vmatpush.msra.mxu0 %v697
    %717 = vmatpush.msra.mxu0 %v696
    %718 = vmatpush.msra.mxu0 %v695
    %719 = vmatpush.msra.mxu0 %v694
    %720 = vmatmul.f32.gmra.mxu0 %v671
    %v721 = vpop.f32.mrf.mxu0
    %v722 = vadd.f32 0.0, %v721
    %723 = vdwg.mxu0
    %s724 = scalar_lea.vmem %s17, 8
    %v725 = vld [vmem:[%s724] sm:$0xf]
    %s726 = scalar_lea.vmem %s19, 8
    %v727 = vld [vmem:[%s726] sm:$0xf]
    %v729 = vsel %vm180, %v727, 0
    %v732 = vsel %vm184, %v691, 0
    %734 = vmatpush.msra.mxu0 0.0
    %735 = vmatpush.msra.mxu0 0.0
    %736 = vmatpush.msra.mxu0 0.0
    %737 = vmatpush.msra.mxu0 0.0
    %738 = vmatpush.msra.mxu0 0.0
    %739 = vmatpush.msra.mxu0 0.0
    %740 = vmatpush.msra.mxu0 0.0
    %741 = vmatpush.msra.mxu0 0.0
    %742 = vmatpush.msra.mxu0 0.0
    %743 = vmatpush.msra.mxu0 0.0
    %744 = vmatpush.msra.mxu0 0.0
    %745 = vmatpush.msra.mxu0 0.0
    %746 = vmatpush.msra.mxu0 0.0
    %747 = vmatpush.msra.mxu0 0.0
    %748 = vmatpush.msra.mxu0 0.0
    %749 = vmatpush.msra.mxu0 %v732
    %750 = vmatmul.f32.gmra.mxu0 %v729
    %v751 = vpop.f32.mrf.mxu0
    %v752 = vadd.f32 0.0, %v751
    %753 = vdwg.mxu0
    %v755 = vsel %vm180, %v725, 0
    %v758 = vsel %vm184, %v722, 0
    %760 = vmatpush.msra.mxu0 0.0
    %761 = vmatpush.msra.mxu0 0.0
    %762 = vmatpush.msra.mxu0 0.0
    %763 = vmatpush.msra.mxu0 0.0
    %764 = vmatpush.msra.mxu0 0.0
    %765 = vmatpush.msra.mxu0 0.0
    %766 = vmatpush.msra.mxu0 0.0
    %767 = vmatpush.msra.mxu0 0.0
    %768 = vmatpush.msra.mxu0 0.0
    %769 = vmatpush.msra.mxu0 0.0
    %770 = vmatpush.msra.mxu0 0.0
    %771 = vmatpush.msra.mxu0 0.0
    %772 = vmatpush.msra.mxu0 0.0
    %773 = vmatpush.msra.mxu0 0.0
    %774 = vmatpush.msra.mxu0 0.0
    %775 = vmatpush.msra.mxu0 %v758
    %776 = vmatmul.f32.gmra.mxu0 %v755
    %v777 = vpop.f32.mrf.mxu0
    %v778 = vadd.f32 %v752, %v777
    %779 = vdwg.mxu0
    %s780 = scalar_lea.vmem %s21, 8
    %v781 = vld [vmem:[%s780] sm:$0xf]
    %v783 = vsel %vm180, %v781, 0
    %v785 = vsel %vm184, %v658, 0
    %787 = vmatpush.msra.mxu0 0.0
    %788 = vmatpush.msra.mxu0 0.0
    %789 = vmatpush.msra.mxu0 0.0
    %790 = vmatpush.msra.mxu0 0.0
    %791 = vmatpush.msra.mxu0 0.0
    %792 = vmatpush.msra.mxu0 0.0
    %793 = vmatpush.msra.mxu0 0.0
    %794 = vmatpush.msra.mxu0 0.0
    %795 = vmatpush.msra.mxu0 0.0
    %796 = vmatpush.msra.mxu0 0.0
    %797 = vmatpush.msra.mxu0 0.0
    %798 = vmatpush.msra.mxu0 0.0
    %799 = vmatpush.msra.mxu0 0.0
    %800 = vmatpush.msra.mxu0 0.0
    %801 = vmatpush.msra.mxu0 0.0
    %802 = vmatpush.msra.mxu0 %v785
    %803 = vmatmul.f32.gmra.mxu0 %v783
    %v804 = vpop.f32.mrf.mxu0
    %v805 = vadd.f32 0.0, %v804
    %806 = vdwg.mxu0
    %v807 = vadd.f32 %v778, %v805
    %s808 = scalar_lea.vmem %s23, 8
    %v809 = vld [vmem:[%s808] sm:$0xf]
    %811 = vset.pattern.permute.xlu0 0
    %812 = vperm.xlu0 %811, %v809
    %v813 = vpop.permute.xlu0 %812
    %v815 = vadd.f32 %v807, %v813
    %v816 = vmax.f32 %v815, 0.0
    %s817 = scalar_lea.vmem %s25, 8
    %v818 = vld [vmem:[%s817] sm:$0xf]
    %v820 = vsel %vm180, %v818, 0
    %v823 = vsel %vm184, %v816, 0
    %825 = vmatpush.msra.mxu0 0.0
    %826 = vmatpush.msra.mxu0 0.0
    %827 = vmatpush.msra.mxu0 0.0
    %828 = vmatpush.msra.mxu0 0.0
    %829 = vmatpush.msra.mxu0 0.0
    %830 = vmatpush.msra.mxu0 0.0
    %831 = vmatpush.msra.mxu0 0.0
    %832 = vmatpush.msra.mxu0 0.0
    %833 = vmatpush.msra.mxu0 0.0
    %834 = vmatpush.msra.mxu0 0.0
    %835 = vmatpush.msra.mxu0 0.0
    %836 = vmatpush.msra.mxu0 0.0
    %837 = vmatpush.msra.mxu0 0.0
    %838 = vmatpush.msra.mxu0 0.0
    %839 = vmatpush.msra.mxu0 0.0
    %840 = vmatpush.msra.mxu0 %v823
    %841 = vmatmul.f32.gmra.mxu0 %v820
    %v842 = vpop.f32.mrf.mxu0
    %v843 = vadd.f32 0.0, %v842
    %844 = vdwg.mxu0
    %v845 = vadd.f32 %v658, %v843
    %s846 = scalar_lea.vmem %s27, 8
    %v847 = vld [vmem:[%s846] sm:$0xf]
    %849 = vset.pattern.permute.xlu0 0
    %850 = vperm.xlu0 %849, %v847
    %v851 = vpop.permute.xlu0 %850
    %v853 = vadd.f32 %v845, %v851
    %v854 = vld [vmem:[%s29] sm:$0xf]
    %v855 = vld [vmem:[%s31] sm:$0xf]
    %857 = vset.pattern.permute.xlu0 0
    %858 = vperm.xlu0 %857, %v855
    %v859 = vpop.permute.xlu0 %858
    %v862 = vsel %vm180, %v854, 0
    %v865 = vsel %vm184, %v853, 0
    %867 = vmatpush.msra.mxu0 0.0
    %868 = vmatpush.msra.mxu0 0.0
    %869 = vmatpush.msra.mxu0 0.0
    %870 = vmatpush.msra.mxu0 0.0
    %871 = vmatpush.msra.mxu0 0.0
    %872 = vmatpush.msra.mxu0 0.0
    %873 = vmatpush.msra.mxu0 0.0
    %874 = vmatpush.msra.mxu0 0.0
    %875 = vmatpush.msra.mxu0 0.0
    %876 = vmatpush.msra.mxu0 0.0
    %877 = vmatpush.msra.mxu0 0.0
    %878 = vmatpush.msra.mxu0 0.0
    %879 = vmatpush.msra.mxu0 0.0
    %880 = vmatpush.msra.mxu0 0.0
    %881 = vmatpush.msra.mxu0 0.0
    %882 = vmatpush.msra.mxu0 %v865
    %883 = vmatmul.f32.gmra.mxu0 %v862
    %v884 = vpop.f32.mrf.mxu0
    %v885 = vadd.f32 %v859, %v884
    %886 = vdwg.mxu0
    %v887 = vld [vmem:[%s37] sm:$0xff]
    %v888 = vld [vmem:[%s37 + $0x8] sm:$0xff]
    %v889 = vld [vmem:[%s37 + $0x10] sm:$0xff]
    %v890 = vld [vmem:[%s37 + $0x18] sm:$0xff]
    %v891 = vld [vmem:[%s37 + $0x20] sm:$0xff]
    %v892 = vld [vmem:[%s37 + $0x28] sm:$0xff]
    %v893 = vld [vmem:[%s37 + $0x30] sm:$0xff]
    %v894 = vld [vmem:[%s37 + $0x38] sm:$0xff]
    %v895 = vld [vmem:[%s37 + $0x40] sm:$0xff]
    %v896 = vld [vmem:[%s37 + $0x48] sm:$0xff]
    %v898 = vsel %vm286, %v885, 0
    %900 = vmatpush.msra.mxu0 0.0
    %901 = vmatpush.msra.mxu0 0.0
    %902 = vmatpush.msra.mxu0 0.0
    %903 = vmatpush.msra.mxu0 0.0
    %904 = vmatpush.msra.mxu0 0.0
    %905 = vmatpush.msra.mxu0 0.0
    %906 = vmatpush.msra.mxu0 %v896
    %907 = vmatpush.msra.mxu0 %v895
    %908 = vmatpush.msra.mxu0 %v894
    %909 = vmatpush.msra.mxu0 %v893
    %910 = vmatpush.msra.mxu0 %v892
    %911 = vmatpush.msra.mxu0 %v891
    %912 = vmatpush.msra.mxu0 %v890
    %913 = vmatpush.msra.mxu0 %v889
    %914 = vmatpush.msra.mxu0 %v888
    %915 = vmatpush.msra.mxu0 %v887
    %916 = vmatmul.f32.gmra.mxu0 %v898
    %v917 = vpop.f32.mrf.mxu0
    %v918 = vadd.f32 0.0, %v917
    %919 = vdwg.mxu0
    %v920 = vld [vmem:[%s3] sm:$0xf]
    %v921 = vld [vmem:[%s3 + $0x4] sm:$0xf]
    %v922 = vld [vmem:[%s3 + $0x8] sm:$0xf]
    %v923 = vld [vmem:[%s3 + $0xc] sm:$0xf]
    %v924 = vmin.f32 %v920, 0.9999999
    %v925 = vmin.f32 %v921, 0.9999999
    %v926 = vmin.f32 %v922, 0.9999999
    %v927 = vmin.f32 %v923, 0.9999999
    %v928 = vadd.f32 %v924, 1e-08
    %v929 = vadd.f32 %v925, 1e-08
    %v930 = vadd.f32 %v926, 1e-08
    %v931 = vadd.f32 %v927, 1e-08
    %v932 = vlog2.pop %v928
    %v933 = vmul.f32 %v932, 0.6931472
    %v934 = vlog2.pop %v929
    %v935 = vmul.f32 %v934, 0.6931472
    %v936 = vlog2.pop %v930
    %v937 = vmul.f32 %v936, 0.6931472
    %v938 = vlog2.pop %v931
    %v939 = vmul.f32 %v938, 0.6931472
    %v940 = vsub.f32 0.0, %v933
    %v941 = vsub.f32 0.0, %v935
    %v942 = vsub.f32 0.0, %v937
    %v943 = vsub.f32 0.0, %v939
    %v944 = vadd.f32 %v940, 1e-08
    %v945 = vadd.f32 %v941, 1e-08
    %v946 = vadd.f32 %v942, 1e-08
    %v947 = vadd.f32 %v943, 1e-08
    %v948 = vlog2.pop %v944
    %v949 = vmul.f32 %v948, 0.6931472
    %v950 = vlog2.pop %v945
    %v951 = vmul.f32 %v950, 0.6931472
    %v952 = vlog2.pop %v946
    %v953 = vmul.f32 %v952, 0.6931472
    %v954 = vlog2.pop %v947
    %v955 = vmul.f32 %v954, 0.6931472
    %v956 = vsub.f32 0.0, %v949
    %v957 = vsub.f32 0.0, %v951
    %v958 = vsub.f32 0.0, %v953
    %v959 = vsub.f32 0.0, %v955
    %v960 = vadd.f32 %v918, %v956
    %v961 = vadd.f32 %v918, %v957
    %v962 = vadd.f32 %v918, %v958
    %v963 = vadd.f32 %v918, %v959
    %vm964 = vcmask 125952
    %v965 = vsel %vm964, %v960, -inf
    %v966 = vrot.slane %v965, 4
    %v967 = vmax.f32 %v965, %v966
    %v968 = vrot.slane %v967, 2
    %v969 = vmax.f32 %v967, %v968
    %v970 = vrot.slane %v969, 1
    %v971 = vmax.f32 %v969, %v970
    %v972 = vsel %vm964, %v961, -inf
    %v973 = vrot.slane %v972, 4
    %v974 = vmax.f32 %v972, %v973
    %v975 = vrot.slane %v974, 2
    %v976 = vmax.f32 %v974, %v975
    %v977 = vrot.slane %v976, 1
    %v978 = vmax.f32 %v976, %v977
    %v979 = vsel %vm964, %v962, -inf
    %v980 = vrot.slane %v979, 4
    %v981 = vmax.f32 %v979, %v980
    %v982 = vrot.slane %v981, 2
    %v983 = vmax.f32 %v981, %v982
    %v984 = vrot.slane %v983, 1
    %v985 = vmax.f32 %v983, %v984
    %v986 = vsel %vm964, %v963, -inf
    %v987 = vrot.slane %v986, 4
    %v988 = vmax.f32 %v986, %v987
    %v989 = vrot.slane %v988, 2
    %v990 = vmax.f32 %v988, %v989
    %v991 = vrot.slane %v990, 1
    %v992 = vmax.f32 %v990, %v991
    %v993 = vsub.f32 %v960, %v971
    %v994 = vsub.f32 %v961, %v978
    %v995 = vsub.f32 %v962, %v985
    %v996 = vsub.f32 %v963, %v992
    %v997 = vmul.f32 %v993, 1.442695
    %v998 = vpow.pop %v997
    %v999 = vmul.f32 %v994, 1.442695
    %v1000 = vpow.pop %v999
    %v1001 = vmul.f32 %v995, 1.442695
    %v1002 = vpow.pop %v1001
    %v1003 = vmul.f32 %v996, 1.442695
    %v1004 = vpow.pop %v1003
    %v1005 = vsel %vm964, %v998, 0.0
    %v1006 = vrot.slane %v1005, 4
    %v1007 = vadd.f32 %v1005, %v1006
    %v1008 = vrot.slane %v1007, 2
    %v1009 = vadd.f32 %v1007, %v1008
    %v1010 = vrot.slane %v1009, 1
    %v1011 = vadd.f32 %v1009, %v1010
    %v1012 = vsel %vm964, %v1000, 0.0
    %v1013 = vrot.slane %v1012, 4
    %v1014 = vadd.f32 %v1012, %v1013
    %v1015 = vrot.slane %v1014, 2
    %v1016 = vadd.f32 %v1014, %v1015
    %v1017 = vrot.slane %v1016, 1
    %v1018 = vadd.f32 %v1016, %v1017
    %v1019 = vsel %vm964, %v1002, 0.0
    %v1020 = vrot.slane %v1019, 4
    %v1021 = vadd.f32 %v1019, %v1020
    %v1022 = vrot.slane %v1021, 2
    %v1023 = vadd.f32 %v1021, %v1022
    %v1024 = vrot.slane %v1023, 1
    %v1025 = vadd.f32 %v1023, %v1024
    %v1026 = vsel %vm964, %v1004, 0.0
    %v1027 = vrot.slane %v1026, 4
    %v1028 = vadd.f32 %v1026, %v1027
    %v1029 = vrot.slane %v1028, 2
    %v1030 = vadd.f32 %v1028, %v1029
    %v1031 = vrot.slane %v1030, 1
    %v1032 = vadd.f32 %v1030, %v1031
    %v1033 = vlog2.pop %v1011
    %v1034 = vmul.f32 %v1033, 0.6931472
    %v1035 = vlog2.pop %v1018
    %v1036 = vmul.f32 %v1035, 0.6931472
    %v1037 = vlog2.pop %v1025
    %v1038 = vmul.f32 %v1037, 0.6931472
    %v1039 = vlog2.pop %v1032
    %v1040 = vmul.f32 %v1039, 0.6931472
    %v1041 = vadd.f32 %v971, %v1034
    %v1042 = vadd.f32 %v978, %v1036
    %v1043 = vadd.f32 %v985, %v1038
    %v1044 = vadd.f32 %v992, %v1040
    %v1045 = vsub.f32 %v960, %v1041
    %v1046 = vsub.f32 %v961, %v1042
    %v1047 = vsub.f32 %v962, %v1043
    %v1048 = vsub.f32 %v963, %v1044
    %v1049 = vsel %vm964, %v1045, -inf
    %v1050 = vsel %vm964, %v1046, -inf
    %v1051 = vsel %vm964, %v1047, -inf
    %v1052 = vsel %vm964, %v1048, -inf
    %v1053 = vmax.f32 %v1049, %v1050
    %v1054 = vmax.f32 %v1051, %v1052
    %v1055 = vmax.f32 %v1053, %v1054
    %v1056 = vsub.f32 %v1045, %v1055
    %v1057 = vsub.f32 %v1046, %v1055
    %v1058 = vsub.f32 %v1047, %v1055
    %v1059 = vsub.f32 %v1048, %v1055
    %v1060 = vmul.f32 %v1056, 1.442695
    %v1061 = vpow.pop %v1060
    %v1062 = vmul.f32 %v1057, 1.442695
    %v1063 = vpow.pop %v1062
    %v1064 = vmul.f32 %v1058, 1.442695
    %v1065 = vpow.pop %v1064
    %v1066 = vmul.f32 %v1059, 1.442695
    %v1067 = vpow.pop %v1066
    %v1068 = vsel %vm964, %v1061, 0.0
    %v1069 = vsel %vm964, %v1063, 0.0
    %v1070 = vadd.f32 %v1068, %v1069
    %v1071 = vsel %vm964, %v1065, 0.0
    %v1072 = vadd.f32 %v1070, %v1071
    %v1073 = vsel %vm964, %v1067, 0.0
    %v1074 = vadd.f32 %v1072, %v1073
    %v1075 = vlog2.pop %v1074
    %v1076 = vmul.f32 %v1075, 0.6931472
    %v1077 = vadd.f32 %v1055, %v1076
    %v1078 = vsub.f32 %v1045, %v1077
    %v1079 = vsub.f32 %v1046, %v1077
    %v1080 = vsub.f32 %v1047, %v1077
    %v1081 = vsub.f32 %v1048, %v1077
    %v1082 = vsel %vm964, %v1078, -inf
    %v1083 = vrot.slane %v1082, 4
    %v1084 = vmax.f32 %v1082, %v1083
    %v1085 = vrot.slane %v1084, 2
    %v1086 = vmax.f32 %v1084, %v1085
    %v1087 = vrot.slane %v1086, 1
    %v1088 = vmax.f32 %v1086, %v1087
    %v1089 = vsel %vm964, %v1079, -inf
    %v1090 = vrot.slane %v1089, 4
    %v1091 = vmax.f32 %v1089, %v1090
    %v1092 = vrot.slane %v1091, 2
    %v1093 = vmax.f32 %v1091, %v1092
    %v1094 = vrot.slane %v1093, 1
    %v1095 = vmax.f32 %v1093, %v1094
    %v1096 = vsel %vm964, %v1080, -inf
    %v1097 = vrot.slane %v1096, 4
    %v1098 = vmax.f32 %v1096, %v1097
    %v1099 = vrot.slane %v1098, 2
    %v1100 = vmax.f32 %v1098, %v1099
    %v1101 = vrot.slane %v1100, 1
    %v1102 = vmax.f32 %v1100, %v1101
    %v1103 = vsel %vm964, %v1081, -inf
    %v1104 = vrot.slane %v1103, 4
    %v1105 = vmax.f32 %v1103, %v1104
    %v1106 = vrot.slane %v1105, 2
    %v1107 = vmax.f32 %v1105, %v1106
    %v1108 = vrot.slane %v1107, 1
    %v1109 = vmax.f32 %v1107, %v1108
    %v1110 = vsub.f32 %v1078, %v1088
    %v1111 = vsub.f32 %v1079, %v1095
    %v1112 = vsub.f32 %v1080, %v1102
    %v1113 = vsub.f32 %v1081, %v1109
    %v1114 = vmul.f32 %v1110, 1.442695
    %v1115 = vpow.pop %v1114
    %v1116 = vmul.f32 %v1111, 1.442695
    %v1117 = vpow.pop %v1116
    %v1118 = vmul.f32 %v1112, 1.442695
    %v1119 = vpow.pop %v1118
    %v1120 = vmul.f32 %v1113, 1.442695
    %v1121 = vpow.pop %v1120
    %v1122 = vsel %vm964, %v1115, 0.0
    %v1123 = vrot.slane %v1122, 4
    %v1124 = vadd.f32 %v1122, %v1123
    %v1125 = vrot.slane %v1124, 2
    %v1126 = vadd.f32 %v1124, %v1125
    %v1127 = vrot.slane %v1126, 1
    %v1128 = vadd.f32 %v1126, %v1127
    %v1129 = vsel %vm964, %v1117, 0.0
    %v1130 = vrot.slane %v1129, 4
    %v1131 = vadd.f32 %v1129, %v1130
    %v1132 = vrot.slane %v1131, 2
    %v1133 = vadd.f32 %v1131, %v1132
    %v1134 = vrot.slane %v1133, 1
    %v1135 = vadd.f32 %v1133, %v1134
    %v1136 = vsel %vm964, %v1119, 0.0
    %v1137 = vrot.slane %v1136, 4
    %v1138 = vadd.f32 %v1136, %v1137
    %v1139 = vrot.slane %v1138, 2
    %v1140 = vadd.f32 %v1138, %v1139
    %v1141 = vrot.slane %v1140, 1
    %v1142 = vadd.f32 %v1140, %v1141
    %v1143 = vsel %vm964, %v1121, 0.0
    %v1144 = vrot.slane %v1143, 4
    %v1145 = vadd.f32 %v1143, %v1144
    %v1146 = vrot.slane %v1145, 2
    %v1147 = vadd.f32 %v1145, %v1146
    %v1148 = vrot.slane %v1147, 1
    %v1149 = vadd.f32 %v1147, %v1148
    %v1150 = vlog2.pop %v1128
    %v1151 = vmul.f32 %v1150, 0.6931472
    %v1152 = vlog2.pop %v1135
    %v1153 = vmul.f32 %v1152, 0.6931472
    %v1154 = vlog2.pop %v1142
    %v1155 = vmul.f32 %v1154, 0.6931472
    %v1156 = vlog2.pop %v1149
    %v1157 = vmul.f32 %v1156, 0.6931472
    %v1158 = vadd.f32 %v1088, %v1151
    %v1159 = vadd.f32 %v1095, %v1153
    %v1160 = vadd.f32 %v1102, %v1155
    %v1161 = vadd.f32 %v1109, %v1157
    %v1162 = vsub.f32 %v1078, %v1158
    %v1163 = vsub.f32 %v1079, %v1159
    %v1164 = vsub.f32 %v1080, %v1160
    %v1165 = vsub.f32 %v1081, %v1161
    %v1166 = vsel %vm964, %v1162, -inf
    %v1167 = vsel %vm964, %v1163, -inf
    %v1168 = vsel %vm964, %v1164, -inf
    %v1169 = vsel %vm964, %v1165, -inf
    %v1170 = vmax.f32 %v1166, %v1167
    %v1171 = vmax.f32 %v1168, %v1169
    %v1172 = vmax.f32 %v1170, %v1171
    %v1173 = vsub.f32 %v1162, %v1172
    %v1174 = vsub.f32 %v1163, %v1172
    %v1175 = vsub.f32 %v1164, %v1172
    %v1176 = vsub.f32 %v1165, %v1172
    %v1177 = vmul.f32 %v1173, 1.442695
    %v1178 = vpow.pop %v1177
    %v1179 = vmul.f32 %v1174, 1.442695
    %v1180 = vpow.pop %v1179
    %v1181 = vmul.f32 %v1175, 1.442695
    %v1182 = vpow.pop %v1181
    %v1183 = vmul.f32 %v1176, 1.442695
    %v1184 = vpow.pop %v1183
    %v1185 = vsel %vm964, %v1178, 0.0
    %v1186 = vsel %vm964, %v1180, 0.0
    %v1187 = vadd.f32 %v1185, %v1186
    %v1188 = vsel %vm964, %v1182, 0.0
    %v1189 = vadd.f32 %v1187, %v1188
    %v1190 = vsel %vm964, %v1184, 0.0
    %v1191 = vadd.f32 %v1189, %v1190
    %v1192 = vlog2.pop %v1191
    %v1193 = vmul.f32 %v1192, 0.6931472
    %v1194 = vadd.f32 %v1172, %v1193
    %v1195 = vsub.f32 %v1162, %v1194
    %v1196 = vsub.f32 %v1163, %v1194
    %v1197 = vsub.f32 %v1164, %v1194
    %v1198 = vsub.f32 %v1165, %v1194
    %v1199 = vsel %vm964, %v1195, -inf
    %v1200 = vrot.slane %v1199, 4
    %v1201 = vmax.f32 %v1199, %v1200
    %v1202 = vrot.slane %v1201, 2
    %v1203 = vmax.f32 %v1201, %v1202
    %v1204 = vrot.slane %v1203, 1
    %v1205 = vmax.f32 %v1203, %v1204
    %v1206 = vsel %vm964, %v1196, -inf
    %v1207 = vrot.slane %v1206, 4
    %v1208 = vmax.f32 %v1206, %v1207
    %v1209 = vrot.slane %v1208, 2
    %v1210 = vmax.f32 %v1208, %v1209
    %v1211 = vrot.slane %v1210, 1
    %v1212 = vmax.f32 %v1210, %v1211
    %v1213 = vsel %vm964, %v1197, -inf
    %v1214 = vrot.slane %v1213, 4
    %v1215 = vmax.f32 %v1213, %v1214
    %v1216 = vrot.slane %v1215, 2
    %v1217 = vmax.f32 %v1215, %v1216
    %v1218 = vrot.slane %v1217, 1
    %v1219 = vmax.f32 %v1217, %v1218
    %v1220 = vsel %vm964, %v1198, -inf
    %v1221 = vrot.slane %v1220, 4
    %v1222 = vmax.f32 %v1220, %v1221
    %v1223 = vrot.slane %v1222, 2
    %v1224 = vmax.f32 %v1222, %v1223
    %v1225 = vrot.slane %v1224, 1
    %v1226 = vmax.f32 %v1224, %v1225
    %v1227 = vsub.f32 %v1195, %v1205
    %v1228 = vsub.f32 %v1196, %v1212
    %v1229 = vsub.f32 %v1197, %v1219
    %v1230 = vsub.f32 %v1198, %v1226
    %v1231 = vmul.f32 %v1227, 1.442695
    %v1232 = vpow.pop %v1231
    %v1233 = vmul.f32 %v1228, 1.442695
    %v1234 = vpow.pop %v1233
    %v1235 = vmul.f32 %v1229, 1.442695
    %v1236 = vpow.pop %v1235
    %v1237 = vmul.f32 %v1230, 1.442695
    %v1238 = vpow.pop %v1237
    %v1239 = vsel %vm964, %v1232, 0.0
    %v1240 = vrot.slane %v1239, 4
    %v1241 = vadd.f32 %v1239, %v1240
    %v1242 = vrot.slane %v1241, 2
    %v1243 = vadd.f32 %v1241, %v1242
    %v1244 = vrot.slane %v1243, 1
    %v1245 = vadd.f32 %v1243, %v1244
    %v1246 = vsel %vm964, %v1234, 0.0
    %v1247 = vrot.slane %v1246, 4
    %v1248 = vadd.f32 %v1246, %v1247
    %v1249 = vrot.slane %v1248, 2
    %v1250 = vadd.f32 %v1248, %v1249
    %v1251 = vrot.slane %v1250, 1
    %v1252 = vadd.f32 %v1250, %v1251
    %v1253 = vsel %vm964, %v1236, 0.0
    %v1254 = vrot.slane %v1253, 4
    %v1255 = vadd.f32 %v1253, %v1254
    %v1256 = vrot.slane %v1255, 2
    %v1257 = vadd.f32 %v1255, %v1256
    %v1258 = vrot.slane %v1257, 1
    %v1259 = vadd.f32 %v1257, %v1258
    %v1260 = vsel %vm964, %v1238, 0.0
    %v1261 = vrot.slane %v1260, 4
    %v1262 = vadd.f32 %v1260, %v1261
    %v1263 = vrot.slane %v1262, 2
    %v1264 = vadd.f32 %v1262, %v1263
    %v1265 = vrot.slane %v1264, 1
    %v1266 = vadd.f32 %v1264, %v1265
    %v1267 = vlog2.pop %v1245
    %v1268 = vmul.f32 %v1267, 0.6931472
    %v1269 = vlog2.pop %v1252
    %v1270 = vmul.f32 %v1269, 0.6931472
    %v1271 = vlog2.pop %v1259
    %v1272 = vmul.f32 %v1271, 0.6931472
    %v1273 = vlog2.pop %v1266
    %v1274 = vmul.f32 %v1273, 0.6931472
    %v1275 = vadd.f32 %v1205, %v1268
    %v1276 = vadd.f32 %v1212, %v1270
    %v1277 = vadd.f32 %v1219, %v1272
    %v1278 = vadd.f32 %v1226, %v1274
    %v1279 = vsub.f32 %v1195, %v1275
    %v1280 = vsub.f32 %v1196, %v1276
    %v1281 = vsub.f32 %v1197, %v1277
    %v1282 = vsub.f32 %v1198, %v1278
    %v1283 = vsel %vm964, %v1279, -inf
    %v1284 = vsel %vm964, %v1280, -inf
    %v1285 = vsel %vm964, %v1281, -inf
    %v1286 = vsel %vm964, %v1282, -inf
    %v1287 = vmax.f32 %v1283, %v1284
    %v1288 = vmax.f32 %v1285, %v1286
    %v1289 = vmax.f32 %v1287, %v1288
    %v1290 = vsub.f32 %v1279, %v1289
    %v1291 = vsub.f32 %v1280, %v1289
    %v1292 = vsub.f32 %v1281, %v1289
    %v1293 = vsub.f32 %v1282, %v1289
    %v1294 = vmul.f32 %v1290, 1.442695
    %v1295 = vpow.pop %v1294
    %v1296 = vmul.f32 %v1291, 1.442695
    %v1297 = vpow.pop %v1296
    %v1298 = vmul.f32 %v1292, 1.442695
    %v1299 = vpow.pop %v1298
    %v1300 = vmul.f32 %v1293, 1.442695
    %v1301 = vpow.pop %v1300
    %v1302 = vsel %vm964, %v1295, 0.0
    %v1303 = vsel %vm964, %v1297, 0.0
    %v1304 = vadd.f32 %v1302, %v1303
    %v1305 = vsel %vm964, %v1299, 0.0
    %v1306 = vadd.f32 %v1304, %v1305
    %v1307 = vsel %vm964, %v1301, 0.0
    %v1308 = vadd.f32 %v1306, %v1307
    %v1309 = vlog2.pop %v1308
    %v1310 = vmul.f32 %v1309, 0.6931472
    %v1311 = vadd.f32 %v1289, %v1310
    %v1312 = vsub.f32 %v1279, %v1311
    %v1313 = vsub.f32 %v1280, %v1311
    %v1314 = vsub.f32 %v1281, %v1311
    %v1315 = vsub.f32 %v1282, %v1311
    %v1316 = vsel %vm964, %v1312, -inf
    %v1317 = vrot.slane %v1316, 4
    %v1318 = vmax.f32 %v1316, %v1317
    %v1319 = vrot.slane %v1318, 2
    %v1320 = vmax.f32 %v1318, %v1319
    %v1321 = vrot.slane %v1320, 1
    %v1322 = vmax.f32 %v1320, %v1321
    %v1323 = vsel %vm964, %v1313, -inf
    %v1324 = vrot.slane %v1323, 4
    %v1325 = vmax.f32 %v1323, %v1324
    %v1326 = vrot.slane %v1325, 2
    %v1327 = vmax.f32 %v1325, %v1326
    %v1328 = vrot.slane %v1327, 1
    %v1329 = vmax.f32 %v1327, %v1328
    %v1330 = vsel %vm964, %v1314, -inf
    %v1331 = vrot.slane %v1330, 4
    %v1332 = vmax.f32 %v1330, %v1331
    %v1333 = vrot.slane %v1332, 2
    %v1334 = vmax.f32 %v1332, %v1333
    %v1335 = vrot.slane %v1334, 1
    %v1336 = vmax.f32 %v1334, %v1335
    %v1337 = vsel %vm964, %v1315, -inf
    %v1338 = vrot.slane %v1337, 4
    %v1339 = vmax.f32 %v1337, %v1338
    %v1340 = vrot.slane %v1339, 2
    %v1341 = vmax.f32 %v1339, %v1340
    %v1342 = vrot.slane %v1341, 1
    %v1343 = vmax.f32 %v1341, %v1342
    %v1344 = vsub.f32 %v1312, %v1322
    %v1345 = vsub.f32 %v1313, %v1329
    %v1346 = vsub.f32 %v1314, %v1336
    %v1347 = vsub.f32 %v1315, %v1343
    %v1348 = vmul.f32 %v1344, 1.442695
    %v1349 = vpow.pop %v1348
    %v1350 = vmul.f32 %v1345, 1.442695
    %v1351 = vpow.pop %v1350
    %v1352 = vmul.f32 %v1346, 1.442695
    %v1353 = vpow.pop %v1352
    %v1354 = vmul.f32 %v1347, 1.442695
    %v1355 = vpow.pop %v1354
    %v1356 = vsel %vm964, %v1349, 0.0
    %v1357 = vrot.slane %v1356, 4
    %v1358 = vadd.f32 %v1356, %v1357
    %v1359 = vrot.slane %v1358, 2
    %v1360 = vadd.f32 %v1358, %v1359
    %v1361 = vrot.slane %v1360, 1
    %v1362 = vadd.f32 %v1360, %v1361
    %v1363 = vsel %vm964, %v1351, 0.0
    %v1364 = vrot.slane %v1363, 4
    %v1365 = vadd.f32 %v1363, %v1364
    %v1366 = vrot.slane %v1365, 2
    %v1367 = vadd.f32 %v1365, %v1366
    %v1368 = vrot.slane %v1367, 1
    %v1369 = vadd.f32 %v1367, %v1368
    %v1370 = vsel %vm964, %v1353, 0.0
    %v1371 = vrot.slane %v1370, 4
    %v1372 = vadd.f32 %v1370, %v1371
    %v1373 = vrot.slane %v1372, 2
    %v1374 = vadd.f32 %v1372, %v1373
    %v1375 = vrot.slane %v1374, 1
    %v1376 = vadd.f32 %v1374, %v1375
    %v1377 = vsel %vm964, %v1355, 0.0
    %v1378 = vrot.slane %v1377, 4
    %v1379 = vadd.f32 %v1377, %v1378
    %v1380 = vrot.slane %v1379, 2
    %v1381 = vadd.f32 %v1379, %v1380
    %v1382 = vrot.slane %v1381, 1
    %v1383 = vadd.f32 %v1381, %v1382
    %v1384 = vlog2.pop %v1362
    %v1385 = vmul.f32 %v1384, 0.6931472
    %v1386 = vlog2.pop %v1369
    %v1387 = vmul.f32 %v1386, 0.6931472
    %v1388 = vlog2.pop %v1376
    %v1389 = vmul.f32 %v1388, 0.6931472
    %v1390 = vlog2.pop %v1383
    %v1391 = vmul.f32 %v1390, 0.6931472
    %v1392 = vadd.f32 %v1322, %v1385
    %v1393 = vadd.f32 %v1329, %v1387
    %v1394 = vadd.f32 %v1336, %v1389
    %v1395 = vadd.f32 %v1343, %v1391
    %v1396 = vsub.f32 %v1312, %v1392
    %v1397 = vsub.f32 %v1313, %v1393
    %v1398 = vsub.f32 %v1314, %v1394
    %v1399 = vsub.f32 %v1315, %v1395
    %v1400 = vsel %vm964, %v1396, -inf
    %v1401 = vsel %vm964, %v1397, -inf
    %v1402 = vsel %vm964, %v1398, -inf
    %v1403 = vsel %vm964, %v1399, -inf
    %v1404 = vmax.f32 %v1400, %v1401
    %v1405 = vmax.f32 %v1402, %v1403
    %v1406 = vmax.f32 %v1404, %v1405
    %v1407 = vsub.f32 %v1396, %v1406
    %v1408 = vsub.f32 %v1397, %v1406
    %v1409 = vsub.f32 %v1398, %v1406
    %v1410 = vsub.f32 %v1399, %v1406
    %v1411 = vmul.f32 %v1407, 1.442695
    %v1412 = vpow.pop %v1411
    %v1413 = vmul.f32 %v1408, 1.442695
    %v1414 = vpow.pop %v1413
    %v1415 = vmul.f32 %v1409, 1.442695
    %v1416 = vpow.pop %v1415
    %v1417 = vmul.f32 %v1410, 1.442695
    %v1418 = vpow.pop %v1417
    %v1419 = vsel %vm964, %v1412, 0.0
    %v1420 = vsel %vm964, %v1414, 0.0
    %v1421 = vadd.f32 %v1419, %v1420
    %v1422 = vsel %vm964, %v1416, 0.0
    %v1423 = vadd.f32 %v1421, %v1422
    %v1424 = vsel %vm964, %v1418, 0.0
    %v1425 = vadd.f32 %v1423, %v1424
    %v1426 = vlog2.pop %v1425
    %v1427 = vmul.f32 %v1426, 0.6931472
    %v1428 = vadd.f32 %v1406, %v1427
    %v1429 = vsub.f32 %v1396, %v1428
    %v1430 = vsub.f32 %v1397, %v1428
    %v1431 = vsub.f32 %v1398, %v1428
    %v1432 = vsub.f32 %v1399, %v1428
    %v1433 = vsel %vm964, %v1429, -inf
    %v1434 = vrot.slane %v1433, 4
    %v1435 = vmax.f32 %v1433, %v1434
    %v1436 = vrot.slane %v1435, 2
    %v1437 = vmax.f32 %v1435, %v1436
    %v1438 = vrot.slane %v1437, 1
    %v1439 = vmax.f32 %v1437, %v1438
    %v1440 = vsel %vm964, %v1430, -inf
    %v1441 = vrot.slane %v1440, 4
    %v1442 = vmax.f32 %v1440, %v1441
    %v1443 = vrot.slane %v1442, 2
    %v1444 = vmax.f32 %v1442, %v1443
    %v1445 = vrot.slane %v1444, 1
    %v1446 = vmax.f32 %v1444, %v1445
    %v1447 = vsel %vm964, %v1431, -inf
    %v1448 = vrot.slane %v1447, 4
    %v1449 = vmax.f32 %v1447, %v1448
    %v1450 = vrot.slane %v1449, 2
    %v1451 = vmax.f32 %v1449, %v1450
    %v1452 = vrot.slane %v1451, 1
    %v1453 = vmax.f32 %v1451, %v1452
    %v1454 = vsel %vm964, %v1432, -inf
    %v1455 = vrot.slane %v1454, 4
    %v1456 = vmax.f32 %v1454, %v1455
    %v1457 = vrot.slane %v1456, 2
    %v1458 = vmax.f32 %v1456, %v1457
    %v1459 = vrot.slane %v1458, 1
    %v1460 = vmax.f32 %v1458, %v1459
    %v1461 = vsub.f32 %v1429, %v1439
    %v1462 = vsub.f32 %v1430, %v1446
    %v1463 = vsub.f32 %v1431, %v1453
    %v1464 = vsub.f32 %v1432, %v1460
    %v1465 = vmul.f32 %v1461, 1.442695
    %v1466 = vpow.pop %v1465
    %v1467 = vmul.f32 %v1462, 1.442695
    %v1468 = vpow.pop %v1467
    %v1469 = vmul.f32 %v1463, 1.442695
    %v1470 = vpow.pop %v1469
    %v1471 = vmul.f32 %v1464, 1.442695
    %v1472 = vpow.pop %v1471
    %v1473 = vsel %vm964, %v1466, 0.0
    %v1474 = vrot.slane %v1473, 4
    %v1475 = vadd.f32 %v1473, %v1474
    %v1476 = vrot.slane %v1475, 2
    %v1477 = vadd.f32 %v1475, %v1476
    %v1478 = vrot.slane %v1477, 1
    %v1479 = vadd.f32 %v1477, %v1478
    %v1480 = vsel %vm964, %v1468, 0.0
    %v1481 = vrot.slane %v1480, 4
    %v1482 = vadd.f32 %v1480, %v1481
    %v1483 = vrot.slane %v1482, 2
    %v1484 = vadd.f32 %v1482, %v1483
    %v1485 = vrot.slane %v1484, 1
    %v1486 = vadd.f32 %v1484, %v1485
    %v1487 = vsel %vm964, %v1470, 0.0
    %v1488 = vrot.slane %v1487, 4
    %v1489 = vadd.f32 %v1487, %v1488
    %v1490 = vrot.slane %v1489, 2
    %v1491 = vadd.f32 %v1489, %v1490
    %v1492 = vrot.slane %v1491, 1
    %v1493 = vadd.f32 %v1491, %v1492
    %v1494 = vsel %vm964, %v1472, 0.0
    %v1495 = vrot.slane %v1494, 4
    %v1496 = vadd.f32 %v1494, %v1495
    %v1497 = vrot.slane %v1496, 2
    %v1498 = vadd.f32 %v1496, %v1497
    %v1499 = vrot.slane %v1498, 1
    %v1500 = vadd.f32 %v1498, %v1499
    %v1501 = vlog2.pop %v1479
    %v1502 = vmul.f32 %v1501, 0.6931472
    %v1503 = vlog2.pop %v1486
    %v1504 = vmul.f32 %v1503, 0.6931472
    %v1505 = vlog2.pop %v1493
    %v1506 = vmul.f32 %v1505, 0.6931472
    %v1507 = vlog2.pop %v1500
    %v1508 = vmul.f32 %v1507, 0.6931472
    %v1509 = vadd.f32 %v1439, %v1502
    %v1510 = vadd.f32 %v1446, %v1504
    %v1511 = vadd.f32 %v1453, %v1506
    %v1512 = vadd.f32 %v1460, %v1508
    %v1513 = vsub.f32 %v1429, %v1509
    %v1514 = vsub.f32 %v1430, %v1510
    %v1515 = vsub.f32 %v1431, %v1511
    %v1516 = vsub.f32 %v1432, %v1512
    %v1517 = vsel %vm964, %v1513, -inf
    %v1518 = vsel %vm964, %v1514, -inf
    %v1519 = vsel %vm964, %v1515, -inf
    %v1520 = vsel %vm964, %v1516, -inf
    %v1521 = vmax.f32 %v1517, %v1518
    %v1522 = vmax.f32 %v1519, %v1520
    %v1523 = vmax.f32 %v1521, %v1522
    %v1524 = vsub.f32 %v1513, %v1523
    %v1525 = vsub.f32 %v1514, %v1523
    %v1526 = vsub.f32 %v1515, %v1523
    %v1527 = vsub.f32 %v1516, %v1523
    %v1528 = vmul.f32 %v1524, 1.442695
    %v1529 = vpow.pop %v1528
    %v1530 = vmul.f32 %v1525, 1.442695
    %v1531 = vpow.pop %v1530
    %v1532 = vmul.f32 %v1526, 1.442695
    %v1533 = vpow.pop %v1532
    %v1534 = vmul.f32 %v1527, 1.442695
    %v1535 = vpow.pop %v1534
    %v1536 = vsel %vm964, %v1529, 0.0
    %v1537 = vsel %vm964, %v1531, 0.0
    %v1538 = vadd.f32 %v1536, %v1537
    %v1539 = vsel %vm964, %v1533, 0.0
    %v1540 = vadd.f32 %v1538, %v1539
    %v1541 = vsel %vm964, %v1535, 0.0
    %v1542 = vadd.f32 %v1540, %v1541
    %v1543 = vlog2.pop %v1542
    %v1544 = vmul.f32 %v1543, 0.6931472
    %v1545 = vadd.f32 %v1523, %v1544
    %v1546 = vsub.f32 %v1513, %v1545
    %v1547 = vsub.f32 %v1514, %v1545
    %v1548 = vsub.f32 %v1515, %v1545
    %v1549 = vsub.f32 %v1516, %v1545
    %v1550 = vsel %vm964, %v1546, -inf
    %v1551 = vrot.slane %v1550, 4
    %v1552 = vmax.f32 %v1550, %v1551
    %v1553 = vrot.slane %v1552, 2
    %v1554 = vmax.f32 %v1552, %v1553
    %v1555 = vrot.slane %v1554, 1
    %v1556 = vmax.f32 %v1554, %v1555
    %v1557 = vsel %vm964, %v1547, -inf
    %v1558 = vrot.slane %v1557, 4
    %v1559 = vmax.f32 %v1557, %v1558
    %v1560 = vrot.slane %v1559, 2
    %v1561 = vmax.f32 %v1559, %v1560
    %v1562 = vrot.slane %v1561, 1
    %v1563 = vmax.f32 %v1561, %v1562
    %v1564 = vsel %vm964, %v1548, -inf
    %v1565 = vrot.slane %v1564, 4
    %v1566 = vmax.f32 %v1564, %v1565
    %v1567 = vrot.slane %v1566, 2
    %v1568 = vmax.f32 %v1566, %v1567
    %v1569 = vrot.slane %v1568, 1
    %v1570 = vmax.f32 %v1568, %v1569
    %v1571 = vsel %vm964, %v1549, -inf
    %v1572 = vrot.slane %v1571, 4
    %v1573 = vmax.f32 %v1571, %v1572
    %v1574 = vrot.slane %v1573, 2
    %v1575 = vmax.f32 %v1573, %v1574
    %v1576 = vrot.slane %v1575, 1
    %v1577 = vmax.f32 %v1575, %v1576
    %v1578 = vsub.f32 %v1546, %v1556
    %v1579 = vsub.f32 %v1547, %v1563
    %v1580 = vsub.f32 %v1548, %v1570
    %v1581 = vsub.f32 %v1549, %v1577
    %v1582 = vmul.f32 %v1578, 1.442695
    %v1583 = vpow.pop %v1582
    %v1584 = vmul.f32 %v1579, 1.442695
    %v1585 = vpow.pop %v1584
    %v1586 = vmul.f32 %v1580, 1.442695
    %v1587 = vpow.pop %v1586
    %v1588 = vmul.f32 %v1581, 1.442695
    %v1589 = vpow.pop %v1588
    %v1590 = vsel %vm964, %v1583, 0.0
    %v1591 = vrot.slane %v1590, 4
    %v1592 = vadd.f32 %v1590, %v1591
    %v1593 = vrot.slane %v1592, 2
    %v1594 = vadd.f32 %v1592, %v1593
    %v1595 = vrot.slane %v1594, 1
    %v1596 = vadd.f32 %v1594, %v1595
    %v1597 = vsel %vm964, %v1585, 0.0
    %v1598 = vrot.slane %v1597, 4
    %v1599 = vadd.f32 %v1597, %v1598
    %v1600 = vrot.slane %v1599, 2
    %v1601 = vadd.f32 %v1599, %v1600
    %v1602 = vrot.slane %v1601, 1
    %v1603 = vadd.f32 %v1601, %v1602
    %v1604 = vsel %vm964, %v1587, 0.0
    %v1605 = vrot.slane %v1604, 4
    %v1606 = vadd.f32 %v1604, %v1605
    %v1607 = vrot.slane %v1606, 2
    %v1608 = vadd.f32 %v1606, %v1607
    %v1609 = vrot.slane %v1608, 1
    %v1610 = vadd.f32 %v1608, %v1609
    %v1611 = vsel %vm964, %v1589, 0.0
    %v1612 = vrot.slane %v1611, 4
    %v1613 = vadd.f32 %v1611, %v1612
    %v1614 = vrot.slane %v1613, 2
    %v1615 = vadd.f32 %v1613, %v1614
    %v1616 = vrot.slane %v1615, 1
    %v1617 = vadd.f32 %v1615, %v1616
    %v1618 = vlog2.pop %v1596
    %v1619 = vmul.f32 %v1618, 0.6931472
    %v1620 = vlog2.pop %v1603
    %v1621 = vmul.f32 %v1620, 0.6931472
    %v1622 = vlog2.pop %v1610
    %v1623 = vmul.f32 %v1622, 0.6931472
    %v1624 = vlog2.pop %v1617
    %v1625 = vmul.f32 %v1624, 0.6931472
    %v1626 = vadd.f32 %v1556, %v1619
    %v1627 = vadd.f32 %v1563, %v1621
    %v1628 = vadd.f32 %v1570, %v1623
    %v1629 = vadd.f32 %v1577, %v1625
    %v1630 = vsub.f32 %v1546, %v1626
    %v1631 = vsub.f32 %v1547, %v1627
    %v1632 = vsub.f32 %v1548, %v1628
    %v1633 = vsub.f32 %v1549, %v1629
    %v1634 = vsel %vm964, %v1630, -inf
    %v1635 = vsel %vm964, %v1631, -inf
    %v1636 = vsel %vm964, %v1632, -inf
    %v1637 = vsel %vm964, %v1633, -inf
    %v1638 = vmax.f32 %v1634, %v1635
    %v1639 = vmax.f32 %v1636, %v1637
    %v1640 = vmax.f32 %v1638, %v1639
    %v1641 = vsub.f32 %v1630, %v1640
    %v1642 = vsub.f32 %v1631, %v1640
    %v1643 = vsub.f32 %v1632, %v1640
    %v1644 = vsub.f32 %v1633, %v1640
    %v1645 = vmul.f32 %v1641, 1.442695
    %v1646 = vpow.pop %v1645
    %v1647 = vmul.f32 %v1642, 1.442695
    %v1648 = vpow.pop %v1647
    %v1649 = vmul.f32 %v1643, 1.442695
    %v1650 = vpow.pop %v1649
    %v1651 = vmul.f32 %v1644, 1.442695
    %v1652 = vpow.pop %v1651
    %v1653 = vsel %vm964, %v1646, 0.0
    %v1654 = vsel %vm964, %v1648, 0.0
    %v1655 = vadd.f32 %v1653, %v1654
    %v1656 = vsel %vm964, %v1650, 0.0
    %v1657 = vadd.f32 %v1655, %v1656
    %v1658 = vsel %vm964, %v1652, 0.0
    %v1659 = vadd.f32 %v1657, %v1658
    %v1660 = vlog2.pop %v1659
    %v1661 = vmul.f32 %v1660, 0.6931472
    %v1662 = vadd.f32 %v1640, %v1661
    %v1663 = vsub.f32 %v1630, %v1662
    %v1664 = vsub.f32 %v1631, %v1662
    %v1665 = vsub.f32 %v1632, %v1662
    %v1666 = vsub.f32 %v1633, %v1662
    %v1667 = vsel %vm964, %v1663, -inf
    %v1668 = vrot.slane %v1667, 4
    %v1669 = vmax.f32 %v1667, %v1668
    %v1670 = vrot.slane %v1669, 2
    %v1671 = vmax.f32 %v1669, %v1670
    %v1672 = vrot.slane %v1671, 1
    %v1673 = vmax.f32 %v1671, %v1672
    %v1674 = vsel %vm964, %v1664, -inf
    %v1675 = vrot.slane %v1674, 4
    %v1676 = vmax.f32 %v1674, %v1675
    %v1677 = vrot.slane %v1676, 2
    %v1678 = vmax.f32 %v1676, %v1677
    %v1679 = vrot.slane %v1678, 1
    %v1680 = vmax.f32 %v1678, %v1679
    %v1681 = vsel %vm964, %v1665, -inf
    %v1682 = vrot.slane %v1681, 4
    %v1683 = vmax.f32 %v1681, %v1682
    %v1684 = vrot.slane %v1683, 2
    %v1685 = vmax.f32 %v1683, %v1684
    %v1686 = vrot.slane %v1685, 1
    %v1687 = vmax.f32 %v1685, %v1686
    %v1688 = vsel %vm964, %v1666, -inf
    %v1689 = vrot.slane %v1688, 4
    %v1690 = vmax.f32 %v1688, %v1689
    %v1691 = vrot.slane %v1690, 2
    %v1692 = vmax.f32 %v1690, %v1691
    %v1693 = vrot.slane %v1692, 1
    %v1694 = vmax.f32 %v1692, %v1693
    %v1695 = vsub.f32 %v1663, %v1673
    %v1696 = vsub.f32 %v1664, %v1680
    %v1697 = vsub.f32 %v1665, %v1687
    %v1698 = vsub.f32 %v1666, %v1694
    %v1699 = vmul.f32 %v1695, 1.442695
    %v1700 = vpow.pop %v1699
    %v1701 = vmul.f32 %v1696, 1.442695
    %v1702 = vpow.pop %v1701
    %v1703 = vmul.f32 %v1697, 1.442695
    %v1704 = vpow.pop %v1703
    %v1705 = vmul.f32 %v1698, 1.442695
    %v1706 = vpow.pop %v1705
    %v1707 = vsel %vm964, %v1700, 0.0
    %v1708 = vrot.slane %v1707, 4
    %v1709 = vadd.f32 %v1707, %v1708
    %v1710 = vrot.slane %v1709, 2
    %v1711 = vadd.f32 %v1709, %v1710
    %v1712 = vrot.slane %v1711, 1
    %v1713 = vadd.f32 %v1711, %v1712
    %v1714 = vsel %vm964, %v1702, 0.0
    %v1715 = vrot.slane %v1714, 4
    %v1716 = vadd.f32 %v1714, %v1715
    %v1717 = vrot.slane %v1716, 2
    %v1718 = vadd.f32 %v1716, %v1717
    %v1719 = vrot.slane %v1718, 1
    %v1720 = vadd.f32 %v1718, %v1719
    %v1721 = vsel %vm964, %v1704, 0.0
    %v1722 = vrot.slane %v1721, 4
    %v1723 = vadd.f32 %v1721, %v1722
    %v1724 = vrot.slane %v1723, 2
    %v1725 = vadd.f32 %v1723, %v1724
    %v1726 = vrot.slane %v1725, 1
    %v1727 = vadd.f32 %v1725, %v1726
    %v1728 = vsel %vm964, %v1706, 0.0
    %v1729 = vrot.slane %v1728, 4
    %v1730 = vadd.f32 %v1728, %v1729
    %v1731 = vrot.slane %v1730, 2
    %v1732 = vadd.f32 %v1730, %v1731
    %v1733 = vrot.slane %v1732, 1
    %v1734 = vadd.f32 %v1732, %v1733
    %v1735 = vlog2.pop %v1713
    %v1736 = vmul.f32 %v1735, 0.6931472
    %v1737 = vlog2.pop %v1720
    %v1738 = vmul.f32 %v1737, 0.6931472
    %v1739 = vlog2.pop %v1727
    %v1740 = vmul.f32 %v1739, 0.6931472
    %v1741 = vlog2.pop %v1734
    %v1742 = vmul.f32 %v1741, 0.6931472
    %v1743 = vadd.f32 %v1673, %v1736
    %v1744 = vadd.f32 %v1680, %v1738
    %v1745 = vadd.f32 %v1687, %v1740
    %v1746 = vadd.f32 %v1694, %v1742
    %v1747 = vsub.f32 %v1663, %v1743
    %v1748 = vsub.f32 %v1664, %v1744
    %v1749 = vsub.f32 %v1665, %v1745
    %v1750 = vsub.f32 %v1666, %v1746
    %v1751 = vsel %vm964, %v1747, -inf
    %v1752 = vsel %vm964, %v1748, -inf
    %v1753 = vsel %vm964, %v1749, -inf
    %v1754 = vsel %vm964, %v1750, -inf
    %v1755 = vmax.f32 %v1751, %v1752
    %v1756 = vmax.f32 %v1753, %v1754
    %v1757 = vmax.f32 %v1755, %v1756
    %v1758 = vsub.f32 %v1747, %v1757
    %v1759 = vsub.f32 %v1748, %v1757
    %v1760 = vsub.f32 %v1749, %v1757
    %v1761 = vsub.f32 %v1750, %v1757
    %v1762 = vmul.f32 %v1758, 1.442695
    %v1763 = vpow.pop %v1762
    %v1764 = vmul.f32 %v1759, 1.442695
    %v1765 = vpow.pop %v1764
    %v1766 = vmul.f32 %v1760, 1.442695
    %v1767 = vpow.pop %v1766
    %v1768 = vmul.f32 %v1761, 1.442695
    %v1769 = vpow.pop %v1768
    %v1770 = vsel %vm964, %v1763, 0.0
    %v1771 = vsel %vm964, %v1765, 0.0
    %v1772 = vadd.f32 %v1770, %v1771
    %v1773 = vsel %vm964, %v1767, 0.0
    %v1774 = vadd.f32 %v1772, %v1773
    %v1775 = vsel %vm964, %v1769, 0.0
    %v1776 = vadd.f32 %v1774, %v1775
    %v1777 = vlog2.pop %v1776
    %v1778 = vmul.f32 %v1777, 0.6931472
    %v1779 = vadd.f32 %v1757, %v1778
    %v1780 = vsub.f32 %v1747, %v1779
    %v1781 = vsub.f32 %v1748, %v1779
    %v1782 = vsub.f32 %v1749, %v1779
    %v1783 = vsub.f32 %v1750, %v1779
    %v1784 = vsel %vm964, %v1780, -inf
    %v1785 = vrot.slane %v1784, 4
    %v1786 = vmax.f32 %v1784, %v1785
    %v1787 = vrot.slane %v1786, 2
    %v1788 = vmax.f32 %v1786, %v1787
    %v1789 = vrot.slane %v1788, 1
    %v1790 = vmax.f32 %v1788, %v1789
    %v1791 = vsel %vm964, %v1781, -inf
    %v1792 = vrot.slane %v1791, 4
    %v1793 = vmax.f32 %v1791, %v1792
    %v1794 = vrot.slane %v1793, 2
    %v1795 = vmax.f32 %v1793, %v1794
    %v1796 = vrot.slane %v1795, 1
    %v1797 = vmax.f32 %v1795, %v1796
    %v1798 = vsel %vm964, %v1782, -inf
    %v1799 = vrot.slane %v1798, 4
    %v1800 = vmax.f32 %v1798, %v1799
    %v1801 = vrot.slane %v1800, 2
    %v1802 = vmax.f32 %v1800, %v1801
    %v1803 = vrot.slane %v1802, 1
    %v1804 = vmax.f32 %v1802, %v1803
    %v1805 = vsel %vm964, %v1783, -inf
    %v1806 = vrot.slane %v1805, 4
    %v1807 = vmax.f32 %v1805, %v1806
    %v1808 = vrot.slane %v1807, 2
    %v1809 = vmax.f32 %v1807, %v1808
    %v1810 = vrot.slane %v1809, 1
    %v1811 = vmax.f32 %v1809, %v1810
    %v1812 = vsub.f32 %v1780, %v1790
    %v1813 = vsub.f32 %v1781, %v1797
    %v1814 = vsub.f32 %v1782, %v1804
    %v1815 = vsub.f32 %v1783, %v1811
    %v1816 = vmul.f32 %v1812, 1.442695
    %v1817 = vpow.pop %v1816
    %v1818 = vmul.f32 %v1813, 1.442695
    %v1819 = vpow.pop %v1818
    %v1820 = vmul.f32 %v1814, 1.442695
    %v1821 = vpow.pop %v1820
    %v1822 = vmul.f32 %v1815, 1.442695
    %v1823 = vpow.pop %v1822
    %v1824 = vsel %vm964, %v1817, 0.0
    %v1825 = vrot.slane %v1824, 4
    %v1826 = vadd.f32 %v1824, %v1825
    %v1827 = vrot.slane %v1826, 2
    %v1828 = vadd.f32 %v1826, %v1827
    %v1829 = vrot.slane %v1828, 1
    %v1830 = vadd.f32 %v1828, %v1829
    %v1831 = vsel %vm964, %v1819, 0.0
    %v1832 = vrot.slane %v1831, 4
    %v1833 = vadd.f32 %v1831, %v1832
    %v1834 = vrot.slane %v1833, 2
    %v1835 = vadd.f32 %v1833, %v1834
    %v1836 = vrot.slane %v1835, 1
    %v1837 = vadd.f32 %v1835, %v1836
    %v1838 = vsel %vm964, %v1821, 0.0
    %v1839 = vrot.slane %v1838, 4
    %v1840 = vadd.f32 %v1838, %v1839
    %v1841 = vrot.slane %v1840, 2
    %v1842 = vadd.f32 %v1840, %v1841
    %v1843 = vrot.slane %v1842, 1
    %v1844 = vadd.f32 %v1842, %v1843
    %v1845 = vsel %vm964, %v1823, 0.0
    %v1846 = vrot.slane %v1845, 4
    %v1847 = vadd.f32 %v1845, %v1846
    %v1848 = vrot.slane %v1847, 2
    %v1849 = vadd.f32 %v1847, %v1848
    %v1850 = vrot.slane %v1849, 1
    %v1851 = vadd.f32 %v1849, %v1850
    %v1852 = vlog2.pop %v1830
    %v1853 = vmul.f32 %v1852, 0.6931472
    %v1854 = vlog2.pop %v1837
    %v1855 = vmul.f32 %v1854, 0.6931472
    %v1856 = vlog2.pop %v1844
    %v1857 = vmul.f32 %v1856, 0.6931472
    %v1858 = vlog2.pop %v1851
    %v1859 = vmul.f32 %v1858, 0.6931472
    %v1860 = vadd.f32 %v1790, %v1853
    %v1861 = vadd.f32 %v1797, %v1855
    %v1862 = vadd.f32 %v1804, %v1857
    %v1863 = vadd.f32 %v1811, %v1859
    %v1864 = vsub.f32 %v1780, %v1860
    %v1865 = vsub.f32 %v1781, %v1861
    %v1866 = vsub.f32 %v1782, %v1862
    %v1867 = vsub.f32 %v1783, %v1863
    %v1868 = vsel %vm964, %v1864, -inf
    %v1869 = vsel %vm964, %v1865, -inf
    %v1870 = vsel %vm964, %v1866, -inf
    %v1871 = vsel %vm964, %v1867, -inf
    %v1872 = vmax.f32 %v1868, %v1869
    %v1873 = vmax.f32 %v1870, %v1871
    %v1874 = vmax.f32 %v1872, %v1873
    %v1875 = vsub.f32 %v1864, %v1874
    %v1876 = vsub.f32 %v1865, %v1874
    %v1877 = vsub.f32 %v1866, %v1874
    %v1878 = vsub.f32 %v1867, %v1874
    %v1879 = vmul.f32 %v1875, 1.442695
    %v1880 = vpow.pop %v1879
    %v1881 = vmul.f32 %v1876, 1.442695
    %v1882 = vpow.pop %v1881
    %v1883 = vmul.f32 %v1877, 1.442695
    %v1884 = vpow.pop %v1883
    %v1885 = vmul.f32 %v1878, 1.442695
    %v1886 = vpow.pop %v1885
    %v1887 = vsel %vm964, %v1880, 0.0
    %v1888 = vsel %vm964, %v1882, 0.0
    %v1889 = vadd.f32 %v1887, %v1888
    %v1890 = vsel %vm964, %v1884, 0.0
    %v1891 = vadd.f32 %v1889, %v1890
    %v1892 = vsel %vm964, %v1886, 0.0
    %v1893 = vadd.f32 %v1891, %v1892
    %v1894 = vlog2.pop %v1893
    %v1895 = vmul.f32 %v1894, 0.6931472
    %v1896 = vadd.f32 %v1874, %v1895
    %v1897 = vsub.f32 %v1864, %v1896
    %v1898 = vsub.f32 %v1865, %v1896
    %v1899 = vsub.f32 %v1866, %v1896
    %v1900 = vsub.f32 %v1867, %v1896
    %v1901 = vsel %vm964, %v1897, -inf
    %v1902 = vrot.slane %v1901, 4
    %v1903 = vmax.f32 %v1901, %v1902
    %v1904 = vrot.slane %v1903, 2
    %v1905 = vmax.f32 %v1903, %v1904
    %v1906 = vrot.slane %v1905, 1
    %v1907 = vmax.f32 %v1905, %v1906
    %v1908 = vsel %vm964, %v1898, -inf
    %v1909 = vrot.slane %v1908, 4
    %v1910 = vmax.f32 %v1908, %v1909
    %v1911 = vrot.slane %v1910, 2
    %v1912 = vmax.f32 %v1910, %v1911
    %v1913 = vrot.slane %v1912, 1
    %v1914 = vmax.f32 %v1912, %v1913
    %v1915 = vsel %vm964, %v1899, -inf
    %v1916 = vrot.slane %v1915, 4
    %v1917 = vmax.f32 %v1915, %v1916
    %v1918 = vrot.slane %v1917, 2
    %v1919 = vmax.f32 %v1917, %v1918
    %v1920 = vrot.slane %v1919, 1
    %v1921 = vmax.f32 %v1919, %v1920
    %v1922 = vsel %vm964, %v1900, -inf
    %v1923 = vrot.slane %v1922, 4
    %v1924 = vmax.f32 %v1922, %v1923
    %v1925 = vrot.slane %v1924, 2
    %v1926 = vmax.f32 %v1924, %v1925
    %v1927 = vrot.slane %v1926, 1
    %v1928 = vmax.f32 %v1926, %v1927
    %v1929 = vsub.f32 %v1897, %v1907
    %v1930 = vsub.f32 %v1898, %v1914
    %v1931 = vsub.f32 %v1899, %v1921
    %v1932 = vsub.f32 %v1900, %v1928
    %v1933 = vmul.f32 %v1929, 1.442695
    %v1934 = vpow.pop %v1933
    %v1935 = vmul.f32 %v1930, 1.442695
    %v1936 = vpow.pop %v1935
    %v1937 = vmul.f32 %v1931, 1.442695
    %v1938 = vpow.pop %v1937
    %v1939 = vmul.f32 %v1932, 1.442695
    %v1940 = vpow.pop %v1939
    %v1941 = vsel %vm964, %v1934, 0.0
    %v1942 = vrot.slane %v1941, 4
    %v1943 = vadd.f32 %v1941, %v1942
    %v1944 = vrot.slane %v1943, 2
    %v1945 = vadd.f32 %v1943, %v1944
    %v1946 = vrot.slane %v1945, 1
    %v1947 = vadd.f32 %v1945, %v1946
    %v1948 = vsel %vm964, %v1936, 0.0
    %v1949 = vrot.slane %v1948, 4
    %v1950 = vadd.f32 %v1948, %v1949
    %v1951 = vrot.slane %v1950, 2
    %v1952 = vadd.f32 %v1950, %v1951
    %v1953 = vrot.slane %v1952, 1
    %v1954 = vadd.f32 %v1952, %v1953
    %v1955 = vsel %vm964, %v1938, 0.0
    %v1956 = vrot.slane %v1955, 4
    %v1957 = vadd.f32 %v1955, %v1956
    %v1958 = vrot.slane %v1957, 2
    %v1959 = vadd.f32 %v1957, %v1958
    %v1960 = vrot.slane %v1959, 1
    %v1961 = vadd.f32 %v1959, %v1960
    %v1962 = vsel %vm964, %v1940, 0.0
    %v1963 = vrot.slane %v1962, 4
    %v1964 = vadd.f32 %v1962, %v1963
    %v1965 = vrot.slane %v1964, 2
    %v1966 = vadd.f32 %v1964, %v1965
    %v1967 = vrot.slane %v1966, 1
    %v1968 = vadd.f32 %v1966, %v1967
    %v1969 = vlog2.pop %v1947
    %v1970 = vmul.f32 %v1969, 0.6931472
    %v1971 = vlog2.pop %v1954
    %v1972 = vmul.f32 %v1971, 0.6931472
    %v1973 = vlog2.pop %v1961
    %v1974 = vmul.f32 %v1973, 0.6931472
    %v1975 = vlog2.pop %v1968
    %v1976 = vmul.f32 %v1975, 0.6931472
    %v1977 = vadd.f32 %v1907, %v1970
    %v1978 = vadd.f32 %v1914, %v1972
    %v1979 = vadd.f32 %v1921, %v1974
    %v1980 = vadd.f32 %v1928, %v1976
    %v1981 = vsub.f32 %v1897, %v1977
    %v1982 = vsub.f32 %v1898, %v1978
    %v1983 = vsub.f32 %v1899, %v1979
    %v1984 = vsub.f32 %v1900, %v1980
    %v1985 = vsel %vm964, %v1981, -inf
    %v1986 = vsel %vm964, %v1982, -inf
    %v1987 = vsel %vm964, %v1983, -inf
    %v1988 = vsel %vm964, %v1984, -inf
    %v1989 = vmax.f32 %v1985, %v1986
    %v1990 = vmax.f32 %v1987, %v1988
    %v1991 = vmax.f32 %v1989, %v1990
    %v1992 = vsub.f32 %v1981, %v1991
    %v1993 = vsub.f32 %v1982, %v1991
    %v1994 = vsub.f32 %v1983, %v1991
    %v1995 = vsub.f32 %v1984, %v1991
    %v1996 = vmul.f32 %v1992, 1.442695
    %v1997 = vpow.pop %v1996
    %v1998 = vmul.f32 %v1993, 1.442695
    %v1999 = vpow.pop %v1998
    %v2000 = vmul.f32 %v1994, 1.442695
    %v2001 = vpow.pop %v2000
    %v2002 = vmul.f32 %v1995, 1.442695
    %v2003 = vpow.pop %v2002
    %v2004 = vsel %vm964, %v1997, 0.0
    %v2005 = vsel %vm964, %v1999, 0.0
    %v2006 = vadd.f32 %v2004, %v2005
    %v2007 = vsel %vm964, %v2001, 0.0
    %v2008 = vadd.f32 %v2006, %v2007
    %v2009 = vsel %vm964, %v2003, 0.0
    %v2010 = vadd.f32 %v2008, %v2009
    %v2011 = vlog2.pop %v2010
    %v2012 = vmul.f32 %v2011, 0.6931472
    %v2013 = vadd.f32 %v1991, %v2012
    %v2014 = vsub.f32 %v1981, %v2013
    %v2015 = vsub.f32 %v1982, %v2013
    %v2016 = vsub.f32 %v1983, %v2013
    %v2017 = vsub.f32 %v1984, %v2013
    %v2018 = vsel %vm964, %v2014, -inf
    %v2019 = vrot.slane %v2018, 4
    %v2020 = vmax.f32 %v2018, %v2019
    %v2021 = vrot.slane %v2020, 2
    %v2022 = vmax.f32 %v2020, %v2021
    %v2023 = vrot.slane %v2022, 1
    %v2024 = vmax.f32 %v2022, %v2023
    %v2025 = vsel %vm964, %v2015, -inf
    %v2026 = vrot.slane %v2025, 4
    %v2027 = vmax.f32 %v2025, %v2026
    %v2028 = vrot.slane %v2027, 2
    %v2029 = vmax.f32 %v2027, %v2028
    %v2030 = vrot.slane %v2029, 1
    %v2031 = vmax.f32 %v2029, %v2030
    %v2032 = vsel %vm964, %v2016, -inf
    %v2033 = vrot.slane %v2032, 4
    %v2034 = vmax.f32 %v2032, %v2033
    %v2035 = vrot.slane %v2034, 2
    %v2036 = vmax.f32 %v2034, %v2035
    %v2037 = vrot.slane %v2036, 1
    %v2038 = vmax.f32 %v2036, %v2037
    %v2039 = vsel %vm964, %v2017, -inf
    %v2040 = vrot.slane %v2039, 4
    %v2041 = vmax.f32 %v2039, %v2040
    %v2042 = vrot.slane %v2041, 2
    %v2043 = vmax.f32 %v2041, %v2042
    %v2044 = vrot.slane %v2043, 1
    %v2045 = vmax.f32 %v2043, %v2044
    %v2046 = vsub.f32 %v2014, %v2024
    %v2047 = vsub.f32 %v2015, %v2031
    %v2048 = vsub.f32 %v2016, %v2038
    %v2049 = vsub.f32 %v2017, %v2045
    %v2050 = vmul.f32 %v2046, 1.442695
    %v2051 = vpow.pop %v2050
    %v2052 = vmul.f32 %v2047, 1.442695
    %v2053 = vpow.pop %v2052
    %v2054 = vmul.f32 %v2048, 1.442695
    %v2055 = vpow.pop %v2054
    %v2056 = vmul.f32 %v2049, 1.442695
    %v2057 = vpow.pop %v2056
    %v2058 = vsel %vm964, %v2051, 0.0
    %v2059 = vrot.slane %v2058, 4
    %v2060 = vadd.f32 %v2058, %v2059
    %v2061 = vrot.slane %v2060, 2
    %v2062 = vadd.f32 %v2060, %v2061
    %v2063 = vrot.slane %v2062, 1
    %v2064 = vadd.f32 %v2062, %v2063
    %v2065 = vsel %vm964, %v2053, 0.0
    %v2066 = vrot.slane %v2065, 4
    %v2067 = vadd.f32 %v2065, %v2066
    %v2068 = vrot.slane %v2067, 2
    %v2069 = vadd.f32 %v2067, %v2068
    %v2070 = vrot.slane %v2069, 1
    %v2071 = vadd.f32 %v2069, %v2070
    %v2072 = vsel %vm964, %v2055, 0.0
    %v2073 = vrot.slane %v2072, 4
    %v2074 = vadd.f32 %v2072, %v2073
    %v2075 = vrot.slane %v2074, 2
    %v2076 = vadd.f32 %v2074, %v2075
    %v2077 = vrot.slane %v2076, 1
    %v2078 = vadd.f32 %v2076, %v2077
    %v2079 = vsel %vm964, %v2057, 0.0
    %v2080 = vrot.slane %v2079, 4
    %v2081 = vadd.f32 %v2079, %v2080
    %v2082 = vrot.slane %v2081, 2
    %v2083 = vadd.f32 %v2081, %v2082
    %v2084 = vrot.slane %v2083, 1
    %v2085 = vadd.f32 %v2083, %v2084
    %v2086 = vlog2.pop %v2064
    %v2087 = vmul.f32 %v2086, 0.6931472
    %v2088 = vlog2.pop %v2071
    %v2089 = vmul.f32 %v2088, 0.6931472
    %v2090 = vlog2.pop %v2078
    %v2091 = vmul.f32 %v2090, 0.6931472
    %v2092 = vlog2.pop %v2085
    %v2093 = vmul.f32 %v2092, 0.6931472
    %v2094 = vadd.f32 %v2024, %v2087
    %v2095 = vadd.f32 %v2031, %v2089
    %v2096 = vadd.f32 %v2038, %v2091
    %v2097 = vadd.f32 %v2045, %v2093
    %v2098 = vsub.f32 %v2014, %v2094
    %v2099 = vsub.f32 %v2015, %v2095
    %v2100 = vsub.f32 %v2016, %v2096
    %v2101 = vsub.f32 %v2017, %v2097
    %v2102 = vsel %vm964, %v2098, -inf
    %v2103 = vsel %vm964, %v2099, -inf
    %v2104 = vsel %vm964, %v2100, -inf
    %v2105 = vsel %vm964, %v2101, -inf
    %v2106 = vmax.f32 %v2102, %v2103
    %v2107 = vmax.f32 %v2104, %v2105
    %v2108 = vmax.f32 %v2106, %v2107
    %v2109 = vsub.f32 %v2098, %v2108
    %v2110 = vsub.f32 %v2099, %v2108
    %v2111 = vsub.f32 %v2100, %v2108
    %v2112 = vsub.f32 %v2101, %v2108
    %v2113 = vmul.f32 %v2109, 1.442695
    %v2114 = vpow.pop %v2113
    %v2115 = vmul.f32 %v2110, 1.442695
    %v2116 = vpow.pop %v2115
    %v2117 = vmul.f32 %v2111, 1.442695
    %v2118 = vpow.pop %v2117
    %v2119 = vmul.f32 %v2112, 1.442695
    %v2120 = vpow.pop %v2119
    %v2121 = vsel %vm964, %v2114, 0.0
    %v2122 = vsel %vm964, %v2116, 0.0
    %v2123 = vadd.f32 %v2121, %v2122
    %v2124 = vsel %vm964, %v2118, 0.0
    %v2125 = vadd.f32 %v2123, %v2124
    %v2126 = vsel %vm964, %v2120, 0.0
    %v2127 = vadd.f32 %v2125, %v2126
    %v2128 = vlog2.pop %v2127
    %v2129 = vmul.f32 %v2128, 0.6931472
    %v2130 = vadd.f32 %v2108, %v2129
    %v2131 = vsub.f32 %v2098, %v2130
    %v2132 = vsub.f32 %v2099, %v2130
    %v2133 = vsub.f32 %v2100, %v2130
    %v2134 = vsub.f32 %v2101, %v2130
    %v2135 = vrcp.pop 1e-06
    %v2136 = vmul.f32 1e-06, %v2135
    %v2137 = vsub.f32 1.0, %v2136
    %v2138 = vmul.f32 %v2135, %v2137
    %v2139 = vadd.f32 %v2135, %v2138
    %vm2140 = vweird.f32 %v2135
    %v2141 = vsel %vm2140, %v2135, %v2139
    %v2142 = vmul.f32 %v2131, %v2141
    %v2143 = vmul.f32 %v2132, %v2141
    %v2144 = vmul.f32 %v2133, %v2141
    %v2145 = vmul.f32 %v2134, %v2141
    %v2146 = vsel %vm964, %v2142, -inf
    %v2147 = vrot.slane %v2146, 4
    %v2148 = vmax.f32 %v2146, %v2147
    %v2149 = vrot.slane %v2148, 2
    %v2150 = vmax.f32 %v2148, %v2149
    %v2151 = vrot.slane %v2150, 1
    %v2152 = vmax.f32 %v2150, %v2151
    %v2153 = vsel %vm964, %v2143, -inf
    %v2154 = vrot.slane %v2153, 4
    %v2155 = vmax.f32 %v2153, %v2154
    %v2156 = vrot.slane %v2155, 2
    %v2157 = vmax.f32 %v2155, %v2156
    %v2158 = vrot.slane %v2157, 1
    %v2159 = vmax.f32 %v2157, %v2158
    %v2160 = vsel %vm964, %v2144, -inf
    %v2161 = vrot.slane %v2160, 4
    %v2162 = vmax.f32 %v2160, %v2161
    %v2163 = vrot.slane %v2162, 2
    %v2164 = vmax.f32 %v2162, %v2163
    %v2165 = vrot.slane %v2164, 1
    %v2166 = vmax.f32 %v2164, %v2165
    %v2167 = vsel %vm964, %v2145, -inf
    %v2168 = vrot.slane %v2167, 4
    %v2169 = vmax.f32 %v2167, %v2168
    %v2170 = vrot.slane %v2169, 2
    %v2171 = vmax.f32 %v2169, %v2170
    %v2172 = vrot.slane %v2171, 1
    %v2173 = vmax.f32 %v2171, %v2172
    %v2174 = vsub.f32 %v2142, %v2152
    %v2175 = vsub.f32 %v2143, %v2159
    %v2176 = vsub.f32 %v2144, %v2166
    %v2177 = vsub.f32 %v2145, %v2173
    %v2178 = vmul.f32 %v2174, 1.442695
    %v2179 = vpow.pop %v2178
    %v2180 = vmul.f32 %v2175, 1.442695
    %v2181 = vpow.pop %v2180
    %v2182 = vmul.f32 %v2176, 1.442695
    %v2183 = vpow.pop %v2182
    %v2184 = vmul.f32 %v2177, 1.442695
    %v2185 = vpow.pop %v2184
    %v2186 = vsel %vm964, %v2179, 0.0
    %v2187 = vrot.slane %v2186, 4
    %v2188 = vadd.f32 %v2186, %v2187
    %v2189 = vrot.slane %v2188, 2
    %v2190 = vadd.f32 %v2188, %v2189
    %v2191 = vrot.slane %v2190, 1
    %v2192 = vadd.f32 %v2190, %v2191
    %v2193 = vsel %vm964, %v2181, 0.0
    %v2194 = vrot.slane %v2193, 4
    %v2195 = vadd.f32 %v2193, %v2194
    %v2196 = vrot.slane %v2195, 2
    %v2197 = vadd.f32 %v2195, %v2196
    %v2198 = vrot.slane %v2197, 1
    %v2199 = vadd.f32 %v2197, %v2198
    %v2200 = vsel %vm964, %v2183, 0.0
    %v2201 = vrot.slane %v2200, 4
    %v2202 = vadd.f32 %v2200, %v2201
    %v2203 = vrot.slane %v2202, 2
    %v2204 = vadd.f32 %v2202, %v2203
    %v2205 = vrot.slane %v2204, 1
    %v2206 = vadd.f32 %v2204, %v2205
    %v2207 = vsel %vm964, %v2185, 0.0
    %v2208 = vrot.slane %v2207, 4
    %v2209 = vadd.f32 %v2207, %v2208
    %v2210 = vrot.slane %v2209, 2
    %v2211 = vadd.f32 %v2209, %v2210
    %v2212 = vrot.slane %v2211, 1
    %v2213 = vadd.f32 %v2211, %v2212
    %v2214 = vrcp.pop %v2192
    %v2215 = vmul.f32 %v2192, %v2214
    %v2216 = vsub.f32 1.0, %v2215
    %v2217 = vmul.f32 %v2214, %v2216
    %v2218 = vadd.f32 %v2214, %v2217
    %vm2219 = vweird.f32 %v2192
    %vm2220 = vweird.f32 %v2214
    %vm2221 = vmor %vm2219, %vm2220
    %v2222 = vsel %vm2221, %v2214, %v2218
    %v2223 = vand.u32 2147483647, %v2192
    %vm2224 = vcmp.eq.f32.partialorder %v2223, 8.507059e+37
    %v2225 = vand.u32 %v2192, 2147483648
    %v2226 = vor.u32 1.1754944e-38, %v2225
    %v2227 = vsel %vm2224, %v2226, %v2222
    %v2228 = vmul.f32 %v2179, %v2227
    %v2229 = vrcp.pop %v2199
    %v2230 = vmul.f32 %v2199, %v2229
    %v2231 = vsub.f32 1.0, %v2230
    %v2232 = vmul.f32 %v2229, %v2231
    %v2233 = vadd.f32 %v2229, %v2232
    %vm2234 = vweird.f32 %v2199
    %vm2235 = vweird.f32 %v2229
    %vm2236 = vmor %vm2234, %vm2235
    %v2237 = vsel %vm2236, %v2229, %v2233
    %v2238 = vand.u32 2147483647, %v2199
    %vm2239 = vcmp.eq.f32.partialorder %v2238, 8.507059e+37
    %v2240 = vand.u32 %v2199, 2147483648
    %v2241 = vor.u32 1.1754944e-38, %v2240
    %v2242 = vsel %vm2239, %v2241, %v2237
    %v2243 = vmul.f32 %v2181, %v2242
    %v2244 = vrcp.pop %v2206
    %v2245 = vmul.f32 %v2206, %v2244
    %v2246 = vsub.f32 1.0, %v2245
    %v2247 = vmul.f32 %v2244, %v2246
    %v2248 = vadd.f32 %v2244, %v2247
    %vm2249 = vweird.f32 %v2206
    %vm2250 = vweird.f32 %v2244
    %vm2251 = vmor %vm2249, %vm2250
    %v2252 = vsel %vm2251, %v2244, %v2248
    %v2253 = vand.u32 2147483647, %v2206
    %vm2254 = vcmp.eq.f32.partialorder %v2253, 8.507059e+37
    %v2255 = vand.u32 %v2206, 2147483648
    %v2256 = vor.u32 1.1754944e-38, %v2255
    %v2257 = vsel %vm2254, %v2256, %v2252
    %v2258 = vmul.f32 %v2183, %v2257
    %v2259 = vrcp.pop %v2213
    %v2260 = vmul.f32 %v2213, %v2259
    %v2261 = vsub.f32 1.0, %v2260
    %v2262 = vmul.f32 %v2259, %v2261
    %v2263 = vadd.f32 %v2259, %v2262
    %vm2264 = vweird.f32 %v2213
    %vm2265 = vweird.f32 %v2259
    %vm2266 = vmor %vm2264, %vm2265
    %v2267 = vsel %vm2266, %v2259, %v2263
    %v2268 = vand.u32 2147483647, %v2213
    %vm2269 = vcmp.eq.f32.partialorder %v2268, 8.507059e+37
    %v2270 = vand.u32 %v2213, 2147483648
    %v2271 = vor.u32 1.1754944e-38, %v2270
    %v2272 = vsel %vm2269, %v2271, %v2267
    %v2273 = vmul.f32 %v2185, %v2272
    %vm2274 = vcmask 124928
    %2275 = vst.msk [vmem:[%s61] sm:$0x7] %vm2274, %v2228
    %2276 = vst.msk [vmem:[%s61 + $0x4] sm:$0x7] %vm2274, %v2243
    %2277 = vst.msk [vmem:[%s61 + $0x8] sm:$0x7] %vm2274, %v2258
    %2278 = vst.msk [vmem:[%s61 + $0xc] sm:$0x7] %vm2274, %v2273
    %v2279 = vld [vmem:[%s43] sm:$0xff]
    %v2281 = vsel %vm180, %v2279, 0
    %2283 = vmatpush.msra.mxu0 0.0
    %2284 = vmatpush.msra.mxu0 0.0
    %2285 = vmatpush.msra.mxu0 0.0
    %2286 = vmatpush.msra.mxu0 0.0
    %2287 = vmatpush.msra.mxu0 0.0
    %2288 = vmatpush.msra.mxu0 0.0
    %2289 = vmatpush.msra.mxu0 0.0
    %2290 = vmatpush.msra.mxu0 0.0
    %2291 = vmatpush.msra.mxu0 0.0
    %2292 = vmatpush.msra.mxu0 0.0
    %2293 = vmatpush.msra.mxu0 0.0
    %2294 = vmatpush.msra.mxu0 0.0
    %2295 = vmatpush.msra.mxu0 0.0
    %2296 = vmatpush.msra.mxu0 0.0
    %2297 = vmatpush.msra.mxu0 0.0
    %2298 = vmatpush.msra.mxu0 %v186
    %2299 = vmatmul.f32.gmra.mxu0 %v2281
    %v2300 = vpop.f32.mrf.mxu0
    %v2301 = vadd.f32 0.0, %v2300
    %2302 = vdwg.mxu0
    %v2303 = vld [vmem:[#allocation6] sm:$0xff]
    %v2304 = vld [vmem:[#allocation6 + $0x8] sm:$0xff]
    %v2305 = vld [vmem:[#allocation6 + $0x10] sm:$0xff]
    %v2306 = vld [vmem:[#allocation6 + $0x18] sm:$0xff]
    %v2307 = vld [vmem:[#allocation6 + $0x20] sm:$0xff]
    %v2308 = vld [vmem:[#allocation6 + $0x28] sm:$0xff]
    %v2309 = vld [vmem:[#allocation6 + $0x30] sm:$0xff]
    %v2310 = vld [vmem:[#allocation6 + $0x38] sm:$0xff]
    %v2311 = vld [vmem:[#allocation6 + $0x40] sm:$0xff]
    %v2312 = vld [vmem:[#allocation6 + $0x48] sm:$0xff]
    %v2313 = vld [vmem:[%s47] sm:$0xff]
    %2315 = vset.pattern.permute.xlu0 0
    %2316 = vperm.xlu0 %2315, %v2313
    %v2317 = vpop.permute.xlu0 %2316
    %v2320 = vsel %vm286, %v2301, 0
    %2322 = vmatpush.msra.mxu0 0.0
    %2323 = vmatpush.msra.mxu0 0.0
    %2324 = vmatpush.msra.mxu0 0.0
    %2325 = vmatpush.msra.mxu0 0.0
    %2326 = vmatpush.msra.mxu0 0.0
    %2327 = vmatpush.msra.mxu0 0.0
    %2328 = vmatpush.msra.mxu0 %v2312
    %2329 = vmatpush.msra.mxu0 %v2311
    %2330 = vmatpush.msra.mxu0 %v2310
    %2331 = vmatpush.msra.mxu0 %v2309
    %2332 = vmatpush.msra.mxu0 %v2308
    %2333 = vmatpush.msra.mxu0 %v2307
    %2334 = vmatpush.msra.mxu0 %v2306
    %2335 = vmatpush.msra.mxu0 %v2305
    %2336 = vmatpush.msra.mxu0 %v2304
    %2337 = vmatpush.msra.mxu0 %v2303
    %2338 = vmatmul.f32.gmra.mxu0 %v2320
    %v2339 = vpop.f32.mrf.mxu0
    %v2340 = vadd.f32 %v2317, %v2339
    %2341 = vdwg.mxu0
    %v2342 = vmax.f32 %v2340, 0.0
    %v2343 = vld [vmem:[%s45] sm:$0xff]
    %vm2344 = vcmask 64512
    %v2346 = vsel %vm2344, %v2343, 0
    %2348 = vmatpush.msra.mxu0 0.0
    %2349 = vmatpush.msra.mxu0 0.0
    %2350 = vmatpush.msra.mxu0 0.0
    %2351 = vmatpush.msra.mxu0 0.0
    %2352 = vmatpush.msra.mxu0 0.0
    %2353 = vmatpush.msra.mxu0 0.0
    %2354 = vmatpush.msra.mxu0 0.0
    %2355 = vmatpush.msra.mxu0 0.0
    %2356 = vmatpush.msra.mxu0 0.0
    %2357 = vmatpush.msra.mxu0 0.0
    %2358 = vmatpush.msra.mxu0 0.0
    %2359 = vmatpush.msra.mxu0 0.0
    %2360 = vmatpush.msra.mxu0 0.0
    %2361 = vmatpush.msra.mxu0 0.0
    %2362 = vmatpush.msra.mxu0 0.0
    %2363 = vmatpush.msra.mxu0 %v2342
    %2364 = vmatmul.f32.gmra.mxu0 %v2346
    %v2365 = vpop.f32.mrf.mxu0
    %v2366 = vadd.f32 0.0, %v2365
    %2367 = vdwg.mxu0
    %v2368 = vld [vmem:[%s49] sm:$0xff]
    %2370 = vset.pattern.permute.xlu0 0
    %2371 = vperm.xlu0 %2370, %v2368
    %v2372 = vpop.permute.xlu0 %2371
    %v2375 = vsel %vm286, %v2366, 0
    %2377 = vmatpush.msra.mxu0 0.0
    %2378 = vmatpush.msra.mxu0 0.0
    %2379 = vmatpush.msra.mxu0 0.0
    %2380 = vmatpush.msra.mxu0 0.0
    %2381 = vmatpush.msra.mxu0 0.0
    %2382 = vmatpush.msra.mxu0 0.0
    %2383 = vmatpush.msra.mxu0 %v2312
    %2384 = vmatpush.msra.mxu0 %v2311
    %2385 = vmatpush.msra.mxu0 %v2310
    %2386 = vmatpush.msra.mxu0 %v2309
    %2387 = vmatpush.msra.mxu0 %v2308
    %2388 = vmatpush.msra.mxu0 %v2307
    %2389 = vmatpush.msra.mxu0 %v2306
    %2390 = vmatpush.msra.mxu0 %v2305
    %2391 = vmatpush.msra.mxu0 %v2304
    %2392 = vmatpush.msra.mxu0 %v2303
    %2393 = vmatmul.f32.gmra.mxu0 %v2375
    %v2394 = vpop.f32.mrf.mxu0
    %v2395 = vadd.f32 %v2372, %v2394
    %2396 = vdwg.mxu0
    %v2397 = vmax.f32 %v2395, 0.0
    %s2398 = scalar_lea.vmem %s43, 8
    %v2399 = vld [vmem:[%s2398] sm:$0xff]
    %v2401 = vsel %vm180, %v2399, 0
    %2403 = vmatpush.msra.mxu0 0.0
    %2404 = vmatpush.msra.mxu0 0.0
    %2405 = vmatpush.msra.mxu0 0.0
    %2406 = vmatpush.msra.mxu0 0.0
    %2407 = vmatpush.msra.mxu0 0.0
    %2408 = vmatpush.msra.mxu0 0.0
    %2409 = vmatpush.msra.mxu0 0.0
    %2410 = vmatpush.msra.mxu0 0.0
    %2411 = vmatpush.msra.mxu0 0.0
    %2412 = vmatpush.msra.mxu0 0.0
    %2413 = vmatpush.msra.mxu0 0.0
    %2414 = vmatpush.msra.mxu0 0.0
    %2415 = vmatpush.msra.mxu0 0.0
    %2416 = vmatpush.msra.mxu0 0.0
    %2417 = vmatpush.msra.mxu0 0.0
    %2418 = vmatpush.msra.mxu0 %v186
    %2419 = vmatmul.f32.gmra.mxu0 %v2401
    %v2420 = vpop.f32.mrf.mxu0
    %v2421 = vadd.f32 0.0, %v2420
    %2422 = vdwg.mxu0
    %s2423 = scalar_lea.vmem [#allocation6], 80
    %v2424 = vld [vmem:[%s2423] sm:$0xff]
    %v2425 = vld [vmem:[%s2423 + $0x8] sm:$0xff]
    %v2426 = vld [vmem:[%s2423 + $0x10] sm:$0xff]
    %v2427 = vld [vmem:[%s2423 + $0x18] sm:$0xff]
    %v2428 = vld [vmem:[%s2423 + $0x20] sm:$0xff]
    %v2429 = vld [vmem:[%s2423 + $0x28] sm:$0xff]
    %v2430 = vld [vmem:[%s2423 + $0x30] sm:$0xff]
    %v2431 = vld [vmem:[%s2423 + $0x38] sm:$0xff]
    %v2432 = vld [vmem:[%s2423 + $0x40] sm:$0xff]
    %v2433 = vld [vmem:[%s2423 + $0x48] sm:$0xff]
    %s2434 = scalar_lea.vmem %s47, 8
    %v2435 = vld [vmem:[%s2434] sm:$0xff]
    %2437 = vset.pattern.permute.xlu0 0
    %2438 = vperm.xlu0 %2437, %v2435
    %v2439 = vpop.permute.xlu0 %2438
    %v2442 = vsel %vm286, %v2421, 0
    %2444 = vmatpush.msra.mxu0 0.0
    %2445 = vmatpush.msra.mxu0 0.0
    %2446 = vmatpush.msra.mxu0 0.0
    %2447 = vmatpush.msra.mxu0 0.0
    %2448 = vmatpush.msra.mxu0 0.0
    %2449 = vmatpush.msra.mxu0 0.0
    %2450 = vmatpush.msra.mxu0 %v2433
    %2451 = vmatpush.msra.mxu0 %v2432
    %2452 = vmatpush.msra.mxu0 %v2431
    %2453 = vmatpush.msra.mxu0 %v2430
    %2454 = vmatpush.msra.mxu0 %v2429
    %2455 = vmatpush.msra.mxu0 %v2428
    %2456 = vmatpush.msra.mxu0 %v2427
    %2457 = vmatpush.msra.mxu0 %v2426
    %2458 = vmatpush.msra.mxu0 %v2425
    %2459 = vmatpush.msra.mxu0 %v2424
    %2460 = vmatmul.f32.gmra.mxu0 %v2442
    %v2461 = vpop.f32.mrf.mxu0
    %v2462 = vadd.f32 %v2439, %v2461
    %2463 = vdwg.mxu0
    %v2464 = vmax.f32 %v2462, 0.0
    %s2465 = scalar_lea.vmem %s45, 8
    %v2466 = vld [vmem:[%s2465] sm:$0xff]
    %v2468 = vsel %vm2344, %v2466, 0
    %2470 = vmatpush.msra.mxu0 0.0
    %2471 = vmatpush.msra.mxu0 0.0
    %2472 = vmatpush.msra.mxu0 0.0
    %2473 = vmatpush.msra.mxu0 0.0
    %2474 = vmatpush.msra.mxu0 0.0
    %2475 = vmatpush.msra.mxu0 0.0
    %2476 = vmatpush.msra.mxu0 0.0
    %2477 = vmatpush.msra.mxu0 0.0
    %2478 = vmatpush.msra.mxu0 0.0
    %2479 = vmatpush.msra.mxu0 0.0
    %2480 = vmatpush.msra.mxu0 0.0
    %2481 = vmatpush.msra.mxu0 0.0
    %2482 = vmatpush.msra.mxu0 0.0
    %2483 = vmatpush.msra.mxu0 0.0
    %2484 = vmatpush.msra.mxu0 0.0
    %2485 = vmatpush.msra.mxu0 %v2464
    %2486 = vmatmul.f32.gmra.mxu0 %v2468
    %v2487 = vpop.f32.mrf.mxu0
    %v2488 = vadd.f32 0.0, %v2487
    %2489 = vdwg.mxu0
    %s2490 = scalar_lea.vmem %s49, 8
    %v2491 = vld [vmem:[%s2490] sm:$0xff]
    %2493 = vset.pattern.permute.xlu0 0
    %2494 = vperm.xlu0 %2493, %v2491
    %v2495 = vpop.permute.xlu0 %2494
    %v2498 = vsel %vm286, %v2488, 0
    %2500 = vmatpush.msra.mxu0 0.0
    %2501 = vmatpush.msra.mxu0 0.0
    %2502 = vmatpush.msra.mxu0 0.0
    %2503 = vmatpush.msra.mxu0 0.0
    %2504 = vmatpush.msra.mxu0 0.0
    %2505 = vmatpush.msra.mxu0 0.0
    %2506 = vmatpush.msra.mxu0 %v2433
    %2507 = vmatpush.msra.mxu0 %v2432
    %2508 = vmatpush.msra.mxu0 %v2431
    %2509 = vmatpush.msra.mxu0 %v2430
    %2510 = vmatpush.msra.mxu0 %v2429
    %2511 = vmatpush.msra.mxu0 %v2428
    %2512 = vmatpush.msra.mxu0 %v2427
    %2513 = vmatpush.msra.mxu0 %v2426
    %2514 = vmatpush.msra.mxu0 %v2425
    %2515 = vmatpush.msra.mxu0 %v2424
    %2516 = vmatmul.f32.gmra.mxu0 %v2498
    %v2517 = vpop.f32.mrf.mxu0
    %v2518 = vadd.f32 %v2495, %v2517
    %2519 = vdwg.mxu0
    %v2520 = vmax.f32 %v2518, 0.0
    %s2521 = scalar_lea.vmem %s43, 16
    %v2522 = vld [vmem:[%s2521] sm:$0xff]
    %v2524 = vsel %vm180, %v2522, 0
    %2526 = vmatpush.msra.mxu0 0.0
    %2527 = vmatpush.msra.mxu0 0.0
    %2528 = vmatpush.msra.mxu0 0.0
    %2529 = vmatpush.msra.mxu0 0.0
    %2530 = vmatpush.msra.mxu0 0.0
    %2531 = vmatpush.msra.mxu0 0.0
    %2532 = vmatpush.msra.mxu0 0.0
    %2533 = vmatpush.msra.mxu0 0.0
    %2534 = vmatpush.msra.mxu0 0.0
    %2535 = vmatpush.msra.mxu0 0.0
    %2536 = vmatpush.msra.mxu0 0.0
    %2537 = vmatpush.msra.mxu0 0.0
    %2538 = vmatpush.msra.mxu0 0.0
    %2539 = vmatpush.msra.mxu0 0.0
    %2540 = vmatpush.msra.mxu0 0.0
    %2541 = vmatpush.msra.mxu0 %v186
    %2542 = vmatmul.f32.gmra.mxu0 %v2524
    %v2543 = vpop.f32.mrf.mxu0
    %v2544 = vadd.f32 0.0, %v2543
    %2545 = vdwg.mxu0
    %s2546 = scalar_lea.vmem [#allocation6], 160
    %v2547 = vld [vmem:[%s2546] sm:$0xff]
    %v2548 = vld [vmem:[%s2546 + $0x8] sm:$0xff]
    %v2549 = vld [vmem:[%s2546 + $0x10] sm:$0xff]
    %v2550 = vld [vmem:[%s2546 + $0x18] sm:$0xff]
    %v2551 = vld [vmem:[%s2546 + $0x20] sm:$0xff]
    %v2552 = vld [vmem:[%s2546 + $0x28] sm:$0xff]
    %v2553 = vld [vmem:[%s2546 + $0x30] sm:$0xff]
    %v2554 = vld [vmem:[%s2546 + $0x38] sm:$0xff]
    %v2555 = vld [vmem:[%s2546 + $0x40] sm:$0xff]
    %v2556 = vld [vmem:[%s2546 + $0x48] sm:$0xff]
    %s2557 = scalar_lea.vmem %s47, 16
    %v2558 = vld [vmem:[%s2557] sm:$0xff]
    %2560 = vset.pattern.permute.xlu0 0
    %2561 = vperm.xlu0 %2560, %v2558
    %v2562 = vpop.permute.xlu0 %2561
    %v2565 = vsel %vm286, %v2544, 0
    %2567 = vmatpush.msra.mxu0 0.0
    %2568 = vmatpush.msra.mxu0 0.0
    %2569 = vmatpush.msra.mxu0 0.0
    %2570 = vmatpush.msra.mxu0 0.0
    %2571 = vmatpush.msra.mxu0 0.0
    %2572 = vmatpush.msra.mxu0 0.0
    %2573 = vmatpush.msra.mxu0 %v2556
    %2574 = vmatpush.msra.mxu0 %v2555
    %2575 = vmatpush.msra.mxu0 %v2554
    %2576 = vmatpush.msra.mxu0 %v2553
    %2577 = vmatpush.msra.mxu0 %v2552
    %2578 = vmatpush.msra.mxu0 %v2551
    %2579 = vmatpush.msra.mxu0 %v2550
    %2580 = vmatpush.msra.mxu0 %v2549
    %2581 = vmatpush.msra.mxu0 %v2548
    %2582 = vmatpush.msra.mxu0 %v2547
    %2583 = vmatmul.f32.gmra.mxu0 %v2565
    %v2584 = vpop.f32.mrf.mxu0
    %v2585 = vadd.f32 %v2562, %v2584
    %2586 = vdwg.mxu0
    %v2587 = vmax.f32 %v2585, 0.0
    %s2588 = scalar_lea.vmem %s45, 16
    %v2589 = vld [vmem:[%s2588] sm:$0xff]
    %v2591 = vsel %vm2344, %v2589, 0
    %2593 = vmatpush.msra.mxu0 0.0
    %2594 = vmatpush.msra.mxu0 0.0
    %2595 = vmatpush.msra.mxu0 0.0
    %2596 = vmatpush.msra.mxu0 0.0
    %2597 = vmatpush.msra.mxu0 0.0
    %2598 = vmatpush.msra.mxu0 0.0
    %2599 = vmatpush.msra.mxu0 0.0
    %2600 = vmatpush.msra.mxu0 0.0
    %2601 = vmatpush.msra.mxu0 0.0
    %2602 = vmatpush.msra.mxu0 0.0
    %2603 = vmatpush.msra.mxu0 0.0
    %2604 = vmatpush.msra.mxu0 0.0
    %2605 = vmatpush.msra.mxu0 0.0
    %2606 = vmatpush.msra.mxu0 0.0
    %2607 = vmatpush.msra.mxu0 0.0
    %2608 = vmatpush.msra.mxu0 %v2587
    %2609 = vmatmul.f32.gmra.mxu0 %v2591
    %v2610 = vpop.f32.mrf.mxu0
    %v2611 = vadd.f32 0.0, %v2610
    %2612 = vdwg.mxu0
    %s2613 = scalar_lea.vmem %s49, 16
    %v2614 = vld [vmem:[%s2613] sm:$0xff]
    %2616 = vset.pattern.permute.xlu0 0
    %2617 = vperm.xlu0 %2616, %v2614
    %v2618 = vpop.permute.xlu0 %2617
    %v2621 = vsel %vm286, %v2611, 0
    %2623 = vmatpush.msra.mxu0 0.0
    %2624 = vmatpush.msra.mxu0 0.0
    %2625 = vmatpush.msra.mxu0 0.0
    %2626 = vmatpush.msra.mxu0 0.0
    %2627 = vmatpush.msra.mxu0 0.0
    %2628 = vmatpush.msra.mxu0 0.0
    %2629 = vmatpush.msra.mxu0 %v2556
    %2630 = vmatpush.msra.mxu0 %v2555
    %2631 = vmatpush.msra.mxu0 %v2554
    %2632 = vmatpush.msra.mxu0 %v2553
    %2633 = vmatpush.msra.mxu0 %v2552
    %2634 = vmatpush.msra.mxu0 %v2551
    %2635 = vmatpush.msra.mxu0 %v2550
    %2636 = vmatpush.msra.mxu0 %v2549
    %2637 = vmatpush.msra.mxu0 %v2548
    %2638 = vmatpush.msra.mxu0 %v2547
    %2639 = vmatmul.f32.gmra.mxu0 %v2621
    %v2640 = vpop.f32.mrf.mxu0
    %v2641 = vadd.f32 %v2618, %v2640
    %2642 = vdwg.mxu0
    %v2643 = vmax.f32 %v2641, 0.0
    %s2644 = scalar_lea.vmem %s43, 24
    %v2645 = vld [vmem:[%s2644] sm:$0xff]
    %v2647 = vsel %vm180, %v2645, 0
    %2649 = vmatpush.msra.mxu0 0.0
    %2650 = vmatpush.msra.mxu0 0.0
    %2651 = vmatpush.msra.mxu0 0.0
    %2652 = vmatpush.msra.mxu0 0.0
    %2653 = vmatpush.msra.mxu0 0.0
    %2654 = vmatpush.msra.mxu0 0.0
    %2655 = vmatpush.msra.mxu0 0.0
    %2656 = vmatpush.msra.mxu0 0.0
    %2657 = vmatpush.msra.mxu0 0.0
    %2658 = vmatpush.msra.mxu0 0.0
    %2659 = vmatpush.msra.mxu0 0.0
    %2660 = vmatpush.msra.mxu0 0.0
    %2661 = vmatpush.msra.mxu0 0.0
    %2662 = vmatpush.msra.mxu0 0.0
    %2663 = vmatpush.msra.mxu0 0.0
    %2664 = vmatpush.msra.mxu0 %v186
    %2665 = vmatmul.f32.gmra.mxu0 %v2647
    %v2666 = vpop.f32.mrf.mxu0
    %v2667 = vadd.f32 0.0, %v2666
    %2668 = vdwg.mxu0
    %s2669 = scalar_lea.vmem [#allocation6], 240
    %v2670 = vld [vmem:[%s2669] sm:$0xff]
    %v2671 = vld [vmem:[%s2669 + $0x8] sm:$0xff]
    %v2672 = vld [vmem:[%s2669 + $0x10] sm:$0xff]
    %v2673 = vld [vmem:[%s2669 + $0x18] sm:$0xff]
    %v2674 = vld [vmem:[%s2669 + $0x20] sm:$0xff]
    %v2675 = vld [vmem:[%s2669 + $0x28] sm:$0xff]
    %v2676 = vld [vmem:[%s2669 + $0x30] sm:$0xff]
    %v2677 = vld [vmem:[%s2669 + $0x38] sm:$0xff]
    %v2678 = vld [vmem:[%s2669 + $0x40] sm:$0xff]
    %v2679 = vld [vmem:[%s2669 + $0x48] sm:$0xff]
    %s2680 = scalar_lea.vmem %s47, 24
    %v2681 = vld [vmem:[%s2680] sm:$0xff]
    %2683 = vset.pattern.permute.xlu0 0
    %2684 = vperm.xlu0 %2683, %v2681
    %v2685 = vpop.permute.xlu0 %2684
    %v2688 = vsel %vm286, %v2667, 0
    %2690 = vmatpush.msra.mxu0 0.0
    %2691 = vmatpush.msra.mxu0 0.0
    %2692 = vmatpush.msra.mxu0 0.0
    %2693 = vmatpush.msra.mxu0 0.0
    %2694 = vmatpush.msra.mxu0 0.0
    %2695 = vmatpush.msra.mxu0 0.0
    %2696 = vmatpush.msra.mxu0 %v2679
    %2697 = vmatpush.msra.mxu0 %v2678
    %2698 = vmatpush.msra.mxu0 %v2677
    %2699 = vmatpush.msra.mxu0 %v2676
    %2700 = vmatpush.msra.mxu0 %v2675
    %2701 = vmatpush.msra.mxu0 %v2674
    %2702 = vmatpush.msra.mxu0 %v2673
    %2703 = vmatpush.msra.mxu0 %v2672
    %2704 = vmatpush.msra.mxu0 %v2671
    %2705 = vmatpush.msra.mxu0 %v2670
    %2706 = vmatmul.f32.gmra.mxu0 %v2688
    %v2707 = vpop.f32.mrf.mxu0
    %v2708 = vadd.f32 %v2685, %v2707
    %2709 = vdwg.mxu0
    %v2710 = vmax.f32 %v2708, 0.0
    %s2711 = scalar_lea.vmem %s45, 24
    %v2712 = vld [vmem:[%s2711] sm:$0xff]
    %v2714 = vsel %vm2344, %v2712, 0
    %2716 = vmatpush.msra.mxu0 0.0
    %2717 = vmatpush.msra.mxu0 0.0
    %2718 = vmatpush.msra.mxu0 0.0
    %2719 = vmatpush.msra.mxu0 0.0
    %2720 = vmatpush.msra.mxu0 0.0
    %2721 = vmatpush.msra.mxu0 0.0
    %2722 = vmatpush.msra.mxu0 0.0
    %2723 = vmatpush.msra.mxu0 0.0
    %2724 = vmatpush.msra.mxu0 0.0
    %2725 = vmatpush.msra.mxu0 0.0
    %2726 = vmatpush.msra.mxu0 0.0
    %2727 = vmatpush.msra.mxu0 0.0
    %2728 = vmatpush.msra.mxu0 0.0
    %2729 = vmatpush.msra.mxu0 0.0
    %2730 = vmatpush.msra.mxu0 0.0
    %2731 = vmatpush.msra.mxu0 %v2710
    %2732 = vmatmul.f32.gmra.mxu0 %v2714
    %v2733 = vpop.f32.mrf.mxu0
    %v2734 = vadd.f32 0.0, %v2733
    %2735 = vdwg.mxu0
    %s2736 = scalar_lea.vmem %s49, 24
    %v2737 = vld [vmem:[%s2736] sm:$0xff]
    %2739 = vset.pattern.permute.xlu0 0
    %2740 = vperm.xlu0 %2739, %v2737
    %v2741 = vpop.permute.xlu0 %2740
    %v2744 = vsel %vm286, %v2734, 0
    %2746 = vmatpush.msra.mxu0 0.0
    %2747 = vmatpush.msra.mxu0 0.0
    %2748 = vmatpush.msra.mxu0 0.0
    %2749 = vmatpush.msra.mxu0 0.0
    %2750 = vmatpush.msra.mxu0 0.0
    %2751 = vmatpush.msra.mxu0 0.0
    %2752 = vmatpush.msra.mxu0 %v2679
    %2753 = vmatpush.msra.mxu0 %v2678
    %2754 = vmatpush.msra.mxu0 %v2677
    %2755 = vmatpush.msra.mxu0 %v2676
    %2756 = vmatpush.msra.mxu0 %v2675
    %2757 = vmatpush.msra.mxu0 %v2674
    %2758 = vmatpush.msra.mxu0 %v2673
    %2759 = vmatpush.msra.mxu0 %v2672
    %2760 = vmatpush.msra.mxu0 %v2671
    %2761 = vmatpush.msra.mxu0 %v2670
    %2762 = vmatmul.f32.gmra.mxu0 %v2744
    %v2763 = vpop.f32.mrf.mxu0
    %v2764 = vadd.f32 %v2741, %v2763
    %2765 = vdwg.mxu0
    %v2766 = vmax.f32 %v2764, 0.0
    %v2767 = vsel %vm286, %v2397, 0.0
    %v2768 = vrot.slane %v2767, 4
    %v2769 = vadd.f32 %v2767, %v2768
    %v2770 = vrot.slane %v2769, 2
    %v2771 = vadd.f32 %v2769, %v2770
    %v2772 = vrot.slane %v2771, 1
    %v2773 = vadd.f32 %v2771, %v2772
    %v2774 = vrcp.pop 8.0
    %v2775 = vmul.f32 8.0, %v2774
    %v2776 = vsub.f32 1.0, %v2775
    %v2777 = vmul.f32 %v2774, %v2776
    %v2778 = vadd.f32 %v2774, %v2777
    %vm2779 = vweird.f32 %v2774
    %v2780 = vsel %vm2779, %v2774, %v2778
    %v2781 = vmul.f32 %v2773, %v2780
    %v2782 = vld [vmem:[%s37] sm:$0xff]
    %v2783 = vld [vmem:[%s37 + $0x8] sm:$0xff]
    %v2784 = vld [vmem:[%s37 + $0x10] sm:$0xff]
    %v2785 = vld [vmem:[%s37 + $0x18] sm:$0xff]
    %v2786 = vld [vmem:[%s37 + $0x20] sm:$0xff]
    %v2787 = vld [vmem:[%s37 + $0x28] sm:$0xff]
    %v2788 = vld [vmem:[%s37 + $0x30] sm:$0xff]
    %v2789 = vld [vmem:[%s37 + $0x38] sm:$0xff]
    %v2790 = vld [vmem:[%s37 + $0x40] sm:$0xff]
    %v2791 = vld [vmem:[%s37 + $0x48] sm:$0xff]
    %v2793 = vsel %vm286, %v2781, 0
    %2795 = vmatpush.msra.mxu0 0.0
    %2796 = vmatpush.msra.mxu0 0.0
    %2797 = vmatpush.msra.mxu0 0.0
    %2798 = vmatpush.msra.mxu0 0.0
    %2799 = vmatpush.msra.mxu0 0.0
    %2800 = vmatpush.msra.mxu0 0.0
    %2801 = vmatpush.msra.mxu0 %v2791
    %2802 = vmatpush.msra.mxu0 %v2790
    %2803 = vmatpush.msra.mxu0 %v2789
    %2804 = vmatpush.msra.mxu0 %v2788
    %2805 = vmatpush.msra.mxu0 %v2787
    %2806 = vmatpush.msra.mxu0 %v2786
    %2807 = vmatpush.msra.mxu0 %v2785
    %2808 = vmatpush.msra.mxu0 %v2784
    %2809 = vmatpush.msra.mxu0 %v2783
    %2810 = vmatpush.msra.mxu0 %v2782
    %2811 = vmatmul.f32.gmra.mxu0 %v2793
    %v2812 = vpop.f32.mrf.mxu0
    %v2813 = vadd.f32 0.0, %v2812
    %2814 = vdwg.mxu0
    %v2815 = vperm.slane %v2813, 0
    %v2816 = vmul.f32 %v2228, %v2815
    %v2817 = vadd.f32 %v2816, 0.0
    %v2818 = vsel %vm286, %v2520, 0.0
    %v2819 = vrot.slane %v2818, 4
    %v2820 = vadd.f32 %v2818, %v2819
    %v2821 = vrot.slane %v2820, 2
    %v2822 = vadd.f32 %v2820, %v2821
    %v2823 = vrot.slane %v2822, 1
    %v2824 = vadd.f32 %v2822, %v2823
    %v2825 = vmul.f32 %v2824, %v2780
    %v2827 = vsel %vm286, %v2825, 0
    %2829 = vmatpush.msra.mxu0 0.0
    %2830 = vmatpush.msra.mxu0 0.0
    %2831 = vmatpush.msra.mxu0 0.0
    %2832 = vmatpush.msra.mxu0 0.0
    %2833 = vmatpush.msra.mxu0 0.0
    %2834 = vmatpush.msra.mxu0 0.0
    %2835 = vmatpush.msra.mxu0 %v2791
    %2836 = vmatpush.msra.mxu0 %v2790
    %2837 = vmatpush.msra.mxu0 %v2789
    %2838 = vmatpush.msra.mxu0 %v2788
    %2839 = vmatpush.msra.mxu0 %v2787
    %2840 = vmatpush.msra.mxu0 %v2786
    %2841 = vmatpush.msra.mxu0 %v2785
    %2842 = vmatpush.msra.mxu0 %v2784
    %2843 = vmatpush.msra.mxu0 %v2783
    %2844 = vmatpush.msra.mxu0 %v2782
    %2845 = vmatmul.f32.gmra.mxu0 %v2827
    %v2846 = vpop.f32.mrf.mxu0
    %v2847 = vadd.f32 0.0, %v2846
    %2848 = vdwg.mxu0
    %v2849 = vperm.slane %v2847, 0
    %v2850 = vmul.f32 %v2243, %v2849
    %v2851 = vadd.f32 %v2817, %v2850
    %v2852 = vsel %vm286, %v2643, 0.0
    %v2853 = vrot.slane %v2852, 4
    %v2854 = vadd.f32 %v2852, %v2853
    %v2855 = vrot.slane %v2854, 2
    %v2856 = vadd.f32 %v2854, %v2855
    %v2857 = vrot.slane %v2856, 1
    %v2858 = vadd.f32 %v2856, %v2857
    %v2859 = vmul.f32 %v2858, %v2780
    %v2861 = vsel %vm286, %v2859, 0
    %2863 = vmatpush.msra.mxu0 0.0
    %2864 = vmatpush.msra.mxu0 0.0
    %2865 = vmatpush.msra.mxu0 0.0
    %2866 = vmatpush.msra.mxu0 0.0
    %2867 = vmatpush.msra.mxu0 0.0
    %2868 = vmatpush.msra.mxu0 0.0
    %2869 = vmatpush.msra.mxu0 %v2791
    %2870 = vmatpush.msra.mxu0 %v2790
    %2871 = vmatpush.msra.mxu0 %v2789
    %2872 = vmatpush.msra.mxu0 %v2788
    %2873 = vmatpush.msra.mxu0 %v2787
    %2874 = vmatpush.msra.mxu0 %v2786
    %2875 = vmatpush.msra.mxu0 %v2785
    %2876 = vmatpush.msra.mxu0 %v2784
    %2877 = vmatpush.msra.mxu0 %v2783
    %2878 = vmatpush.msra.mxu0 %v2782
    %2879 = vmatmul.f32.gmra.mxu0 %v2861
    %v2880 = vpop.f32.mrf.mxu0
    %v2881 = vadd.f32 0.0, %v2880
    %2882 = vdwg.mxu0
    %v2883 = vperm.slane %v2881, 0
    %v2884 = vmul.f32 %v2258, %v2883
    %v2885 = vadd.f32 %v2851, %v2884
    %v2886 = vsel %vm286, %v2766, 0.0
    %v2887 = vrot.slane %v2886, 4
    %v2888 = vadd.f32 %v2886, %v2887
    %v2889 = vrot.slane %v2888, 2
    %v2890 = vadd.f32 %v2888, %v2889
    %v2891 = vrot.slane %v2890, 1
    %v2892 = vadd.f32 %v2890, %v2891
    %v2893 = vmul.f32 %v2892, %v2780
    %v2895 = vsel %vm286, %v2893, 0
    %2897 = vmatpush.msra.mxu0 0.0
    %2898 = vmatpush.msra.mxu0 0.0
    %2899 = vmatpush.msra.mxu0 0.0
    %2900 = vmatpush.msra.mxu0 0.0
    %2901 = vmatpush.msra.mxu0 0.0
    %2902 = vmatpush.msra.mxu0 0.0
    %2903 = vmatpush.msra.mxu0 %v2791
    %2904 = vmatpush.msra.mxu0 %v2790
    %2905 = vmatpush.msra.mxu0 %v2789
    %2906 = vmatpush.msra.mxu0 %v2788
    %2907 = vmatpush.msra.mxu0 %v2787
    %2908 = vmatpush.msra.mxu0 %v2786
    %2909 = vmatpush.msra.mxu0 %v2785
    %2910 = vmatpush.msra.mxu0 %v2784
    %2911 = vmatpush.msra.mxu0 %v2783
    %2912 = vmatpush.msra.mxu0 %v2782
    %2913 = vmatmul.f32.gmra.mxu0 %v2895
    %v2914 = vpop.f32.mrf.mxu0
    %v2915 = vadd.f32 0.0, %v2914
    %2916 = vdwg.mxu0
    %v2917 = vperm.slane %v2915, 0
    %v2918 = vmul.f32 %v2273, %v2917
    %v2919 = vadd.f32 %v2885, %v2918
    %v2920 = vld [vmem:[%s51] sm:$0x3f]
    %v2921 = vld [vmem:[%s53] sm:$0x3f]
    %2923 = vset.pattern.permute.xlu0 0
    %2924 = vperm.xlu0 %2923, %v2921
    %v2925 = vpop.permute.xlu0 %2924
    %vm2927 = vcmask 23552
    %v2929 = vsel %vm2927, %v2920, 0
    %vm2931 = vcmask 1042432
    %v2933 = vsel %vm2931, %v2919, 0
    %2935 = vmatpush.msra.mxu0 0.0
    %2936 = vmatpush.msra.mxu0 0.0
    %2937 = vmatpush.msra.mxu0 0.0
    %2938 = vmatpush.msra.mxu0 0.0
    %2939 = vmatpush.msra.mxu0 0.0
    %2940 = vmatpush.msra.mxu0 0.0
    %2941 = vmatpush.msra.mxu0 0.0
    %2942 = vmatpush.msra.mxu0 0.0
    %2943 = vmatpush.msra.mxu0 0.0
    %2944 = vmatpush.msra.mxu0 0.0
    %2945 = vmatpush.msra.mxu0 0.0
    %2946 = vmatpush.msra.mxu0 0.0
    %2947 = vmatpush.msra.mxu0 0.0
    %2948 = vmatpush.msra.mxu0 0.0
    %2949 = vmatpush.msra.mxu0 0.0
    %2950 = vmatpush.msra.mxu0 %v2933
    %2951 = vmatmul.f32.gmra.mxu0 %v2929
    %v2952 = vpop.f32.mrf.mxu0
    %v2953 = vadd.f32 %v2925, %v2952
    %2954 = vdwg.mxu0
    %v2955 = vmax.f32 %v2953, 0.0
    %v2956 = vld [vmem:[%s55] sm:$0x7]
    %v2957 = vld [vmem:[%s57] sm:$0x7]
    %2959 = vset.pattern.permute.xlu0 0
    %2960 = vperm.xlu0 %2959, %v2957
    %v2961 = vpop.permute.xlu0 %2960
    %vm2963 = vcmask 48128
    %v2965 = vsel %vm2963, %v2956, 0
    %vm2967 = vcmask 1045504
    %v2969 = vsel %vm2967, %v2955, 0
    %2971 = vmatpush.msra.mxu0 0.0
    %2972 = vmatpush.msra.mxu0 0.0
    %2973 = vmatpush.msra.mxu0 0.0
    %2974 = vmatpush.msra.mxu0 0.0
    %2975 = vmatpush.msra.mxu0 0.0
    %2976 = vmatpush.msra.mxu0 0.0
    %2977 = vmatpush.msra.mxu0 0.0
    %2978 = vmatpush.msra.mxu0 0.0
    %2979 = vmatpush.msra.mxu0 0.0
    %2980 = vmatpush.msra.mxu0 0.0
    %2981 = vmatpush.msra.mxu0 0.0
    %2982 = vmatpush.msra.mxu0 0.0
    %2983 = vmatpush.msra.mxu0 0.0
    %2984 = vmatpush.msra.mxu0 0.0
    %2985 = vmatpush.msra.mxu0 0.0
    %2986 = vmatpush.msra.mxu0 %v2969
    %2987 = vmatmul.f32.gmra.mxu0 %v2965
    %v2988 = vpop.f32.mrf.mxu0
    %v2989 = vadd.f32 %v2961, %v2988
    %2990 = vdwg.mxu0
    %v2991 = vxor.u32 %v2989, 2147483648
    %v2992 = vmul.f32 %v2991, 1.442695
    %v2993 = vpow.pop %v2992
    %v2994 = vadd.f32 %v2993, 1.0
    %v2995 = vrcp.pop %v2994
    %v2996 = vmul.f32 %v2994, %v2995
    %v2997 = vsub.f32 1.0, %v2996
    %v2998 = vmul.f32 %v2995, %v2997
    %v2999 = vadd.f32 %v2995, %v2998
    %vm3000 = vweird.f32 %v2994
    %vm3001 = vweird.f32 %v2995
    %vm3002 = vmor %vm3000, %vm3001
    %v3003 = vsel %vm3002, %v2995, %v2999
    %v3004 = vand.u32 2147483647, %v2994
    %vm3005 = vcmp.eq.f32.partialorder %v3004, 8.507059e+37
    %v3006 = vand.u32 %v2994, 2147483648
    %v3007 = vor.u32 1.1754944e-38, %v3006
    %v3008 = vsel %vm3005, %v3007, %v3003
    %v3009 = vmul.f32 1.0, %v3008
    %v3010 = vmul.f32 %v2228, %v3009
    %v3011 = vsel %vm2274, %v3010, 0.0
    %v3012 = vrot.slane %v3011, 4
    %v3013 = vadd.f32 %v3011, %v3012
    %v3014 = vrot.slane %v3013, 2
    %v3015 = vadd.f32 %v3013, %v3014
    %v3016 = vrot.slane %v3015, 1
    %v3017 = vadd.f32 %v3015, %v3016
    %v3018 = vld [vmem:[%s39] sm:$0xff]
    %v3019 = vld [vmem:[%s39 + $0x8] sm:$0xff]
    %vm3020 = vcmask 130048
    %v3022 = vsel %vm3020, %v3017, 0
    %3024 = vmatpush.msra.mxu0 0.0
    %3025 = vmatpush.msra.mxu0 0.0
    %3026 = vmatpush.msra.mxu0 0.0
    %3027 = vmatpush.msra.mxu0 0.0
    %3028 = vmatpush.msra.mxu0 0.0
    %3029 = vmatpush.msra.mxu0 0.0
    %3030 = vmatpush.msra.mxu0 0.0
    %3031 = vmatpush.msra.mxu0 0.0
    %3032 = vmatpush.msra.mxu0 0.0
    %3033 = vmatpush.msra.mxu0 0.0
    %3034 = vmatpush.msra.mxu0 0.0
    %3035 = vmatpush.msra.mxu0 0.0
    %3036 = vmatpush.msra.mxu0 0.0
    %3037 = vmatpush.msra.mxu0 0.0
    %3038 = vmatpush.msra.mxu0 %v3019
    %3039 = vmatpush.msra.mxu0 %v3018
    %3040 = vmatmul.f32.gmra.mxu0 %v3022
    %v3041 = vpop.f32.mrf.mxu0
    %v3042 = vadd.f32 0.0, %v3041
    %3043 = vdwg.mxu0
    %v3044 = vperm.slane %v3042, 0
    %v3045 = vmul.f32 %v2397, %v3044
    %v3046 = vadd.f32 %v3045, 0.0
    %v3047 = vmul.f32 %v2243, %v3009
    %v3048 = vsel %vm2274, %v3047, 0.0
    %v3049 = vrot.slane %v3048, 4
    %v3050 = vadd.f32 %v3048, %v3049
    %v3051 = vrot.slane %v3050, 2
    %v3052 = vadd.f32 %v3050, %v3051
    %v3053 = vrot.slane %v3052, 1
    %v3054 = vadd.f32 %v3052, %v3053
    %v3056 = vsel %vm3020, %v3054, 0
    %3058 = vmatpush.msra.mxu0 0.0
    %3059 = vmatpush.msra.mxu0 0.0
    %3060 = vmatpush.msra.mxu0 0.0
    %3061 = vmatpush.msra.mxu0 0.0
    %3062 = vmatpush.msra.mxu0 0.0
    %3063 = vmatpush.msra.mxu0 0.0
    %3064 = vmatpush.msra.mxu0 0.0
    %3065 = vmatpush.msra.mxu0 0.0
    %3066 = vmatpush.msra.mxu0 0.0
    %3067 = vmatpush.msra.mxu0 0.0
    %3068 = vmatpush.msra.mxu0 0.0
    %3069 = vmatpush.msra.mxu0 0.0
    %3070 = vmatpush.msra.mxu0 0.0
    %3071 = vmatpush.msra.mxu0 0.0
    %3072 = vmatpush.msra.mxu0 %v3019
    %3073 = vmatpush.msra.mxu0 %v3018
    %3074 = vmatmul.f32.gmra.mxu0 %v3056
    %v3075 = vpop.f32.mrf.mxu0
    %v3076 = vadd.f32 0.0, %v3075
    %3077 = vdwg.mxu0
    %v3078 = vperm.slane %v3076, 0
    %v3079 = vmul.f32 %v2520, %v3078
    %v3080 = vadd.f32 %v3046, %v3079
    %v3081 = vmul.f32 %v2258, %v3009
    %v3082 = vsel %vm2274, %v3081, 0.0
    %v3083 = vrot.slane %v3082, 4
    %v3084 = vadd.f32 %v3082, %v3083
    %v3085 = vrot.slane %v3084, 2
    %v3086 = vadd.f32 %v3084, %v3085
    %v3087 = vrot.slane %v3086, 1
    %v3088 = vadd.f32 %v3086, %v3087
    %v3090 = vsel %vm3020, %v3088, 0
    %3092 = vmatpush.msra.mxu0 0.0
    %3093 = vmatpush.msra.mxu0 0.0
    %3094 = vmatpush.msra.mxu0 0.0
    %3095 = vmatpush.msra.mxu0 0.0
    %3096 = vmatpush.msra.mxu0 0.0
    %3097 = vmatpush.msra.mxu0 0.0
    %3098 = vmatpush.msra.mxu0 0.0
    %3099 = vmatpush.msra.mxu0 0.0
    %3100 = vmatpush.msra.mxu0 0.0
    %3101 = vmatpush.msra.mxu0 0.0
    %3102 = vmatpush.msra.mxu0 0.0
    %3103 = vmatpush.msra.mxu0 0.0
    %3104 = vmatpush.msra.mxu0 0.0
    %3105 = vmatpush.msra.mxu0 0.0
    %3106 = vmatpush.msra.mxu0 %v3019
    %3107 = vmatpush.msra.mxu0 %v3018
    %3108 = vmatmul.f32.gmra.mxu0 %v3090
    %v3109 = vpop.f32.mrf.mxu0
    %v3110 = vadd.f32 0.0, %v3109
    %3111 = vdwg.mxu0
    %v3112 = vperm.slane %v3110, 0
    %v3113 = vmul.f32 %v2643, %v3112
    %v3114 = vadd.f32 %v3080, %v3113
    %v3115 = vmul.f32 %v2273, %v3009
    %v3116 = vsel %vm2274, %v3115, 0.0
    %v3117 = vrot.slane %v3116, 4
    %v3118 = vadd.f32 %v3116, %v3117
    %v3119 = vrot.slane %v3118, 2
    %v3120 = vadd.f32 %v3118, %v3119
    %v3121 = vrot.slane %v3120, 1
    %v3122 = vadd.f32 %v3120, %v3121
    %v3124 = vsel %vm3020, %v3122, 0
    %3126 = vmatpush.msra.mxu0 0.0
    %3127 = vmatpush.msra.mxu0 0.0
    %3128 = vmatpush.msra.mxu0 0.0
    %3129 = vmatpush.msra.mxu0 0.0
    %3130 = vmatpush.msra.mxu0 0.0
    %3131 = vmatpush.msra.mxu0 0.0
    %3132 = vmatpush.msra.mxu0 0.0
    %3133 = vmatpush.msra.mxu0 0.0
    %3134 = vmatpush.msra.mxu0 0.0
    %3135 = vmatpush.msra.mxu0 0.0
    %3136 = vmatpush.msra.mxu0 0.0
    %3137 = vmatpush.msra.mxu0 0.0
    %3138 = vmatpush.msra.mxu0 0.0
    %3139 = vmatpush.msra.mxu0 0.0
    %3140 = vmatpush.msra.mxu0 %v3019
    %3141 = vmatpush.msra.mxu0 %v3018
    %3142 = vmatmul.f32.gmra.mxu0 %v3124
    %v3143 = vpop.f32.mrf.mxu0
    %v3144 = vadd.f32 0.0, %v3143
    %3145 = vdwg.mxu0
    %v3146 = vperm.slane %v3144, 0
    %v3147 = vmul.f32 %v2766, %v3146
    %v3148 = vadd.f32 %v3114, %v3147
    %3149 = vst.msk [vmem:[%s59] sm:$0xff] %vm286, %v3148
    // Predicated region
    $region130: #{policy_gcn_forward.1} parent=1 // pred_check
      _
    $region131: #{policy_gcn_forward.1} parent=1 // pred_check_branch
      %3151 = sbr.rel (0) target = $region133
    $region132: #{policy_gcn_forward.1} parent=1 // pred_region
      _
    $region133: #{policy_gcn_forward.1} parent=1 // pred_fallthru
      _
    // Predicated region
    $region134: #{policy_gcn_forward.1} parent=1 // pred_check
      _
    $region135: #{policy_gcn_forward.1} parent=1 // pred_check_branch
      %3153 = sbr.rel (0) target = $region137
    $region136: #{policy_gcn_forward.1} parent=1 // pred_region
      _
    $region137: #{policy_gcn_forward.1} parent=1 // pred_fallthru
      _
    // Predicated region
    $region138: #{policy_gcn_forward.1} parent=1 // pred_check
      _
    $region139: #{policy_gcn_forward.1} parent=1 // pred_check_branch
      %3155 = sbr.rel (0) target = $region141
    $region140: #{policy_gcn_forward.1} parent=1 // pred_region
      _
    $region141: #{policy_gcn_forward.1} parent=1 // pred_fallthru
      _
    // Predicated region
    $region142: #{policy_gcn_forward.1} parent=1 // pred_check
      _
    $region143: #{policy_gcn_forward.1} parent=1 // pred_check_branch
      %3157 = sbr.rel (0) target = $region145
    $region144: #{policy_gcn_forward.1} parent=1 // pred_region
      _
    $region145: #{policy_gcn_forward.1} parent=1 // pred_fallthru
      _
    %3158 = vsyncpa [#allocation3], 1
    %3159 = vsyncpa [#allocation5], 1

</llo_original>
